<compile_context>
chip_gen: v5e
topology: v5e:2x2
jax: 0.10.0
libtpu: 0.0.40
codegen_flags: <defaults>
</compile_context>

<pallas_src>
import functools
import math

import jax
import jax.numpy as jnp
from jax.experimental import pallas as pl
from jax.experimental.pallas import tpu as pltpu

# ----------------------------- model hyper-parameters ------------------------------
D              = 32          # gpt_embedding_size (wte.weight.shape[1])
VOCAB          = 64          # synthetic GPT-2 vocab
VOCAB_PAD      = 128         # lane-dense logits store (sliced back to VOCAB in XLA)
N_HEAD         = 4           # heads (head_dim = 8)
HEAD_DIM       = D // N_HEAD
N_POS          = 32          # max positions (wpe rows)
N_GPT_LAYERS   = 2           # synthetic GPT-2 depth
PREFIX_SIZE    = 16          # CLIP feature size
PREFIX_LENGTH  = 4
CLIP_LENGTH    = 4
NUM_MAP_LAYERS = 1
MLP_HIDDEN     = 4 * D
MAX_LEN        = 20          # unused (see TODO above)

_F32 = jnp.float32
_BF16 = jnp.bfloat16

_BLOCK_KEYS = ("ln1_g", "ln1_b", "attn_w", "attn_b", "proj_w", "proj_b",
               "ln2_g", "ln2_b", "fc_w", "fc_b", "fc2_w", "fc2_b")
_N_BLOCK_PARAMS = len(_BLOCK_KEYS)


# ----------------------------------- helpers ---------------------------------------
def _ln(x, g, b, eps=1e-5):
    mu = jnp.mean(x, axis=-1, keepdims=True)
    var = jnp.mean(jnp.square(x - mu), axis=-1, keepdims=True)
    return (x - mu) * jax.lax.rsqrt(var + eps) * g + b


def _transformer_block(x, params, *, causal, act):
    """Value -> value transformer block on one (T, D) f32 slab (runs fully in-kernel)."""
    (ln1_g, ln1_b, attn_w, attn_b, proj_w, proj_b,
     ln2_g, ln2_b, fc_w, fc_b, fc2_w, fc2_b) = params
    T, Dm = x.shape
    hd = Dm // N_HEAD

    # ---- attention (1/sqrt(head_dim) already folded into Q columns of attn_w/attn_b) ----
    h = _ln(x, ln1_g, ln1_b)
    qkv = jnp.dot(h.astype(_BF16), attn_w, preferred_element_type=_F32) + attn_b  # (T, 3D) f32
    qkv_b = qkv.astype(_BF16)                                   # cast once for all head slices

    if causal:
        rows = jax.lax.broadcasted_iota(jnp.int32, (T, T), 0)
        cols = jax.lax.broadcasted_iota(jnp.int32, (T, T), 1)
        keep = rows >= cols

    heads = []
    for hh in range(N_HEAD):
        q = qkv_b[:, hh * hd:(hh + 1) * hd]
        k = qkv_b[:, Dm + hh * hd:Dm + (hh + 1) * hd]
        v = qkv_b[:, 2 * Dm + hh * hd:2 * Dm + (hh + 1) * hd]
        s = jax.lax.dot_general(q, k, (((1,), (1,)), ((), ())),
                                preferred_element_type=_F32)    # (T, T) f32
        if causal:
            s = jnp.where(keep, s, -1e30)
        s = s - jnp.max(s, axis=-1, keepdims=True)
        p = jnp.exp(s)
        p = p * pl.reciprocal(jnp.sum(p, axis=-1, keepdims=True), approx=True)
        heads.append(jnp.dot(p.astype(_BF16), v, preferred_element_type=_F32))  # (T, hd) f32

    # lane-concat heads -> ONE (T, D)@(D, D) output projection (32-deep contraction)
    o_cat = jnp.concatenate(heads, axis=-1).astype(_BF16)        # (T, D) bf16
    x = x + jnp.dot(o_cat, proj_w, preferred_element_type=_F32) + proj_b

    # ---- MLP ----
    h2 = _ln(x, ln2_g, ln2_b)
    f = jnp.dot(h2.astype(_BF16), fc_w, preferred_element_type=_F32) + fc_b
    if act == "gelu_new":   # GPT-2 tanh-approx GELU, f32 on VPU/EUP
        f = 0.5 * f * (1.0 + jnp.tanh(0.7978845608028654 * (f + 0.044715 * f * f * f)))
    else:                   # ReLU (ClipCap mapping-network MLP)
        f = jnp.maximum(f, 0.0)
    return x + jnp.dot(f.astype(_BF16), fc2_w, preferred_element_type=_F32) + fc2_b


# ------------------------------ fully-fused forward kernel ---------------------------
def _vqaclip_kernel(prefix_ref, emb_ref, *refs, n_map_layers, n_gpt_layers):
    it = iter(refs)

    def take(n):
        return tuple(next(it) for _ in range(n))

    lin_w, lin_b, prefix_const = take(3)                  # mapping-network linear + const prefix
    map_layer_refs = [take(_N_BLOCK_PARAMS) for _ in range(n_map_layers)]
    (wpe,) = take(1)
    gpt_layer_refs = [take(_N_BLOCK_PARAMS) for _ in range(n_gpt_layers)]
    lnf_g, lnf_b, wte_t = take(3)
    out_ref = next(it)                                    # (1, T_total, VOCAB_PAD)
    xbuf = next(it)                                       # VMEM scratch (T_total, D) f32

    t_total = out_ref.shape[1]
    t_map = CLIP_LENGTH + PREFIX_LENGTH

    # ---- mapping network: linear(prefix) -> (CLIP_LENGTH, D), then cat learnable prefix ----
    pv = prefix_ref[0].astype(_BF16)                      # (1, PREFIX_SIZE)
    for c in range(CLIP_LENGTH):                          # lin_w is pre-split per clip position
        row = jnp.dot(pv, lin_w[c], preferred_element_type=_F32) + lin_b[c:c + 1, :]
        xbuf[c:c + 1, :] = row
    xbuf[CLIP_LENGTH:t_map, :] = prefix_const[...]

    xm = xbuf[0:t_map, :]                                 # (t_map, D) f32
    for lrefs in map_layer_refs:
        xm = _transformer_block(xm, tuple(r[...] for r in lrefs), causal=False, act="relu")

    # ---- assemble GPT-2 input: [mapped prefix ; token embeddings] + positional embeddings ----
    xbuf[0:PREFIX_LENGTH, :] = xm[CLIP_LENGTH:t_map, :]
    xbuf[PREFIX_LENGTH:t_total, :] = emb_ref[0]
    x = xbuf[...] + wpe[...]                              # (t_total, D) f32

    for lrefs in gpt_layer_refs:
        x = _transformer_block(x, tuple(r[...] for r in lrefs), causal=True, act="gelu_new")

    # ---- final LN + tied LM head (lane-dense padded logits) ----
    h = _ln(x, lnf_g[...], lnf_b[...])
    out_ref[0] = jnp.dot(h.astype(_BF16), wte_t[...],
                         preferred_element_type=_F32).astype(out_ref.dtype)


# ----------------------------------- JAX wrapper -------------------------------------
def vqaclip_forward(params, prefix, input_tokens):
    B = prefix.shape[0]
    seq = input_tokens.shape[1]
    t_total = PREFIX_LENGTH + seq

    # TODO(synk): token-embedding gather stays in XLA (jnp.take); a gather kernel buys nothing
    # at this size.
    emb = jnp.take(params["gpt"]["wte"], input_tokens, axis=0)          # (B, seq, D) f32
    prefix3 = prefix.reshape(B, 1, PREFIX_SIZE)

    mp, gp = params["map"], params["gpt"]
    weight_args = [mp["lin_w_r"], mp["lin_b_r"], mp["prefix_const"]]
    for layer in mp["layers"]:
        weight_args += [layer[k] for k in _BLOCK_KEYS]
    weight_args.append(gp["wpe"][:t_total])
    for layer in gp["layers"]:
        weight_args += [layer[k] for k in _BLOCK_KEYS]
    weight_args += [gp["lnf_g"], gp["lnf_b"], gp["wte_t_pad"]]

    def resident(a):  # full-array block, same index for every grid step -> stays in VMEM
        nd = a.ndim
        return pl.BlockSpec(a.shape, lambda b, _nd=nd: (0,) * _nd)

    kernel = functools.partial(_vqaclip_kernel,
                               n_map_layers=len(mp["layers"]),
                               n_gpt_layers=len(gp["layers"]))

    logits_pad = pl.pallas_call(
        kernel,
        grid=(B,),
        in_specs=[pl.BlockSpec((1, 1, PREFIX_SIZE), lambda b: (b, 0, 0)),
                  pl.BlockSpec((1, seq, D), lambda b: (b, 0, 0))]
                 + [resident(a) for a in weight_args],
        out_specs=pl.BlockSpec((1, t_total, VOCAB_PAD), lambda b: (b, 0, 0)),
        out_shape=jax.ShapeDtypeStruct((B, t_total, VOCAB_PAD), _F32),
        scratch_shapes=[pltpu.VMEM((max(t_total, CLIP_LENGTH + PREFIX_LENGTH), D), _F32)],
        compiler_params=pltpu.CompilerParams(dimension_semantics=("parallel",)),
    )(prefix3, emb, *weight_args)

    return logits_pad[..., :VOCAB]                        # drop lane padding in XLA


# ------------------------------ deterministic parameters -----------------------------
def init_params(key):
    keys = iter(jax.random.split(key, 64))

    def nrm(shape, std=0.02, dtype=_F32):
        return (std * jax.random.normal(next(keys), shape, _F32)).astype(dtype)

    def block_params():
        attn_w = nrm((D, 3 * D))
        # fold 1/sqrt(head_dim) into the Q columns (bias is zero, so folding it there is a no-op)
        attn_w = attn_w.at[:, :D].multiply(1.0 / math.sqrt(HEAD_DIM))
        return dict(
            ln1_g=jnp.ones((1, D), _F32), ln1_b=jnp.zeros((1, D), _F32),
            attn_w=attn_w.astype(_BF16), attn_b=jnp.zeros((1, 3 * D), _F32),
            proj_w=nrm((D, D), dtype=_BF16), proj_b=jnp.zeros((1, D), _F32),
            ln2_g=jnp.ones((1, D), _F32), ln2_b=jnp.zeros((1, D), _F32),
            fc_w=nrm((D, MLP_HIDDEN), dtype=_BF16), fc_b=jnp.zeros((1, MLP_HIDDEN), _F32),
            fc2_w=nrm((MLP_HIDDEN, D), dtype=_BF16), fc2_b=jnp.zeros((1, D), _F32),
        )

    wte = nrm((VOCAB, D))

    # mapping-network linear, pre-split per clip position: lin_w_r[c, p, d] = lin_w[p, c*D + d]
    lin_w = nrm((PREFIX_SIZE, CLIP_LENGTH * D))
    lin_w_r = lin_w.reshape(PREFIX_SIZE, CLIP_LENGTH, D).transpose(1, 0, 2).astype(_BF16)
    lin_b_r = jnp.zeros((CLIP_LENGTH, D), _F32)

    mapping = dict(
        lin_w_r=lin_w_r, lin_b_r=lin_b_r,
        prefix_const=nrm((PREFIX_LENGTH, D), std=1.0),
        layers=[block_params() for _ in range(NUM_MAP_LAYERS)],
    )

    # tied LM head: wte^T, zero-padded to 128 output lanes (lane-dense store)
    wte_t_pad = jnp.pad(wte.T, ((0, 0), (0, VOCAB_PAD - VOCAB))).astype(_BF16)
    gpt = dict(
        wte=wte,                                   # f32 for the embedding gather
        wte_t_pad=wte_t_pad,
        wpe=nrm((N_POS, D), std=0.01),
        layers=[block_params() for _ in range(N_GPT_LAYERS)],
        lnf_g=jnp.ones((1, D), _F32), lnf_b=jnp.zeros((1, D), _F32),
    )
    return dict(map=mapping, gpt=gpt)


# --------------------------------------- main ----------------------------------------
if __name__ == "__main__":
    key = jax.random.PRNGKey(0)
    kp, kx, kt = jax.random.split(key, 3)

    params = init_params(kp)

    B, SEQ = 2, 8
    prefix = jax.random.normal(kx, (B, PREFIX_SIZE), _F32)                # CLIP features
    input_tokens = jax.random.randint(kt, (B, SEQ), 0, VOCAB, jnp.int32)  # GPT-2 token ids

    logits = jax.jit(vqaclip_forward)(params, prefix, input_tokens)
    logits = jax.block_until_ready(logits)

    assert logits.shape == (B, PREFIX_LENGTH + SEQ, VOCAB)
    assert bool(jnp.all(jnp.isfinite(logits)))
    print("KERNEL_OK")
</pallas_src>

<mosaic_0001>
module attributes {stable_mosaic.version = 11 : i64} {
  func.func @_vqaclip_kernel(%arg0: i32, %arg1: memref<1x1x16xf32, #tpu.memory_space<vmem>>, %arg2: memref<1x8x32xf32, #tpu.memory_space<vmem>>, %arg3: memref<4x16x32xbf16, #tpu.memory_space<vmem>>, %arg4: memref<4x32xf32, #tpu.memory_space<vmem>>, %arg5: memref<4x32xf32, #tpu.memory_space<vmem>>, %arg6: memref<1x32xf32, #tpu.memory_space<vmem>>, %arg7: memref<1x32xf32, #tpu.memory_space<vmem>>, %arg8: memref<32x96xbf16, #tpu.memory_space<vmem>>, %arg9: memref<1x96xf32, #tpu.memory_space<vmem>>, %arg10: memref<32x32xbf16, #tpu.memory_space<vmem>>, %arg11: memref<1x32xf32, #tpu.memory_space<vmem>>, %arg12: memref<1x32xf32, #tpu.memory_space<vmem>>, %arg13: memref<1x32xf32, #tpu.memory_space<vmem>>, %arg14: memref<32x128xbf16, #tpu.memory_space<vmem>>, %arg15: memref<1x128xf32, #tpu.memory_space<vmem>>, %arg16: memref<128x32xbf16, #tpu.memory_space<vmem>>, %arg17: memref<1x32xf32, #tpu.memory_space<vmem>>, %arg18: memref<12x32xf32, #tpu.memory_space<vmem>>, %arg19: memref<1x32xf32, #tpu.memory_space<vmem>>, %arg20: memref<1x32xf32, #tpu.memory_space<vmem>>, %arg21: memref<32x96xbf16, #tpu.memory_space<vmem>>, %arg22: memref<1x96xf32, #tpu.memory_space<vmem>>, %arg23: memref<32x32xbf16, #tpu.memory_space<vmem>>, %arg24: memref<1x32xf32, #tpu.memory_space<vmem>>, %arg25: memref<1x32xf32, #tpu.memory_space<vmem>>, %arg26: memref<1x32xf32, #tpu.memory_space<vmem>>, %arg27: memref<32x128xbf16, #tpu.memory_space<vmem>>, %arg28: memref<1x128xf32, #tpu.memory_space<vmem>>, %arg29: memref<128x32xbf16, #tpu.memory_space<vmem>>, %arg30: memref<1x32xf32, #tpu.memory_space<vmem>>, %arg31: memref<1x32xf32, #tpu.memory_space<vmem>>, %arg32: memref<1x32xf32, #tpu.memory_space<vmem>>, %arg33: memref<32x96xbf16, #tpu.memory_space<vmem>>, %arg34: memref<1x96xf32, #tpu.memory_space<vmem>>, %arg35: memref<32x32xbf16, #tpu.memory_space<vmem>>, %arg36: memref<1x32xf32, #tpu.memory_space<vmem>>, %arg37: memref<1x32xf32, #tpu.memory_space<vmem>>, %arg38: memref<1x32xf32, #tpu.memory_space<vmem>>, %arg39: memref<32x128xbf16, #tpu.memory_space<vmem>>, %arg40: memref<1x128xf32, #tpu.memory_space<vmem>>, %arg41: memref<128x32xbf16, #tpu.memory_space<vmem>>, %arg42: memref<1x32xf32, #tpu.memory_space<vmem>>, %arg43: memref<1x32xf32, #tpu.memory_space<vmem>>, %arg44: memref<1x32xf32, #tpu.memory_space<vmem>>, %arg45: memref<32x128xbf16, #tpu.memory_space<vmem>>, %arg46: memref<1x12x128xf32, #tpu.memory_space<vmem>>, %arg47: memref<12x32xf32, #tpu.memory_space<vmem>>) attributes {dimension_semantics = [#tpu.dimension_semantics<parallel>], iteration_bounds = array<i64: 2>, scalar_prefetch = 0 : i64, scratch_operands = 1 : i64, tpu.core_type = #tpu.core_type<tc>, window_params = [{transform_indices = @transform_0, window_bounds = array<i64: 1, 1, 16>}, {transform_indices = @transform_1, window_bounds = array<i64: 1, 8, 32>}, {pipeline_mode = #tpu.pipeline_mode<synchronous>, transform_indices = @transform_2, window_bounds = array<i64: 4, 16, 32>}, {pipeline_mode = #tpu.pipeline_mode<synchronous>, transform_indices = @transform_3, window_bounds = array<i64: 4, 32>}, {pipeline_mode = #tpu.pipeline_mode<synchronous>, transform_indices = @transform_4, window_bounds = array<i64: 4, 32>}, {pipeline_mode = #tpu.pipeline_mode<synchronous>, transform_indices = @transform_5, window_bounds = array<i64: 1, 32>}, {pipeline_mode = #tpu.pipeline_mode<synchronous>, transform_indices = @transform_6, window_bounds = array<i64: 1, 32>}, {pipeline_mode = #tpu.pipeline_mode<synchronous>, transform_indices = @transform_7, window_bounds = array<i64: 32, 96>}, {pipeline_mode = #tpu.pipeline_mode<synchronous>, transform_indices = @transform_8, window_bounds = array<i64: 1, 96>}, {pipeline_mode = #tpu.pipeline_mode<synchronous>, transform_indices = @transform_9, window_bounds = array<i64: 32, 32>}, {pipeline_mode = #tpu.pipeline_mode<synchronous>, transform_indices = @transform_10, window_bounds = array<i64: 1, 32>}, {pipeline_mode = #tpu.pipeline_mode<synchronous>, transform_indices = @transform_11, window_bounds = array<i64: 1, 32>}, {pipeline_mode = #tpu.pipeline_mode<synchronous>, transform_indices = @transform_12, window_bounds = array<i64: 1, 32>}, {pipeline_mode = #tpu.pipeline_mode<synchronous>, transform_indices = @transform_13, window_bounds = array<i64: 32, 128>}, {pipeline_mode = #tpu.pipeline_mode<synchronous>, transform_indices = @transform_14, window_bounds = array<i64: 1, 128>}, {pipeline_mode = #tpu.pipeline_mode<synchronous>, transform_indices = @transform_15, window_bounds = array<i64: 128, 32>}, {pipeline_mode = #tpu.pipeline_mode<synchronous>, transform_indices = @transform_16, window_bounds = array<i64: 1, 32>}, {pipeline_mode = #tpu.pipeline_mode<synchronous>, transform_indices = @transform_17, window_bounds = array<i64: 12, 32>}, {pipeline_mode = #tpu.pipeline_mode<synchronous>, transform_indices = @transform_18, window_bounds = array<i64: 1, 32>}, {pipeline_mode = #tpu.pipeline_mode<synchronous>, transform_indices = @transform_19, window_bounds = array<i64: 1, 32>}, {pipeline_mode = #tpu.pipeline_mode<synchronous>, transform_indices = @transform_20, window_bounds = array<i64: 32, 96>}, {pipeline_mode = #tpu.pipeline_mode<synchronous>, transform_indices = @transform_21, window_bounds = array<i64: 1, 96>}, {pipeline_mode = #tpu.pipeline_mode<synchronous>, transform_indices = @transform_22, window_bounds = array<i64: 32, 32>}, {pipeline_mode = #tpu.pipeline_mode<synchronous>, transform_indices = @transform_23, window_bounds = array<i64: 1, 32>}, {pipeline_mode = #tpu.pipeline_mode<synchronous>, transform_indices = @transform_24, window_bounds = array<i64: 1, 32>}, {pipeline_mode = #tpu.pipeline_mode<synchronous>, transform_indices = @transform_25, window_bounds = array<i64: 1, 32>}, {pipeline_mode = #tpu.pipeline_mode<synchronous>, transform_indices = @transform_26, window_bounds = array<i64: 32, 128>}, {pipeline_mode = #tpu.pipeline_mode<synchronous>, transform_indices = @transform_27, window_bounds = array<i64: 1, 128>}, {pipeline_mode = #tpu.pipeline_mode<synchronous>, transform_indices = @transform_28, window_bounds = array<i64: 128, 32>}, {pipeline_mode = #tpu.pipeline_mode<synchronous>, transform_indices = @transform_29, window_bounds = array<i64: 1, 32>}, {pipeline_mode = #tpu.pipeline_mode<synchronous>, transform_indices = @transform_30, window_bounds = array<i64: 1, 32>}, {pipeline_mode = #tpu.pipeline_mode<synchronous>, transform_indices = @transform_31, window_bounds = array<i64: 1, 32>}, {pipeline_mode = #tpu.pipeline_mode<synchronous>, transform_indices = @transform_32, window_bounds = array<i64: 32, 96>}, {pipeline_mode = #tpu.pipeline_mode<synchronous>, transform_indices = @transform_33, window_bounds = array<i64: 1, 96>}, {pipeline_mode = #tpu.pipeline_mode<synchronous>, transform_indices = @transform_34, window_bounds = array<i64: 32, 32>}, {pipeline_mode = #tpu.pipeline_mode<synchronous>, transform_indices = @transform_35, window_bounds = array<i64: 1, 32>}, {pipeline_mode = #tpu.pipeline_mode<synchronous>, transform_indices = @transform_36, window_bounds = array<i64: 1, 32>}, {pipeline_mode = #tpu.pipeline_mode<synchronous>, transform_indices = @transform_37, window_bounds = array<i64: 1, 32>}, {pipeline_mode = #tpu.pipeline_mode<synchronous>, transform_indices = @transform_38, window_bounds = array<i64: 32, 128>}, {pipeline_mode = #tpu.pipeline_mode<synchronous>, transform_indices = @transform_39, window_bounds = array<i64: 1, 128>}, {pipeline_mode = #tpu.pipeline_mode<synchronous>, transform_indices = @transform_40, window_bounds = array<i64: 128, 32>}, {pipeline_mode = #tpu.pipeline_mode<synchronous>, transform_indices = @transform_41, window_bounds = array<i64: 1, 32>}, {pipeline_mode = #tpu.pipeline_mode<synchronous>, transform_indices = @transform_42, window_bounds = array<i64: 1, 32>}, {pipeline_mode = #tpu.pipeline_mode<synchronous>, transform_indices = @transform_43, window_bounds = array<i64: 1, 32>}, {pipeline_mode = #tpu.pipeline_mode<synchronous>, transform_indices = @transform_44, window_bounds = array<i64: 32, 128>}, {transform_indices = @transform_45, window_bounds = array<i64: 1, 12, 128>}]} {
    %c0 = arith.constant 0 : index
    %c0_0 = arith.constant 0 : index
    %c0_1 = arith.constant 0 : index
    %0 = vector.load %arg1[%c0, %c0_0, %c0_1] : memref<1x1x16xf32, #tpu.memory_space<vmem>>, vector<1x1x16xf32>
    %1 = vector.shape_cast %0 : vector<1x1x16xf32> to vector<1x16xf32>
    %2 = arith.truncf %1 : vector<1x16xf32> to vector<1x16xbf16>
    %c0_2 = arith.constant 0 : index
    %c0_3 = arith.constant 0 : index
    %c0_4 = arith.constant 0 : index
    %3 = vector.load %arg3[%c0_2, %c0_3, %c0_4] : memref<4x16x32xbf16, #tpu.memory_space<vmem>>, vector<1x16x32xbf16>
    %4 = vector.shape_cast %3 : vector<1x16x32xbf16> to vector<16x32xbf16>
    %cst = arith.constant dense<0.000000e+00> : vector<1x32xf32>
    %5 = tpu.matmul %2, %4, %cst {dimension_numbers = #tpu.dot_dimension_numbers<[1], [0], [0], [1], [0, 0, 1, 1], [], []>} : vector<1x16xbf16>, vector<16x32xbf16>, vector<1x32xf32> -> vector<1x32xf32>
    %c0_5 = arith.constant 0 : index
    %c0_6 = arith.constant 0 : index
    %6 = vector.load %arg4[%c0_5, %c0_6] : memref<4x32xf32, #tpu.memory_space<vmem>>, vector<1x32xf32>
    %7 = arith.addf %5, %6 : vector<1x32xf32>
    %c0_7 = arith.constant 0 : index
    %c0_8 = arith.constant 0 : index
    %8 = vector.load %arg47[%c0_7, %c0_8] : memref<12x32xf32, #tpu.memory_space<vmem>>, vector<1x32xf32>
    tpu.vector_store %arg47[%c0_7, %c0_8], %7 {strides = array<i32>} : memref<12x32xf32, #tpu.memory_space<vmem>>, vector<1x32xf32>,
    %c1 = arith.constant 1 : index
    %c0_9 = arith.constant 0 : index
    %c0_10 = arith.constant 0 : index
    %9 = vector.load %arg3[%c1, %c0_9, %c0_10] : memref<4x16x32xbf16, #tpu.memory_space<vmem>>, vector<1x16x32xbf16>
    %10 = vector.shape_cast %9 : vector<1x16x32xbf16> to vector<16x32xbf16>
    %cst_11 = arith.constant dense<0.000000e+00> : vector<1x32xf32>
    %11 = tpu.matmul %2, %10, %cst_11 {dimension_numbers = #tpu.dot_dimension_numbers<[1], [0], [0], [1], [0, 0, 1, 1], [], []>} : vector<1x16xbf16>, vector<16x32xbf16>, vector<1x32xf32> -> vector<1x32xf32>
    %c1_12 = arith.constant 1 : index
    %c0_13 = arith.constant 0 : index
    %12 = vector.load %arg4[%c1_12, %c0_13] : memref<4x32xf32, #tpu.memory_space<vmem>>, vector<1x32xf32>
    %13 = arith.addf %11, %12 : vector<1x32xf32>
    %c1_14 = arith.constant 1 : index
    %c0_15 = arith.constant 0 : index
    %14 = vector.load %arg47[%c1_14, %c0_15] : memref<12x32xf32, #tpu.memory_space<vmem>>, vector<1x32xf32>
    tpu.vector_store %arg47[%c1_14, %c0_15], %13 {strides = array<i32>} : memref<12x32xf32, #tpu.memory_space<vmem>>, vector<1x32xf32>,
    %c2 = arith.constant 2 : index
    %c0_16 = arith.constant 0 : index
    %c0_17 = arith.constant 0 : index
    %15 = vector.load %arg3[%c2, %c0_16, %c0_17] : memref<4x16x32xbf16, #tpu.memory_space<vmem>>, vector<1x16x32xbf16>
    %16 = vector.shape_cast %15 : vector<1x16x32xbf16> to vector<16x32xbf16>
    %cst_18 = arith.constant dense<0.000000e+00> : vector<1x32xf32>
    %17 = tpu.matmul %2, %16, %cst_18 {dimension_numbers = #tpu.dot_dimension_numbers<[1], [0], [0], [1], [0, 0, 1, 1], [], []>} : vector<1x16xbf16>, vector<16x32xbf16>, vector<1x32xf32> -> vector<1x32xf32>
    %c2_19 = arith.constant 2 : index
    %c0_20 = arith.constant 0 : index
    %18 = vector.load %arg4[%c2_19, %c0_20] : memref<4x32xf32, #tpu.memory_space<vmem>>, vector<1x32xf32>
    %19 = arith.addf %17, %18 : vector<1x32xf32>
    %c2_21 = arith.constant 2 : index
    %c0_22 = arith.constant 0 : index
    %20 = vector.load %arg47[%c2_21, %c0_22] : memref<12x32xf32, #tpu.memory_space<vmem>>, vector<1x32xf32>
    tpu.vector_store %arg47[%c2_21, %c0_22], %19 {strides = array<i32>} : memref<12x32xf32, #tpu.memory_space<vmem>>, vector<1x32xf32>,
    %c3 = arith.constant 3 : index
    %c0_23 = arith.constant 0 : index
    %c0_24 = arith.constant 0 : index
    %21 = vector.load %arg3[%c3, %c0_23, %c0_24] : memref<4x16x32xbf16, #tpu.memory_space<vmem>>, vector<1x16x32xbf16>
    %22 = vector.shape_cast %21 : vector<1x16x32xbf16> to vector<16x32xbf16>
    %cst_25 = arith.constant dense<0.000000e+00> : vector<1x32xf32>
    %23 = tpu.matmul %2, %22, %cst_25 {dimension_numbers = #tpu.dot_dimension_numbers<[1], [0], [0], [1], [0, 0, 1, 1], [], []>} : vector<1x16xbf16>, vector<16x32xbf16>, vector<1x32xf32> -> vector<1x32xf32>
    %c3_26 = arith.constant 3 : index
    %c0_27 = arith.constant 0 : index
    %24 = vector.load %arg4[%c3_26, %c0_27] : memref<4x32xf32, #tpu.memory_space<vmem>>, vector<1x32xf32>
    %25 = arith.addf %23, %24 : vector<1x32xf32>
    %c3_28 = arith.constant 3 : index
    %c0_29 = arith.constant 0 : index
    %26 = vector.load %arg47[%c3_28, %c0_29] : memref<12x32xf32, #tpu.memory_space<vmem>>, vector<1x32xf32>
    tpu.vector_store %arg47[%c3_28, %c0_29], %25 {strides = array<i32>} : memref<12x32xf32, #tpu.memory_space<vmem>>, vector<1x32xf32>,
    %c0_30 = arith.constant 0 : index
    %c0_31 = arith.constant 0 : index
    %27 = vector.load %arg5[%c0_30, %c0_31] : memref<4x32xf32, #tpu.memory_space<vmem>>, vector<4x32xf32>
    %c4 = arith.constant 4 : index
    %c0_32 = arith.constant 0 : index
    %28 = vector.load %arg47[%c4, %c0_32] : memref<12x32xf32, #tpu.memory_space<vmem>>, vector<4x32xf32>
    tpu.vector_store %arg47[%c4, %c0_32], %27 {strides = array<i32>} : memref<12x32xf32, #tpu.memory_space<vmem>>, vector<4x32xf32>,
    %c0_33 = arith.constant 0 : index
    %c0_34 = arith.constant 0 : index
    %29 = vector.load %arg47[%c0_33, %c0_34] : memref<12x32xf32, #tpu.memory_space<vmem>>, vector<8x32xf32>
    %c0_35 = arith.constant 0 : index
    %c0_36 = arith.constant 0 : index
    %30 = vector.load %arg6[%c0_35, %c0_36] : memref<1x32xf32, #tpu.memory_space<vmem>>, vector<1x32xf32>
    %c0_37 = arith.constant 0 : index
    %c0_38 = arith.constant 0 : index
    %31 = vector.load %arg7[%c0_37, %c0_38] : memref<1x32xf32, #tpu.memory_space<vmem>>, vector<1x32xf32>
    %c0_39 = arith.constant 0 : index
    %c0_40 = arith.constant 0 : index
    %32 = vector.load %arg8[%c0_39, %c0_40] : memref<32x96xbf16, #tpu.memory_space<vmem>>, vector<32x96xbf16>
    %c0_41 = arith.constant 0 : index
    %c0_42 = arith.constant 0 : index
    %33 = vector.load %arg9[%c0_41, %c0_42] : memref<1x96xf32, #tpu.memory_space<vmem>>, vector<1x96xf32>
    %c0_43 = arith.constant 0 : index
    %c0_44 = arith.constant 0 : index
    %34 = vector.load %arg10[%c0_43, %c0_44] : memref<32x32xbf16, #tpu.memory_space<vmem>>, vector<32x32xbf16>
    %c0_45 = arith.constant 0 : index
    %c0_46 = arith.constant 0 : index
    %35 = vector.load %arg11[%c0_45, %c0_46] : memref<1x32xf32, #tpu.memory_space<vmem>>, vector<1x32xf32>
    %c0_47 = arith.constant 0 : index
    %c0_48 = arith.constant 0 : index
    %36 = vector.load %arg12[%c0_47, %c0_48] : memref<1x32xf32, #tpu.memory_space<vmem>>, vector<1x32xf32>
    %c0_49 = arith.constant 0 : index
    %c0_50 = arith.constant 0 : index
    %37 = vector.load %arg13[%c0_49, %c0_50] : memref<1x32xf32, #tpu.memory_space<vmem>>, vector<1x32xf32>
    %c0_51 = arith.constant 0 : index
    %c0_52 = arith.constant 0 : index
    %38 = vector.load %arg14[%c0_51, %c0_52] : memref<32x128xbf16, #tpu.memory_space<vmem>>, vector<32x128xbf16>
    %c0_53 = arith.constant 0 : index
    %c0_54 = arith.constant 0 : index
    %39 = vector.load %arg15[%c0_53, %c0_54] : memref<1x128xf32, #tpu.memory_space<vmem>>, vector<1x128xf32>
    %c0_55 = arith.constant 0 : index
    %c0_56 = arith.constant 0 : index
    %40 = vector.load %arg16[%c0_55, %c0_56] : memref<128x32xbf16, #tpu.memory_space<vmem>>, vector<128x32xbf16>
    %c0_57 = arith.constant 0 : index
    %c0_58 = arith.constant 0 : index
    %41 = vector.load %arg17[%c0_57, %c0_58] : memref<1x32xf32, #tpu.memory_space<vmem>>, vector<1x32xf32>
    %cst_59 = arith.constant dense<0.000000e+00> : vector<8xf32>
    %42 = vector.multi_reduction <add>, %29, %cst_59 [1] : vector<8x32xf32> to vector<8xf32>
    %43 = vector.shape_cast %42 : vector<8xf32> to vector<8x1xf32>
    %cst_60 = arith.constant 3.200000e+01 : f32
    %44 = vector.broadcast %cst_60 : f32 to vector<8x1xf32>
    %45 = arith.divf %43, %44 : vector<8x1xf32>
    %46 = vector.broadcast %45 : vector<8x1xf32> to vector<8x32xf32>
    %47 = arith.subf %29, %46 : vector<8x32xf32>
    %48 = arith.mulf %47, %47 : vector<8x32xf32>
    %cst_61 = arith.constant dense<0.000000e+00> : vector<8xf32>
    %49 = vector.multi_reduction <add>, %48, %cst_61 [1] : vector<8x32xf32> to vector<8xf32>
    %50 = vector.shape_cast %49 : vector<8xf32> to vector<8x1xf32>
    %cst_62 = arith.constant 3.200000e+01 : f32
    %51 = vector.broadcast %cst_62 : f32 to vector<8x1xf32>
    %52 = arith.divf %50, %51 : vector<8x1xf32>
    %53 = vector.broadcast %45 : vector<8x1xf32> to vector<8x32xf32>
    %54 = arith.subf %29, %53 : vector<8x32xf32>
    %cst_63 = arith.constant 9.99999974E-6 : f32
    %55 = vector.broadcast %cst_63 : f32 to vector<8x1xf32>
    %56 = arith.addf %52, %55 : vector<8x1xf32>
    %57 = math.rsqrt %56 : vector<8x1xf32>
    %58 = vector.broadcast %57 : vector<8x1xf32> to vector<8x32xf32>
    %59 = arith.mulf %54, %58 : vector<8x32xf32>
    %60 = vector.broadcast %30 : vector<1x32xf32> to vector<8x32xf32>
    %61 = arith.mulf %59, %60 : vector<8x32xf32>
    %62 = vector.broadcast %31 : vector<1x32xf32> to vector<8x32xf32>
    %63 = arith.addf %61, %62 : vector<8x32xf32>
    %64 = arith.truncf %63 : vector<8x32xf32> to vector<8x32xbf16>
    %cst_64 = arith.constant dense<0.000000e+00> : vector<8x96xf32>
    %65 = tpu.matmul %64, %32, %cst_64 {dimension_numbers = #tpu.dot_dimension_numbers<[1], [0], [0], [1], [0, 0, 1, 1], [], []>} : vector<8x32xbf16>, vector<32x96xbf16>, vector<8x96xf32> -> vector<8x96xf32>
    %66 = vector.broadcast %33 : vector<1x96xf32> to vector<8x96xf32>
    %67 = arith.addf %65, %66 : vector<8x96xf32>
    %68 = arith.truncf %67 : vector<8x96xf32> to vector<8x96xbf16>
    %69 = vector.extract_strided_slice %68 {offsets = [0, 0], sizes = [8, 8], strides = [1, 1]} : vector<8x96xbf16> to vector<8x8xbf16>
    %70 = vector.extract_strided_slice %68 {offsets = [0, 32], sizes = [8, 8], strides = [1, 1]} : vector<8x96xbf16> to vector<8x8xbf16>
    %71 = vector.extract_strided_slice %68 {offsets = [0, 64], sizes = [8, 8], strides = [1, 1]} : vector<8x96xbf16> to vector<8x8xbf16>
    %cst_65 = arith.constant dense<0.000000e+00> : vector<8x8xf32>
    %72 = tpu.matmul %69, %70, %cst_65 {dimension_numbers = #tpu.dot_dimension_numbers<[1], [1], [0], [0], [0, 0, 1, 0], [], []>} : vector<8x8xbf16>, vector<8x8xbf16>, vector<8x8xf32> -> vector<8x8xf32>
    %cst_66 = arith.constant dense<0xFF800000> : vector<8xf32>
    %73 = vector.multi_reduction <maximumf>, %72, %cst_66 [1] : vector<8x8xf32> to vector<8xf32>
    %74 = vector.shape_cast %73 : vector<8xf32> to vector<8x1xf32>
    %75 = vector.broadcast %74 : vector<8x1xf32> to vector<8x8xf32>
    %76 = arith.subf %72, %75 : vector<8x8xf32>
    %77 = math.exp %76 : vector<8x8xf32>
    %cst_67 = arith.constant dense<0.000000e+00> : vector<8xf32>
    %78 = vector.multi_reduction <add>, %77, %cst_67 [1] : vector<8x8xf32> to vector<8xf32>
    %79 = vector.shape_cast %78 : vector<8xf32> to vector<8x1xf32>
    %80 = tpu.reciprocal %79 {approx = true} : vector<8x1xf32> -> vector<8x1xf32>
    %81 = vector.broadcast %80 : vector<8x1xf32> to vector<8x8xf32>
    %82 = arith.mulf %77, %81 : vector<8x8xf32>
    %83 = arith.truncf %82 : vector<8x8xf32> to vector<8x8xbf16>
    %cst_68 = arith.constant dense<0.000000e+00> : vector<8x8xf32>
    %84 = tpu.matmul %83, %71, %cst_68 {dimension_numbers = #tpu.dot_dimension_numbers<[1], [0], [0], [1], [0, 0, 1, 1], [], []>} : vector<8x8xbf16>, vector<8x8xbf16>, vector<8x8xf32> -> vector<8x8xf32>
    %85 = vector.extract_strided_slice %68 {offsets = [0, 8], sizes = [8, 8], strides = [1, 1]} : vector<8x96xbf16> to vector<8x8xbf16>
    %86 = vector.extract_strided_slice %68 {offsets = [0, 40], sizes = [8, 8], strides = [1, 1]} : vector<8x96xbf16> to vector<8x8xbf16>
    %87 = vector.extract_strided_slice %68 {offsets = [0, 72], sizes = [8, 8], strides = [1, 1]} : vector<8x96xbf16> to vector<8x8xbf16>
    %cst_69 = arith.constant dense<0.000000e+00> : vector<8x8xf32>
    %88 = tpu.matmul %85, %86, %cst_69 {dimension_numbers = #tpu.dot_dimension_numbers<[1], [1], [0], [0], [0, 0, 1, 0], [], []>} : vector<8x8xbf16>, vector<8x8xbf16>, vector<8x8xf32> -> vector<8x8xf32>
    %cst_70 = arith.constant dense<0xFF800000> : vector<8xf32>
    %89 = vector.multi_reduction <maximumf>, %88, %cst_70 [1] : vector<8x8xf32> to vector<8xf32>
    %90 = vector.shape_cast %89 : vector<8xf32> to vector<8x1xf32>
    %91 = vector.broadcast %90 : vector<8x1xf32> to vector<8x8xf32>
    %92 = arith.subf %88, %91 : vector<8x8xf32>
    %93 = math.exp %92 : vector<8x8xf32>
    %cst_71 = arith.constant dense<0.000000e+00> : vector<8xf32>
    %94 = vector.multi_reduction <add>, %93, %cst_71 [1] : vector<8x8xf32> to vector<8xf32>
    %95 = vector.shape_cast %94 : vector<8xf32> to vector<8x1xf32>
    %96 = tpu.reciprocal %95 {approx = true} : vector<8x1xf32> -> vector<8x1xf32>
    %97 = vector.broadcast %96 : vector<8x1xf32> to vector<8x8xf32>
    %98 = arith.mulf %93, %97 : vector<8x8xf32>
    %99 = arith.truncf %98 : vector<8x8xf32> to vector<8x8xbf16>
    %cst_72 = arith.constant dense<0.000000e+00> : vector<8x8xf32>
    %100 = tpu.matmul %99, %87, %cst_72 {dimension_numbers = #tpu.dot_dimension_numbers<[1], [0], [0], [1], [0, 0, 1, 1], [], []>} : vector<8x8xbf16>, vector<8x8xbf16>, vector<8x8xf32> -> vector<8x8xf32>
    %101 = vector.extract_strided_slice %68 {offsets = [0, 16], sizes = [8, 8], strides = [1, 1]} : vector<8x96xbf16> to vector<8x8xbf16>
    %102 = vector.extract_strided_slice %68 {offsets = [0, 48], sizes = [8, 8], strides = [1, 1]} : vector<8x96xbf16> to vector<8x8xbf16>
    %103 = vector.extract_strided_slice %68 {offsets = [0, 80], sizes = [8, 8], strides = [1, 1]} : vector<8x96xbf16> to vector<8x8xbf16>
    %cst_73 = arith.constant dense<0.000000e+00> : vector<8x8xf32>
    %104 = tpu.matmul %101, %102, %cst_73 {dimension_numbers = #tpu.dot_dimension_numbers<[1], [1], [0], [0], [0, 0, 1, 0], [], []>} : vector<8x8xbf16>, vector<8x8xbf16>, vector<8x8xf32> -> vector<8x8xf32>
    %cst_74 = arith.constant dense<0xFF800000> : vector<8xf32>
    %105 = vector.multi_reduction <maximumf>, %104, %cst_74 [1] : vector<8x8xf32> to vector<8xf32>
    %106 = vector.shape_cast %105 : vector<8xf32> to vector<8x1xf32>
    %107 = vector.broadcast %106 : vector<8x1xf32> to vector<8x8xf32>
    %108 = arith.subf %104, %107 : vector<8x8xf32>
    %109 = math.exp %108 : vector<8x8xf32>
    %cst_75 = arith.constant dense<0.000000e+00> : vector<8xf32>
    %110 = vector.multi_reduction <add>, %109, %cst_75 [1] : vector<8x8xf32> to vector<8xf32>
    %111 = vector.shape_cast %110 : vector<8xf32> to vector<8x1xf32>
    %112 = tpu.reciprocal %111 {approx = true} : vector<8x1xf32> -> vector<8x1xf32>
    %113 = vector.broadcast %112 : vector<8x1xf32> to vector<8x8xf32>
    %114 = arith.mulf %109, %113 : vector<8x8xf32>
    %115 = arith.truncf %114 : vector<8x8xf32> to vector<8x8xbf16>
    %cst_76 = arith.constant dense<0.000000e+00> : vector<8x8xf32>
    %116 = tpu.matmul %115, %103, %cst_76 {dimension_numbers = #tpu.dot_dimension_numbers<[1], [0], [0], [1], [0, 0, 1, 1], [], []>} : vector<8x8xbf16>, vector<8x8xbf16>, vector<8x8xf32> -> vector<8x8xf32>
    %117 = vector.extract_strided_slice %68 {offsets = [0, 24], sizes = [8, 8], strides = [1, 1]} : vector<8x96xbf16> to vector<8x8xbf16>
    %118 = vector.extract_strided_slice %68 {offsets = [0, 56], sizes = [8, 8], strides = [1, 1]} : vector<8x96xbf16> to vector<8x8xbf16>
    %119 = vector.extract_strided_slice %68 {offsets = [0, 88], sizes = [8, 8], strides = [1, 1]} : vector<8x96xbf16> to vector<8x8xbf16>
    %cst_77 = arith.constant dense<0.000000e+00> : vector<8x8xf32>
    %120 = tpu.matmul %117, %118, %cst_77 {dimension_numbers = #tpu.dot_dimension_numbers<[1], [1], [0], [0], [0, 0, 1, 0], [], []>} : vector<8x8xbf16>, vector<8x8xbf16>, vector<8x8xf32> -> vector<8x8xf32>
    %cst_78 = arith.constant dense<0xFF800000> : vector<8xf32>
    %121 = vector.multi_reduction <maximumf>, %120, %cst_78 [1] : vector<8x8xf32> to vector<8xf32>
    %122 = vector.shape_cast %121 : vector<8xf32> to vector<8x1xf32>
    %123 = vector.broadcast %122 : vector<8x1xf32> to vector<8x8xf32>
    %124 = arith.subf %120, %123 : vector<8x8xf32>
    %125 = math.exp %124 : vector<8x8xf32>
    %cst_79 = arith.constant dense<0.000000e+00> : vector<8xf32>
    %126 = vector.multi_reduction <add>, %125, %cst_79 [1] : vector<8x8xf32> to vector<8xf32>
    %127 = vector.shape_cast %126 : vector<8xf32> to vector<8x1xf32>
    %128 = tpu.reciprocal %127 {approx = true} : vector<8x1xf32> -> vector<8x1xf32>
    %129 = vector.broadcast %128 : vector<8x1xf32> to vector<8x8xf32>
    %130 = arith.mulf %125, %129 : vector<8x8xf32>
    %131 = arith.truncf %130 : vector<8x8xf32> to vector<8x8xbf16>
    %cst_80 = arith.constant dense<0.000000e+00> : vector<8x8xf32>
    %132 = tpu.matmul %131, %119, %cst_80 {dimension_numbers = #tpu.dot_dimension_numbers<[1], [0], [0], [1], [0, 0, 1, 1], [], []>} : vector<8x8xbf16>, vector<8x8xbf16>, vector<8x8xf32> -> vector<8x8xf32>
    %133 = tpu.concatenate %84, %100, %116, %132 in 1 : vector<8x8xf32>, vector<8x8xf32>, vector<8x8xf32>, vector<8x8xf32> -> vector<8x32xf32>
    %134 = arith.truncf %133 : vector<8x32xf32> to vector<8x32xbf16>
    %cst_81 = arith.constant dense<0.000000e+00> : vector<8x32xf32>
    %135 = tpu.matmul %134, %34, %cst_81 {dimension_numbers = #tpu.dot_dimension_numbers<[1], [0], [0], [1], [0, 0, 1, 1], [], []>} : vector<8x32xbf16>, vector<32x32xbf16>, vector<8x32xf32> -> vector<8x32xf32>
    %136 = arith.addf %29, %135 : vector<8x32xf32>
    %137 = vector.broadcast %35 : vector<1x32xf32> to vector<8x32xf32>
    %138 = arith.addf %136, %137 : vector<8x32xf32>
    %cst_82 = arith.constant dense<0.000000e+00> : vector<8xf32>
    %139 = vector.multi_reduction <add>, %138, %cst_82 [1] : vector<8x32xf32> to vector<8xf32>
    %140 = vector.shape_cast %139 : vector<8xf32> to vector<8x1xf32>
    %cst_83 = arith.constant 3.200000e+01 : f32
    %141 = vector.broadcast %cst_83 : f32 to vector<8x1xf32>
    %142 = arith.divf %140, %141 : vector<8x1xf32>
    %143 = vector.broadcast %142 : vector<8x1xf32> to vector<8x32xf32>
    %144 = arith.subf %138, %143 : vector<8x32xf32>
    %145 = arith.mulf %144, %144 : vector<8x32xf32>
    %cst_84 = arith.constant dense<0.000000e+00> : vector<8xf32>
    %146 = vector.multi_reduction <add>, %145, %cst_84 [1] : vector<8x32xf32> to vector<8xf32>
    %147 = vector.shape_cast %146 : vector<8xf32> to vector<8x1xf32>
    %cst_85 = arith.constant 3.200000e+01 : f32
    %148 = vector.broadcast %cst_85 : f32 to vector<8x1xf32>
    %149 = arith.divf %147, %148 : vector<8x1xf32>
    %150 = vector.broadcast %142 : vector<8x1xf32> to vector<8x32xf32>
    %151 = arith.subf %138, %150 : vector<8x32xf32>
    %cst_86 = arith.constant 9.99999974E-6 : f32
    %152 = vector.broadcast %cst_86 : f32 to vector<8x1xf32>
    %153 = arith.addf %149, %152 : vector<8x1xf32>
    %154 = math.rsqrt %153 : vector<8x1xf32>
    %155 = vector.broadcast %154 : vector<8x1xf32> to vector<8x32xf32>
    %156 = arith.mulf %151, %155 : vector<8x32xf32>
    %157 = vector.broadcast %36 : vector<1x32xf32> to vector<8x32xf32>
    %158 = arith.mulf %156, %157 : vector<8x32xf32>
    %159 = vector.broadcast %37 : vector<1x32xf32> to vector<8x32xf32>
    %160 = arith.addf %158, %159 : vector<8x32xf32>
    %161 = arith.truncf %160 : vector<8x32xf32> to vector<8x32xbf16>
    %cst_87 = arith.constant dense<0.000000e+00> : vector<8x128xf32>
    %162 = tpu.matmul %161, %38, %cst_87 {dimension_numbers = #tpu.dot_dimension_numbers<[1], [0], [0], [1], [0, 0, 1, 1], [], []>} : vector<8x32xbf16>, vector<32x128xbf16>, vector<8x128xf32> -> vector<8x128xf32>
    %163 = vector.broadcast %39 : vector<1x128xf32> to vector<8x128xf32>
    %164 = arith.addf %162, %163 : vector<8x128xf32>
    %cst_88 = arith.constant 0.000000e+00 : f32
    %165 = vector.broadcast %cst_88 : f32 to vector<8x128xf32>
    %166 = arith.maximumf %164, %165 : vector<8x128xf32>
    %167 = arith.truncf %166 : vector<8x128xf32> to vector<8x128xbf16>
    %cst_89 = arith.constant dense<0.000000e+00> : vector<8x32xf32>
    %168 = tpu.matmul %167, %40, %cst_89 {dimension_numbers = #tpu.dot_dimension_numbers<[1], [0], [0], [1], [0, 0, 1, 1], [], []>} : vector<8x128xbf16>, vector<128x32xbf16>, vector<8x32xf32> -> vector<8x32xf32>
    %169 = arith.addf %138, %168 : vector<8x32xf32>
    %170 = vector.broadcast %41 : vector<1x32xf32> to vector<8x32xf32>
    %171 = arith.addf %169, %170 : vector<8x32xf32>
    %172 = vector.extract_strided_slice %171 {offsets = [4, 0], sizes = [4, 32], strides = [1, 1]} : vector<8x32xf32> to vector<4x32xf32>
    %c0_90 = arith.constant 0 : index
    %c0_91 = arith.constant 0 : index
    %173 = vector.load %arg47[%c0_90, %c0_91] : memref<12x32xf32, #tpu.memory_space<vmem>>, vector<4x32xf32>
    tpu.vector_store %arg47[%c0_90, %c0_91], %172 {strides = array<i32>} : memref<12x32xf32, #tpu.memory_space<vmem>>, vector<4x32xf32>,
    %c0_92 = arith.constant 0 : index
    %c0_93 = arith.constant 0 : index
    %c0_94 = arith.constant 0 : index
    %174 = vector.load %arg2[%c0_92, %c0_93, %c0_94] : memref<1x8x32xf32, #tpu.memory_space<vmem>>, vector<1x8x32xf32>
    %175 = vector.shape_cast %174 : vector<1x8x32xf32> to vector<8x32xf32>
    %c4_95 = arith.constant 4 : index
    %c0_96 = arith.constant 0 : index
    %176 = vector.load %arg47[%c4_95, %c0_96] : memref<12x32xf32, #tpu.memory_space<vmem>>, vector<8x32xf32>
    tpu.vector_store %arg47[%c4_95, %c0_96], %175 {strides = array<i32>} : memref<12x32xf32, #tpu.memory_space<vmem>>, vector<8x32xf32>,
    %c0_97 = arith.constant 0 : index
    %c0_98 = arith.constant 0 : index
    %177 = vector.load %arg47[%c0_97, %c0_98] : memref<12x32xf32, #tpu.memory_space<vmem>>, vector<12x32xf32>
    %c0_99 = arith.constant 0 : index
    %c0_100 = arith.constant 0 : index
    %178 = vector.load %arg18[%c0_99, %c0_100] : memref<12x32xf32, #tpu.memory_space<vmem>>, vector<12x32xf32>
    %179 = arith.addf %177, %178 : vector<12x32xf32>
    %c0_101 = arith.constant 0 : index
    %c0_102 = arith.constant 0 : index
    %180 = vector.load %arg19[%c0_101, %c0_102] : memref<1x32xf32, #tpu.memory_space<vmem>>, vector<1x32xf32>
    %c0_103 = arith.constant 0 : index
    %c0_104 = arith.constant 0 : index
    %181 = vector.load %arg20[%c0_103, %c0_104] : memref<1x32xf32, #tpu.memory_space<vmem>>, vector<1x32xf32>
    %c0_105 = arith.constant 0 : index
    %c0_106 = arith.constant 0 : index
    %182 = vector.load %arg21[%c0_105, %c0_106] : memref<32x96xbf16, #tpu.memory_space<vmem>>, vector<32x96xbf16>
    %c0_107 = arith.constant 0 : index
    %c0_108 = arith.constant 0 : index
    %183 = vector.load %arg22[%c0_107, %c0_108] : memref<1x96xf32, #tpu.memory_space<vmem>>, vector<1x96xf32>
    %c0_109 = arith.constant 0 : index
    %c0_110 = arith.constant 0 : index
    %184 = vector.load %arg23[%c0_109, %c0_110] : memref<32x32xbf16, #tpu.memory_space<vmem>>, vector<32x32xbf16>
    %c0_111 = arith.constant 0 : index
    %c0_112 = arith.constant 0 : index
    %185 = vector.load %arg24[%c0_111, %c0_112] : memref<1x32xf32, #tpu.memory_space<vmem>>, vector<1x32xf32>
    %c0_113 = arith.constant 0 : index
    %c0_114 = arith.constant 0 : index
    %186 = vector.load %arg25[%c0_113, %c0_114] : memref<1x32xf32, #tpu.memory_space<vmem>>, vector<1x32xf32>
    %c0_115 = arith.constant 0 : index
    %c0_116 = arith.constant 0 : index
    %187 = vector.load %arg26[%c0_115, %c0_116] : memref<1x32xf32, #tpu.memory_space<vmem>>, vector<1x32xf32>
    %c0_117 = arith.constant 0 : index
    %c0_118 = arith.constant 0 : index
    %188 = vector.load %arg27[%c0_117, %c0_118] : memref<32x128xbf16, #tpu.memory_space<vmem>>, vector<32x128xbf16>
    %c0_119 = arith.constant 0 : index
    %c0_120 = arith.constant 0 : index
    %189 = vector.load %arg28[%c0_119, %c0_120] : memref<1x128xf32, #tpu.memory_space<vmem>>, vector<1x128xf32>
    %c0_121 = arith.constant 0 : index
    %c0_122 = arith.constant 0 : index
    %190 = vector.load %arg29[%c0_121, %c0_122] : memref<128x32xbf16, #tpu.memory_space<vmem>>, vector<128x32xbf16>
    %c0_123 = arith.constant 0 : index
    %c0_124 = arith.constant 0 : index
    %191 = vector.load %arg30[%c0_123, %c0_124] : memref<1x32xf32, #tpu.memory_space<vmem>>, vector<1x32xf32>
    %cst_125 = arith.constant dense<0.000000e+00> : vector<12xf32>
    %192 = vector.multi_reduction <add>, %179, %cst_125 [1] : vector<12x32xf32> to vector<12xf32>
    %193 = vector.shape_cast %192 : vector<12xf32> to vector<12x1xf32>
    %cst_126 = arith.constant 3.200000e+01 : f32
    %194 = vector.broadcast %cst_126 : f32 to vector<12x1xf32>
    %195 = arith.divf %193, %194 : vector<12x1xf32>
    %196 = vector.broadcast %195 : vector<12x1xf32> to vector<12x32xf32>
    %197 = arith.subf %179, %196 : vector<12x32xf32>
    %198 = arith.mulf %197, %197 : vector<12x32xf32>
    %cst_127 = arith.constant dense<0.000000e+00> : vector<12xf32>
    %199 = vector.multi_reduction <add>, %198, %cst_127 [1] : vector<12x32xf32> to vector<12xf32>
    %200 = vector.shape_cast %199 : vector<12xf32> to vector<12x1xf32>
    %cst_128 = arith.constant 3.200000e+01 : f32
    %201 = vector.broadcast %cst_128 : f32 to vector<12x1xf32>
    %202 = arith.divf %200, %201 : vector<12x1xf32>
    %203 = vector.broadcast %195 : vector<12x1xf32> to vector<12x32xf32>
    %204 = arith.subf %179, %203 : vector<12x32xf32>
    %cst_129 = arith.constant 9.99999974E-6 : f32
    %205 = vector.broadcast %cst_129 : f32 to vector<12x1xf32>
    %206 = arith.addf %202, %205 : vector<12x1xf32>
    %207 = math.rsqrt %206 : vector<12x1xf32>
    %208 = vector.broadcast %207 : vector<12x1xf32> to vector<12x32xf32>
    %209 = arith.mulf %204, %208 : vector<12x32xf32>
    %210 = vector.broadcast %180 : vector<1x32xf32> to vector<12x32xf32>
    %211 = arith.mulf %209, %210 : vector<12x32xf32>
    %212 = vector.broadcast %181 : vector<1x32xf32> to vector<12x32xf32>
    %213 = arith.addf %211, %212 : vector<12x32xf32>
    %214 = arith.truncf %213 : vector<12x32xf32> to vector<12x32xbf16>
    %cst_130 = arith.constant dense<0.000000e+00> : vector<12x96xf32>
    %215 = tpu.matmul %214, %182, %cst_130 {dimension_numbers = #tpu.dot_dimension_numbers<[1], [0], [0], [1], [0, 0, 1, 1], [], []>} : vector<12x32xbf16>, vector<32x96xbf16>, vector<12x96xf32> -> vector<12x96xf32>
    %216 = vector.broadcast %183 : vector<1x96xf32> to vector<12x96xf32>
    %217 = arith.addf %215, %216 : vector<12x96xf32>
    %218 = arith.truncf %217 : vector<12x96xf32> to vector<12x96xbf16>
    %219 = tpu.iota {dimensions = array<i32: 0>} : vector<12x12xi32>
    %220 = tpu.iota {dimensions = array<i32: 1>} : vector<12x12xi32>
    %221 = arith.cmpi sge, %219, %220 : vector<12x12xi32>
    %222 = vector.extract_strided_slice %218 {offsets = [0, 0], sizes = [12, 8], strides = [1, 1]} : vector<12x96xbf16> to vector<12x8xbf16>
    %223 = vector.extract_strided_slice %218 {offsets = [0, 32], sizes = [12, 8], strides = [1, 1]} : vector<12x96xbf16> to vector<12x8xbf16>
    %224 = vector.extract_strided_slice %218 {offsets = [0, 64], sizes = [12, 8], strides = [1, 1]} : vector<12x96xbf16> to vector<12x8xbf16>
    %cst_131 = arith.constant dense<0.000000e+00> : vector<12x12xf32>
    %225 = tpu.matmul %222, %223, %cst_131 {dimension_numbers = #tpu.dot_dimension_numbers<[1], [1], [0], [0], [0, 0, 1, 0], [], []>} : vector<12x8xbf16>, vector<12x8xbf16>, vector<12x12xf32> -> vector<12x12xf32>
    %cst_132 = arith.constant -1.000000e+30 : f32
    %226 = vector.broadcast %cst_132 : f32 to vector<12x12xf32>
    %227 = arith.select %221, %225, %226 : vector<12x12xi1>, vector<12x12xf32>
    %cst_133 = arith.constant dense<0xFF800000> : vector<12xf32>
    %228 = vector.multi_reduction <maximumf>, %227, %cst_133 [1] : vector<12x12xf32> to vector<12xf32>
    %229 = vector.shape_cast %228 : vector<12xf32> to vector<12x1xf32>
    %230 = vector.broadcast %229 : vector<12x1xf32> to vector<12x12xf32>
    %231 = arith.subf %227, %230 : vector<12x12xf32>
    %232 = math.exp %231 : vector<12x12xf32>
    %cst_134 = arith.constant dense<0.000000e+00> : vector<12xf32>
    %233 = vector.multi_reduction <add>, %232, %cst_134 [1] : vector<12x12xf32> to vector<12xf32>
    %234 = vector.shape_cast %233 : vector<12xf32> to vector<12x1xf32>
    %235 = tpu.reciprocal %234 {approx = true} : vector<12x1xf32> -> vector<12x1xf32>
    %236 = vector.broadcast %235 : vector<12x1xf32> to vector<12x12xf32>
    %237 = arith.mulf %232, %236 : vector<12x12xf32>
    %238 = arith.truncf %237 : vector<12x12xf32> to vector<12x12xbf16>
    %cst_135 = arith.constant dense<0.000000e+00> : vector<12x8xf32>
    %239 = tpu.matmul %238, %224, %cst_135 {dimension_numbers = #tpu.dot_dimension_numbers<[1], [0], [0], [1], [0, 0, 1, 1], [], []>} : vector<12x12xbf16>, vector<12x8xbf16>, vector<12x8xf32> -> vector<12x8xf32>
    %240 = vector.extract_strided_slice %218 {offsets = [0, 8], sizes = [12, 8], strides = [1, 1]} : vector<12x96xbf16> to vector<12x8xbf16>
    %241 = vector.extract_strided_slice %218 {offsets = [0, 40], sizes = [12, 8], strides = [1, 1]} : vector<12x96xbf16> to vector<12x8xbf16>
    %242 = vector.extract_strided_slice %218 {offsets = [0, 72], sizes = [12, 8], strides = [1, 1]} : vector<12x96xbf16> to vector<12x8xbf16>
    %cst_136 = arith.constant dense<0.000000e+00> : vector<12x12xf32>
    %243 = tpu.matmul %240, %241, %cst_136 {dimension_numbers = #tpu.dot_dimension_numbers<[1], [1], [0], [0], [0, 0, 1, 0], [], []>} : vector<12x8xbf16>, vector<12x8xbf16>, vector<12x12xf32> -> vector<12x12xf32>
    %cst_137 = arith.constant -1.000000e+30 : f32
    %244 = vector.broadcast %cst_137 : f32 to vector<12x12xf32>
    %245 = arith.select %221, %243, %244 : vector<12x12xi1>, vector<12x12xf32>
    %cst_138 = arith.constant dense<0xFF800000> : vector<12xf32>
    %246 = vector.multi_reduction <maximumf>, %245, %cst_138 [1] : vector<12x12xf32> to vector<12xf32>
    %247 = vector.shape_cast %246 : vector<12xf32> to vector<12x1xf32>
    %248 = vector.broadcast %247 : vector<12x1xf32> to vector<12x12xf32>
    %249 = arith.subf %245, %248 : vector<12x12xf32>
    %250 = math.exp %249 : vector<12x12xf32>
    %cst_139 = arith.constant dense<0.000000e+00> : vector<12xf32>
    %251 = vector.multi_reduction <add>, %250, %cst_139 [1] : vector<12x12xf32> to vector<12xf32>
    %252 = vector.shape_cast %251 : vector<12xf32> to vector<12x1xf32>
    %253 = tpu.reciprocal %252 {approx = true} : vector<12x1xf32> -> vector<12x1xf32>
    %254 = vector.broadcast %253 : vector<12x1xf32> to vector<12x12xf32>
    %255 = arith.mulf %250, %254 : vector<12x12xf32>
    %256 = arith.truncf %255 : vector<12x12xf32> to vector<12x12xbf16>
    %cst_140 = arith.constant dense<0.000000e+00> : vector<12x8xf32>
    %257 = tpu.matmul %256, %242, %cst_140 {dimension_numbers = #tpu.dot_dimension_numbers<[1], [0], [0], [1], [0, 0, 1, 1], [], []>} : vector<12x12xbf16>, vector<12x8xbf16>, vector<12x8xf32> -> vector<12x8xf32>
    %258 = vector.extract_strided_slice %218 {offsets = [0, 16], sizes = [12, 8], strides = [1, 1]} : vector<12x96xbf16> to vector<12x8xbf16>
    %259 = vector.extract_strided_slice %218 {offsets = [0, 48], sizes = [12, 8], strides = [1, 1]} : vector<12x96xbf16> to vector<12x8xbf16>
    %260 = vector.extract_strided_slice %218 {offsets = [0, 80], sizes = [12, 8], strides = [1, 1]} : vector<12x96xbf16> to vector<12x8xbf16>
    %cst_141 = arith.constant dense<0.000000e+00> : vector<12x12xf32>
    %261 = tpu.matmul %258, %259, %cst_141 {dimension_numbers = #tpu.dot_dimension_numbers<[1], [1], [0], [0], [0, 0, 1, 0], [], []>} : vector<12x8xbf16>, vector<12x8xbf16>, vector<12x12xf32> -> vector<12x12xf32>
    %cst_142 = arith.constant -1.000000e+30 : f32
    %262 = vector.broadcast %cst_142 : f32 to vector<12x12xf32>
    %263 = arith.select %221, %261, %262 : vector<12x12xi1>, vector<12x12xf32>
    %cst_143 = arith.constant dense<0xFF800000> : vector<12xf32>
    %264 = vector.multi_reduction <maximumf>, %263, %cst_143 [1] : vector<12x12xf32> to vector<12xf32>
    %265 = vector.shape_cast %264 : vector<12xf32> to vector<12x1xf32>
    %266 = vector.broadcast %265 : vector<12x1xf32> to vector<12x12xf32>
    %267 = arith.subf %263, %266 : vector<12x12xf32>
    %268 = math.exp %267 : vector<12x12xf32>
    %cst_144 = arith.constant dense<0.000000e+00> : vector<12xf32>
    %269 = vector.multi_reduction <add>, %268, %cst_144 [1] : vector<12x12xf32> to vector<12xf32>
    %270 = vector.shape_cast %269 : vector<12xf32> to vector<12x1xf32>
    %271 = tpu.reciprocal %270 {approx = true} : vector<12x1xf32> -> vector<12x1xf32>
    %272 = vector.broadcast %271 : vector<12x1xf32> to vector<12x12xf32>
    %273 = arith.mulf %268, %272 : vector<12x12xf32>
    %274 = arith.truncf %273 : vector<12x12xf32> to vector<12x12xbf16>
    %cst_145 = arith.constant dense<0.000000e+00> : vector<12x8xf32>
    %275 = tpu.matmul %274, %260, %cst_145 {dimension_numbers = #tpu.dot_dimension_numbers<[1], [0], [0], [1], [0, 0, 1, 1], [], []>} : vector<12x12xbf16>, vector<12x8xbf16>, vector<12x8xf32> -> vector<12x8xf32>
    %276 = vector.extract_strided_slice %218 {offsets = [0, 24], sizes = [12, 8], strides = [1, 1]} : vector<12x96xbf16> to vector<12x8xbf16>
    %277 = vector.extract_strided_slice %218 {offsets = [0, 56], sizes = [12, 8], strides = [1, 1]} : vector<12x96xbf16> to vector<12x8xbf16>
    %278 = vector.extract_strided_slice %218 {offsets = [0, 88], sizes = [12, 8], strides = [1, 1]} : vector<12x96xbf16> to vector<12x8xbf16>
    %cst_146 = arith.constant dense<0.000000e+00> : vector<12x12xf32>
    %279 = tpu.matmul %276, %277, %cst_146 {dimension_numbers = #tpu.dot_dimension_numbers<[1], [1], [0], [0], [0, 0, 1, 0], [], []>} : vector<12x8xbf16>, vector<12x8xbf16>, vector<12x12xf32> -> vector<12x12xf32>
    %cst_147 = arith.constant -1.000000e+30 : f32
    %280 = vector.broadcast %cst_147 : f32 to vector<12x12xf32>
    %281 = arith.select %221, %279, %280 : vector<12x12xi1>, vector<12x12xf32>
    %cst_148 = arith.constant dense<0xFF800000> : vector<12xf32>
    %282 = vector.multi_reduction <maximumf>, %281, %cst_148 [1] : vector<12x12xf32> to vector<12xf32>
    %283 = vector.shape_cast %282 : vector<12xf32> to vector<12x1xf32>
    %284 = vector.broadcast %283 : vector<12x1xf32> to vector<12x12xf32>
    %285 = arith.subf %281, %284 : vector<12x12xf32>
    %286 = math.exp %285 : vector<12x12xf32>
    %cst_149 = arith.constant dense<0.000000e+00> : vector<12xf32>
    %287 = vector.multi_reduction <add>, %286, %cst_149 [1] : vector<12x12xf32> to vector<12xf32>
    %288 = vector.shape_cast %287 : vector<12xf32> to vector<12x1xf32>
    %289 = tpu.reciprocal %288 {approx = true} : vector<12x1xf32> -> vector<12x1xf32>
    %290 = vector.broadcast %289 : vector<12x1xf32> to vector<12x12xf32>
    %291 = arith.mulf %286, %290 : vector<12x12xf32>
    %292 = arith.truncf %291 : vector<12x12xf32> to vector<12x12xbf16>
    %cst_150 = arith.constant dense<0.000000e+00> : vector<12x8xf32>
    %293 = tpu.matmul %292, %278, %cst_150 {dimension_numbers = #tpu.dot_dimension_numbers<[1], [0], [0], [1], [0, 0, 1, 1], [], []>} : vector<12x12xbf16>, vector<12x8xbf16>, vector<12x8xf32> -> vector<12x8xf32>
    %294 = tpu.concatenate %239, %257, %275, %293 in 1 : vector<12x8xf32>, vector<12x8xf32>, vector<12x8xf32>, vector<12x8xf32> -> vector<12x32xf32>
    %295 = arith.truncf %294 : vector<12x32xf32> to vector<12x32xbf16>
    %cst_151 = arith.constant dense<0.000000e+00> : vector<12x32xf32>
    %296 = tpu.matmul %295, %184, %cst_151 {dimension_numbers = #tpu.dot_dimension_numbers<[1], [0], [0], [1], [0, 0, 1, 1], [], []>} : vector<12x32xbf16>, vector<32x32xbf16>, vector<12x32xf32> -> vector<12x32xf32>
    %297 = arith.addf %179, %296 : vector<12x32xf32>
    %298 = vector.broadcast %185 : vector<1x32xf32> to vector<12x32xf32>
    %299 = arith.addf %297, %298 : vector<12x32xf32>
    %cst_152 = arith.constant dense<0.000000e+00> : vector<12xf32>
    %300 = vector.multi_reduction <add>, %299, %cst_152 [1] : vector<12x32xf32> to vector<12xf32>
    %301 = vector.shape_cast %300 : vector<12xf32> to vector<12x1xf32>
    %cst_153 = arith.constant 3.200000e+01 : f32
    %302 = vector.broadcast %cst_153 : f32 to vector<12x1xf32>
    %303 = arith.divf %301, %302 : vector<12x1xf32>
    %304 = vector.broadcast %303 : vector<12x1xf32> to vector<12x32xf32>
    %305 = arith.subf %299, %304 : vector<12x32xf32>
    %306 = arith.mulf %305, %305 : vector<12x32xf32>
    %cst_154 = arith.constant dense<0.000000e+00> : vector<12xf32>
    %307 = vector.multi_reduction <add>, %306, %cst_154 [1] : vector<12x32xf32> to vector<12xf32>
    %308 = vector.shape_cast %307 : vector<12xf32> to vector<12x1xf32>
    %cst_155 = arith.constant 3.200000e+01 : f32
    %309 = vector.broadcast %cst_155 : f32 to vector<12x1xf32>
    %310 = arith.divf %308, %309 : vector<12x1xf32>
    %311 = vector.broadcast %303 : vector<12x1xf32> to vector<12x32xf32>
    %312 = arith.subf %299, %311 : vector<12x32xf32>
    %cst_156 = arith.constant 9.99999974E-6 : f32
    %313 = vector.broadcast %cst_156 : f32 to vector<12x1xf32>
    %314 = arith.addf %310, %313 : vector<12x1xf32>
    %315 = math.rsqrt %314 : vector<12x1xf32>
    %316 = vector.broadcast %315 : vector<12x1xf32> to vector<12x32xf32>
    %317 = arith.mulf %312, %316 : vector<12x32xf32>
    %318 = vector.broadcast %186 : vector<1x32xf32> to vector<12x32xf32>
    %319 = arith.mulf %317, %318 : vector<12x32xf32>
    %320 = vector.broadcast %187 : vector<1x32xf32> to vector<12x32xf32>
    %321 = arith.addf %319, %320 : vector<12x32xf32>
    %322 = arith.truncf %321 : vector<12x32xf32> to vector<12x32xbf16>
    %cst_157 = arith.constant dense<0.000000e+00> : vector<12x128xf32>
    %323 = tpu.matmul %322, %188, %cst_157 {dimension_numbers = #tpu.dot_dimension_numbers<[1], [0], [0], [1], [0, 0, 1, 1], [], []>} : vector<12x32xbf16>, vector<32x128xbf16>, vector<12x128xf32> -> vector<12x128xf32>
    %324 = vector.broadcast %189 : vector<1x128xf32> to vector<12x128xf32>
    %325 = arith.addf %323, %324 : vector<12x128xf32>
    %cst_158 = arith.constant 5.000000e-01 : f32
    %326 = vector.broadcast %cst_158 : f32 to vector<12x128xf32>
    %327 = arith.mulf %326, %325 : vector<12x128xf32>
    %cst_159 = arith.constant 4.471500e-02 : f32
    %328 = vector.broadcast %cst_159 : f32 to vector<12x128xf32>
    %329 = arith.mulf %328, %325 : vector<12x128xf32>
    %330 = arith.mulf %329, %325 : vector<12x128xf32>
    %331 = arith.mulf %330, %325 : vector<12x128xf32>
    %332 = arith.addf %325, %331 : vector<12x128xf32>
    %cst_160 = arith.constant 0.797884583 : f32
    %333 = vector.broadcast %cst_160 : f32 to vector<12x128xf32>
    %334 = arith.mulf %333, %332 : vector<12x128xf32>
    %335 = math.tanh %334 : vector<12x128xf32>
    %cst_161 = arith.constant 1.000000e+00 : f32
    %336 = vector.broadcast %cst_161 : f32 to vector<12x128xf32>
    %337 = arith.addf %336, %335 : vector<12x128xf32>
    %338 = arith.mulf %327, %337 : vector<12x128xf32>
    %339 = arith.truncf %338 : vector<12x128xf32> to vector<12x128xbf16>
    %cst_162 = arith.constant dense<0.000000e+00> : vector<12x32xf32>
    %340 = tpu.matmul %339, %190, %cst_162 {dimension_numbers = #tpu.dot_dimension_numbers<[1], [0], [0], [1], [0, 0, 1, 1], [], []>} : vector<12x128xbf16>, vector<128x32xbf16>, vector<12x32xf32> -> vector<12x32xf32>
    %341 = arith.addf %299, %340 : vector<12x32xf32>
    %342 = vector.broadcast %191 : vector<1x32xf32> to vector<12x32xf32>
    %343 = arith.addf %341, %342 : vector<12x32xf32>
    %c0_163 = arith.constant 0 : index
    %c0_164 = arith.constant 0 : index
    %344 = vector.load %arg31[%c0_163, %c0_164] : memref<1x32xf32, #tpu.memory_space<vmem>>, vector<1x32xf32>
    %c0_165 = arith.constant 0 : index
    %c0_166 = arith.constant 0 : index
    %345 = vector.load %arg32[%c0_165, %c0_166] : memref<1x32xf32, #tpu.memory_space<vmem>>, vector<1x32xf32>
    %c0_167 = arith.constant 0 : index
    %c0_168 = arith.constant 0 : index
    %346 = vector.load %arg33[%c0_167, %c0_168] : memref<32x96xbf16, #tpu.memory_space<vmem>>, vector<32x96xbf16>
    %c0_169 = arith.constant 0 : index
    %c0_170 = arith.constant 0 : index
    %347 = vector.load %arg34[%c0_169, %c0_170] : memref<1x96xf32, #tpu.memory_space<vmem>>, vector<1x96xf32>
    %c0_171 = arith.constant 0 : index
    %c0_172 = arith.constant 0 : index
    %348 = vector.load %arg35[%c0_171, %c0_172] : memref<32x32xbf16, #tpu.memory_space<vmem>>, vector<32x32xbf16>
    %c0_173 = arith.constant 0 : index
    %c0_174 = arith.constant 0 : index
    %349 = vector.load %arg36[%c0_173, %c0_174] : memref<1x32xf32, #tpu.memory_space<vmem>>, vector<1x32xf32>
    %c0_175 = arith.constant 0 : index
    %c0_176 = arith.constant 0 : index
    %350 = vector.load %arg37[%c0_175, %c0_176] : memref<1x32xf32, #tpu.memory_space<vmem>>, vector<1x32xf32>
    %c0_177 = arith.constant 0 : index
    %c0_178 = arith.constant 0 : index
    %351 = vector.load %arg38[%c0_177, %c0_178] : memref<1x32xf32, #tpu.memory_space<vmem>>, vector<1x32xf32>
    %c0_179 = arith.constant 0 : index
    %c0_180 = arith.constant 0 : index
    %352 = vector.load %arg39[%c0_179, %c0_180] : memref<32x128xbf16, #tpu.memory_space<vmem>>, vector<32x128xbf16>
    %c0_181 = arith.constant 0 : index
    %c0_182 = arith.constant 0 : index
    %353 = vector.load %arg40[%c0_181, %c0_182] : memref<1x128xf32, #tpu.memory_space<vmem>>, vector<1x128xf32>
    %c0_183 = arith.constant 0 : index
    %c0_184 = arith.constant 0 : index
    %354 = vector.load %arg41[%c0_183, %c0_184] : memref<128x32xbf16, #tpu.memory_space<vmem>>, vector<128x32xbf16>
    %c0_185 = arith.constant 0 : index
    %c0_186 = arith.constant 0 : index
    %355 = vector.load %arg42[%c0_185, %c0_186] : memref<1x32xf32, #tpu.memory_space<vmem>>, vector<1x32xf32>
    %cst_187 = arith.constant dense<0.000000e+00> : vector<12xf32>
    %356 = vector.multi_reduction <add>, %343, %cst_187 [1] : vector<12x32xf32> to vector<12xf32>
    %357 = vector.shape_cast %356 : vector<12xf32> to vector<12x1xf32>
    %cst_188 = arith.constant 3.200000e+01 : f32
    %358 = vector.broadcast %cst_188 : f32 to vector<12x1xf32>
    %359 = arith.divf %357, %358 : vector<12x1xf32>
    %360 = vector.broadcast %359 : vector<12x1xf32> to vector<12x32xf32>
    %361 = arith.subf %343, %360 : vector<12x32xf32>
    %362 = arith.mulf %361, %361 : vector<12x32xf32>
    %cst_189 = arith.constant dense<0.000000e+00> : vector<12xf32>
    %363 = vector.multi_reduction <add>, %362, %cst_189 [1] : vector<12x32xf32> to vector<12xf32>
    %364 = vector.shape_cast %363 : vector<12xf32> to vector<12x1xf32>
    %cst_190 = arith.constant 3.200000e+01 : f32
    %365 = vector.broadcast %cst_190 : f32 to vector<12x1xf32>
    %366 = arith.divf %364, %365 : vector<12x1xf32>
    %367 = vector.broadcast %359 : vector<12x1xf32> to vector<12x32xf32>
    %368 = arith.subf %343, %367 : vector<12x32xf32>
    %cst_191 = arith.constant 9.99999974E-6 : f32
    %369 = vector.broadcast %cst_191 : f32 to vector<12x1xf32>
    %370 = arith.addf %366, %369 : vector<12x1xf32>
    %371 = math.rsqrt %370 : vector<12x1xf32>
    %372 = vector.broadcast %371 : vector<12x1xf32> to vector<12x32xf32>
    %373 = arith.mulf %368, %372 : vector<12x32xf32>
    %374 = vector.broadcast %344 : vector<1x32xf32> to vector<12x32xf32>
    %375 = arith.mulf %373, %374 : vector<12x32xf32>
    %376 = vector.broadcast %345 : vector<1x32xf32> to vector<12x32xf32>
    %377 = arith.addf %375, %376 : vector<12x32xf32>
    %378 = arith.truncf %377 : vector<12x32xf32> to vector<12x32xbf16>
    %cst_192 = arith.constant dense<0.000000e+00> : vector<12x96xf32>
    %379 = tpu.matmul %378, %346, %cst_192 {dimension_numbers = #tpu.dot_dimension_numbers<[1], [0], [0], [1], [0, 0, 1, 1], [], []>} : vector<12x32xbf16>, vector<32x96xbf16>, vector<12x96xf32> -> vector<12x96xf32>
    %380 = vector.broadcast %347 : vector<1x96xf32> to vector<12x96xf32>
    %381 = arith.addf %379, %380 : vector<12x96xf32>
    %382 = arith.truncf %381 : vector<12x96xf32> to vector<12x96xbf16>
    %383 = tpu.iota {dimensions = array<i32: 0>} : vector<12x12xi32>
    %384 = tpu.iota {dimensions = array<i32: 1>} : vector<12x12xi32>
    %385 = arith.cmpi sge, %383, %384 : vector<12x12xi32>
    %386 = vector.extract_strided_slice %382 {offsets = [0, 0], sizes = [12, 8], strides = [1, 1]} : vector<12x96xbf16> to vector<12x8xbf16>
    %387 = vector.extract_strided_slice %382 {offsets = [0, 32], sizes = [12, 8], strides = [1, 1]} : vector<12x96xbf16> to vector<12x8xbf16>
    %388 = vector.extract_strided_slice %382 {offsets = [0, 64], sizes = [12, 8], strides = [1, 1]} : vector<12x96xbf16> to vector<12x8xbf16>
    %cst_193 = arith.constant dense<0.000000e+00> : vector<12x12xf32>
    %389 = tpu.matmul %386, %387, %cst_193 {dimension_numbers = #tpu.dot_dimension_numbers<[1], [1], [0], [0], [0, 0, 1, 0], [], []>} : vector<12x8xbf16>, vector<12x8xbf16>, vector<12x12xf32> -> vector<12x12xf32>
    %cst_194 = arith.constant -1.000000e+30 : f32
    %390 = vector.broadcast %cst_194 : f32 to vector<12x12xf32>
    %391 = arith.select %385, %389, %390 : vector<12x12xi1>, vector<12x12xf32>
    %cst_195 = arith.constant dense<0xFF800000> : vector<12xf32>
    %392 = vector.multi_reduction <maximumf>, %391, %cst_195 [1] : vector<12x12xf32> to vector<12xf32>
    %393 = vector.shape_cast %392 : vector<12xf32> to vector<12x1xf32>
    %394 = vector.broadcast %393 : vector<12x1xf32> to vector<12x12xf32>
    %395 = arith.subf %391, %394 : vector<12x12xf32>
    %396 = math.exp %395 : vector<12x12xf32>
    %cst_196 = arith.constant dense<0.000000e+00> : vector<12xf32>
    %397 = vector.multi_reduction <add>, %396, %cst_196 [1] : vector<12x12xf32> to vector<12xf32>
    %398 = vector.shape_cast %397 : vector<12xf32> to vector<12x1xf32>
    %399 = tpu.reciprocal %398 {approx = true} : vector<12x1xf32> -> vector<12x1xf32>
    %400 = vector.broadcast %399 : vector<12x1xf32> to vector<12x12xf32>
    %401 = arith.mulf %396, %400 : vector<12x12xf32>
    %402 = arith.truncf %401 : vector<12x12xf32> to vector<12x12xbf16>
    %cst_197 = arith.constant dense<0.000000e+00> : vector<12x8xf32>
    %403 = tpu.matmul %402, %388, %cst_197 {dimension_numbers = #tpu.dot_dimension_numbers<[1], [0], [0], [1], [0, 0, 1, 1], [], []>} : vector<12x12xbf16>, vector<12x8xbf16>, vector<12x8xf32> -> vector<12x8xf32>
    %404 = vector.extract_strided_slice %382 {offsets = [0, 8], sizes = [12, 8], strides = [1, 1]} : vector<12x96xbf16> to vector<12x8xbf16>
    %405 = vector.extract_strided_slice %382 {offsets = [0, 40], sizes = [12, 8], strides = [1, 1]} : vector<12x96xbf16> to vector<12x8xbf16>
    %406 = vector.extract_strided_slice %382 {offsets = [0, 72], sizes = [12, 8], strides = [1, 1]} : vector<12x96xbf16> to vector<12x8xbf16>
    %cst_198 = arith.constant dense<0.000000e+00> : vector<12x12xf32>
    %407 = tpu.matmul %404, %405, %cst_198 {dimension_numbers = #tpu.dot_dimension_numbers<[1], [1], [0], [0], [0, 0, 1, 0], [], []>} : vector<12x8xbf16>, vector<12x8xbf16>, vector<12x12xf32> -> vector<12x12xf32>
    %cst_199 = arith.constant -1.000000e+30 : f32
    %408 = vector.broadcast %cst_199 : f32 to vector<12x12xf32>
    %409 = arith.select %385, %407, %408 : vector<12x12xi1>, vector<12x12xf32>
    %cst_200 = arith.constant dense<0xFF800000> : vector<12xf32>
    %410 = vector.multi_reduction <maximumf>, %409, %cst_200 [1] : vector<12x12xf32> to vector<12xf32>
    %411 = vector.shape_cast %410 : vector<12xf32> to vector<12x1xf32>
    %412 = vector.broadcast %411 : vector<12x1xf32> to vector<12x12xf32>
    %413 = arith.subf %409, %412 : vector<12x12xf32>
    %414 = math.exp %413 : vector<12x12xf32>
    %cst_201 = arith.constant dense<0.000000e+00> : vector<12xf32>
    %415 = vector.multi_reduction <add>, %414, %cst_201 [1] : vector<12x12xf32> to vector<12xf32>
    %416 = vector.shape_cast %415 : vector<12xf32> to vector<12x1xf32>
    %417 = tpu.reciprocal %416 {approx = true} : vector<12x1xf32> -> vector<12x1xf32>
    %418 = vector.broadcast %417 : vector<12x1xf32> to vector<12x12xf32>
    %419 = arith.mulf %414, %418 : vector<12x12xf32>
    %420 = arith.truncf %419 : vector<12x12xf32> to vector<12x12xbf16>
    %cst_202 = arith.constant dense<0.000000e+00> : vector<12x8xf32>
    %421 = tpu.matmul %420, %406, %cst_202 {dimension_numbers = #tpu.dot_dimension_numbers<[1], [0], [0], [1], [0, 0, 1, 1], [], []>} : vector<12x12xbf16>, vector<12x8xbf16>, vector<12x8xf32> -> vector<12x8xf32>
    %422 = vector.extract_strided_slice %382 {offsets = [0, 16], sizes = [12, 8], strides = [1, 1]} : vector<12x96xbf16> to vector<12x8xbf16>
    %423 = vector.extract_strided_slice %382 {offsets = [0, 48], sizes = [12, 8], strides = [1, 1]} : vector<12x96xbf16> to vector<12x8xbf16>
    %424 = vector.extract_strided_slice %382 {offsets = [0, 80], sizes = [12, 8], strides = [1, 1]} : vector<12x96xbf16> to vector<12x8xbf16>
    %cst_203 = arith.constant dense<0.000000e+00> : vector<12x12xf32>
    %425 = tpu.matmul %422, %423, %cst_203 {dimension_numbers = #tpu.dot_dimension_numbers<[1], [1], [0], [0], [0, 0, 1, 0], [], []>} : vector<12x8xbf16>, vector<12x8xbf16>, vector<12x12xf32> -> vector<12x12xf32>
    %cst_204 = arith.constant -1.000000e+30 : f32
    %426 = vector.broadcast %cst_204 : f32 to vector<12x12xf32>
    %427 = arith.select %385, %425, %426 : vector<12x12xi1>, vector<12x12xf32>
    %cst_205 = arith.constant dense<0xFF800000> : vector<12xf32>
    %428 = vector.multi_reduction <maximumf>, %427, %cst_205 [1] : vector<12x12xf32> to vector<12xf32>
    %429 = vector.shape_cast %428 : vector<12xf32> to vector<12x1xf32>
    %430 = vector.broadcast %429 : vector<12x1xf32> to vector<12x12xf32>
    %431 = arith.subf %427, %430 : vector<12x12xf32>
    %432 = math.exp %431 : vector<12x12xf32>
    %cst_206 = arith.constant dense<0.000000e+00> : vector<12xf32>
    %433 = vector.multi_reduction <add>, %432, %cst_206 [1] : vector<12x12xf32> to vector<12xf32>
    %434 = vector.shape_cast %433 : vector<12xf32> to vector<12x1xf32>
    %435 = tpu.reciprocal %434 {approx = true} : vector<12x1xf32> -> vector<12x1xf32>
    %436 = vector.broadcast %435 : vector<12x1xf32> to vector<12x12xf32>
    %437 = arith.mulf %432, %436 : vector<12x12xf32>
    %438 = arith.truncf %437 : vector<12x12xf32> to vector<12x12xbf16>
    %cst_207 = arith.constant dense<0.000000e+00> : vector<12x8xf32>
    %439 = tpu.matmul %438, %424, %cst_207 {dimension_numbers = #tpu.dot_dimension_numbers<[1], [0], [0], [1], [0, 0, 1, 1], [], []>} : vector<12x12xbf16>, vector<12x8xbf16>, vector<12x8xf32> -> vector<12x8xf32>
    %440 = vector.extract_strided_slice %382 {offsets = [0, 24], sizes = [12, 8], strides = [1, 1]} : vector<12x96xbf16> to vector<12x8xbf16>
    %441 = vector.extract_strided_slice %382 {offsets = [0, 56], sizes = [12, 8], strides = [1, 1]} : vector<12x96xbf16> to vector<12x8xbf16>
    %442 = vector.extract_strided_slice %382 {offsets = [0, 88], sizes = [12, 8], strides = [1, 1]} : vector<12x96xbf16> to vector<12x8xbf16>
    %cst_208 = arith.constant dense<0.000000e+00> : vector<12x12xf32>
    %443 = tpu.matmul %440, %441, %cst_208 {dimension_numbers = #tpu.dot_dimension_numbers<[1], [1], [0], [0], [0, 0, 1, 0], [], []>} : vector<12x8xbf16>, vector<12x8xbf16>, vector<12x12xf32> -> vector<12x12xf32>
    %cst_209 = arith.constant -1.000000e+30 : f32
    %444 = vector.broadcast %cst_209 : f32 to vector<12x12xf32>
    %445 = arith.select %385, %443, %444 : vector<12x12xi1>, vector<12x12xf32>
    %cst_210 = arith.constant dense<0xFF800000> : vector<12xf32>
    %446 = vector.multi_reduction <maximumf>, %445, %cst_210 [1] : vector<12x12xf32> to vector<12xf32>
    %447 = vector.shape_cast %446 : vector<12xf32> to vector<12x1xf32>
    %448 = vector.broadcast %447 : vector<12x1xf32> to vector<12x12xf32>
    %449 = arith.subf %445, %448 : vector<12x12xf32>
    %450 = math.exp %449 : vector<12x12xf32>
    %cst_211 = arith.constant dense<0.000000e+00> : vector<12xf32>
    %451 = vector.multi_reduction <add>, %450, %cst_211 [1] : vector<12x12xf32> to vector<12xf32>
    %452 = vector.shape_cast %451 : vector<12xf32> to vector<12x1xf32>
    %453 = tpu.reciprocal %452 {approx = true} : vector<12x1xf32> -> vector<12x1xf32>
    %454 = vector.broadcast %453 : vector<12x1xf32> to vector<12x12xf32>
    %455 = arith.mulf %450, %454 : vector<12x12xf32>
    %456 = arith.truncf %455 : vector<12x12xf32> to vector<12x12xbf16>
    %cst_212 = arith.constant dense<0.000000e+00> : vector<12x8xf32>
    %457 = tpu.matmul %456, %442, %cst_212 {dimension_numbers = #tpu.dot_dimension_numbers<[1], [0], [0], [1], [0, 0, 1, 1], [], []>} : vector<12x12xbf16>, vector<12x8xbf16>, vector<12x8xf32> -> vector<12x8xf32>
    %458 = tpu.concatenate %403, %421, %439, %457 in 1 : vector<12x8xf32>, vector<12x8xf32>, vector<12x8xf32>, vector<12x8xf32> -> vector<12x32xf32>
    %459 = arith.truncf %458 : vector<12x32xf32> to vector<12x32xbf16>
    %cst_213 = arith.constant dense<0.000000e+00> : vector<12x32xf32>
    %460 = tpu.matmul %459, %348, %cst_213 {dimension_numbers = #tpu.dot_dimension_numbers<[1], [0], [0], [1], [0, 0, 1, 1], [], []>} : vector<12x32xbf16>, vector<32x32xbf16>, vector<12x32xf32> -> vector<12x32xf32>
    %461 = arith.addf %343, %460 : vector<12x32xf32>
    %462 = vector.broadcast %349 : vector<1x32xf32> to vector<12x32xf32>
    %463 = arith.addf %461, %462 : vector<12x32xf32>
    %cst_214 = arith.constant dense<0.000000e+00> : vector<12xf32>
    %464 = vector.multi_reduction <add>, %463, %cst_214 [1] : vector<12x32xf32> to vector<12xf32>
    %465 = vector.shape_cast %464 : vector<12xf32> to vector<12x1xf32>
    %cst_215 = arith.constant 3.200000e+01 : f32
    %466 = vector.broadcast %cst_215 : f32 to vector<12x1xf32>
    %467 = arith.divf %465, %466 : vector<12x1xf32>
    %468 = vector.broadcast %467 : vector<12x1xf32> to vector<12x32xf32>
    %469 = arith.subf %463, %468 : vector<12x32xf32>
    %470 = arith.mulf %469, %469 : vector<12x32xf32>
    %cst_216 = arith.constant dense<0.000000e+00> : vector<12xf32>
    %471 = vector.multi_reduction <add>, %470, %cst_216 [1] : vector<12x32xf32> to vector<12xf32>
    %472 = vector.shape_cast %471 : vector<12xf32> to vector<12x1xf32>
    %cst_217 = arith.constant 3.200000e+01 : f32
    %473 = vector.broadcast %cst_217 : f32 to vector<12x1xf32>
    %474 = arith.divf %472, %473 : vector<12x1xf32>
    %475 = vector.broadcast %467 : vector<12x1xf32> to vector<12x32xf32>
    %476 = arith.subf %463, %475 : vector<12x32xf32>
    %cst_218 = arith.constant 9.99999974E-6 : f32
    %477 = vector.broadcast %cst_218 : f32 to vector<12x1xf32>
    %478 = arith.addf %474, %477 : vector<12x1xf32>
    %479 = math.rsqrt %478 : vector<12x1xf32>
    %480 = vector.broadcast %479 : vector<12x1xf32> to vector<12x32xf32>
    %481 = arith.mulf %476, %480 : vector<12x32xf32>
    %482 = vector.broadcast %350 : vector<1x32xf32> to vector<12x32xf32>
    %483 = arith.mulf %481, %482 : vector<12x32xf32>
    %484 = vector.broadcast %351 : vector<1x32xf32> to vector<12x32xf32>
    %485 = arith.addf %483, %484 : vector<12x32xf32>
    %486 = arith.truncf %485 : vector<12x32xf32> to vector<12x32xbf16>
    %cst_219 = arith.constant dense<0.000000e+00> : vector<12x128xf32>
    %487 = tpu.matmul %486, %352, %cst_219 {dimension_numbers = #tpu.dot_dimension_numbers<[1], [0], [0], [1], [0, 0, 1, 1], [], []>} : vector<12x32xbf16>, vector<32x128xbf16>, vector<12x128xf32> -> vector<12x128xf32>
    %488 = vector.broadcast %353 : vector<1x128xf32> to vector<12x128xf32>
    %489 = arith.addf %487, %488 : vector<12x128xf32>
    %cst_220 = arith.constant 5.000000e-01 : f32
    %490 = vector.broadcast %cst_220 : f32 to vector<12x128xf32>
    %491 = arith.mulf %490, %489 : vector<12x128xf32>
    %cst_221 = arith.constant 4.471500e-02 : f32
    %492 = vector.broadcast %cst_221 : f32 to vector<12x128xf32>
    %493 = arith.mulf %492, %489 : vector<12x128xf32>
    %494 = arith.mulf %493, %489 : vector<12x128xf32>
    %495 = arith.mulf %494, %489 : vector<12x128xf32>
    %496 = arith.addf %489, %495 : vector<12x128xf32>
    %cst_222 = arith.constant 0.797884583 : f32
    %497 = vector.broadcast %cst_222 : f32 to vector<12x128xf32>
    %498 = arith.mulf %497, %496 : vector<12x128xf32>
    %499 = math.tanh %498 : vector<12x128xf32>
    %cst_223 = arith.constant 1.000000e+00 : f32
    %500 = vector.broadcast %cst_223 : f32 to vector<12x128xf32>
    %501 = arith.addf %500, %499 : vector<12x128xf32>
    %502 = arith.mulf %491, %501 : vector<12x128xf32>
    %503 = arith.truncf %502 : vector<12x128xf32> to vector<12x128xbf16>
    %cst_224 = arith.constant dense<0.000000e+00> : vector<12x32xf32>
    %504 = tpu.matmul %503, %354, %cst_224 {dimension_numbers = #tpu.dot_dimension_numbers<[1], [0], [0], [1], [0, 0, 1, 1], [], []>} : vector<12x128xbf16>, vector<128x32xbf16>, vector<12x32xf32> -> vector<12x32xf32>
    %505 = arith.addf %463, %504 : vector<12x32xf32>
    %506 = vector.broadcast %355 : vector<1x32xf32> to vector<12x32xf32>
    %507 = arith.addf %505, %506 : vector<12x32xf32>
    %c0_225 = arith.constant 0 : index
    %c0_226 = arith.constant 0 : index
    %508 = vector.load %arg43[%c0_225, %c0_226] : memref<1x32xf32, #tpu.memory_space<vmem>>, vector<1x32xf32>
    %c0_227 = arith.constant 0 : index
    %c0_228 = arith.constant 0 : index
    %509 = vector.load %arg44[%c0_227, %c0_228] : memref<1x32xf32, #tpu.memory_space<vmem>>, vector<1x32xf32>
    %cst_229 = arith.constant dense<0.000000e+00> : vector<12xf32>
    %510 = vector.multi_reduction <add>, %507, %cst_229 [1] : vector<12x32xf32> to vector<12xf32>
    %511 = vector.shape_cast %510 : vector<12xf32> to vector<12x1xf32>
    %cst_230 = arith.constant 3.200000e+01 : f32
    %512 = vector.broadcast %cst_230 : f32 to vector<12x1xf32>
    %513 = arith.divf %511, %512 : vector<12x1xf32>
    %514 = vector.broadcast %513 : vector<12x1xf32> to vector<12x32xf32>
    %515 = arith.subf %507, %514 : vector<12x32xf32>
    %516 = arith.mulf %515, %515 : vector<12x32xf32>
    %cst_231 = arith.constant dense<0.000000e+00> : vector<12xf32>
    %517 = vector.multi_reduction <add>, %516, %cst_231 [1] : vector<12x32xf32> to vector<12xf32>
    %518 = vector.shape_cast %517 : vector<12xf32> to vector<12x1xf32>
    %cst_232 = arith.constant 3.200000e+01 : f32
    %519 = vector.broadcast %cst_232 : f32 to vector<12x1xf32>
    %520 = arith.divf %518, %519 : vector<12x1xf32>
    %521 = vector.broadcast %513 : vector<12x1xf32> to vector<12x32xf32>
    %522 = arith.subf %507, %521 : vector<12x32xf32>
    %cst_233 = arith.constant 9.99999974E-6 : f32
    %523 = vector.broadcast %cst_233 : f32 to vector<12x1xf32>
    %524 = arith.addf %520, %523 : vector<12x1xf32>
    %525 = math.rsqrt %524 : vector<12x1xf32>
    %526 = vector.broadcast %525 : vector<12x1xf32> to vector<12x32xf32>
    %527 = arith.mulf %522, %526 : vector<12x32xf32>
    %528 = vector.broadcast %508 : vector<1x32xf32> to vector<12x32xf32>
    %529 = arith.mulf %527, %528 : vector<12x32xf32>
    %530 = vector.broadcast %509 : vector<1x32xf32> to vector<12x32xf32>
    %531 = arith.addf %529, %530 : vector<12x32xf32>
    %532 = arith.truncf %531 : vector<12x32xf32> to vector<12x32xbf16>
    %c0_234 = arith.constant 0 : index
    %c0_235 = arith.constant 0 : index
    %533 = vector.load %arg45[%c0_234, %c0_235] : memref<32x128xbf16, #tpu.memory_space<vmem>>, vector<32x128xbf16>
    %cst_236 = arith.constant dense<0.000000e+00> : vector<12x128xf32>
    %534 = tpu.matmul %532, %533, %cst_236 {dimension_numbers = #tpu.dot_dimension_numbers<[1], [0], [0], [1], [0, 0, 1, 1], [], []>} : vector<12x32xbf16>, vector<32x128xbf16>, vector<12x128xf32> -> vector<12x128xf32>
    %c0_237 = arith.constant 0 : index
    %c0_238 = arith.constant 0 : index
    %c0_239 = arith.constant 0 : index
    %535 = vector.load %arg46[%c0_237, %c0_238, %c0_239] : memref<1x12x128xf32, #tpu.memory_space<vmem>>, vector<1x12x128xf32>
    %536 = vector.shape_cast %535 : vector<1x12x128xf32> to vector<12x128xf32>
    %537 = vector.shape_cast %534 : vector<12x128xf32> to vector<1x12x128xf32>
    tpu.vector_store %arg46[%c0_237, %c0_238, %c0_239], %537 {strides = array<i32>} : memref<1x12x128xf32, #tpu.memory_space<vmem>>, vector<1x12x128xf32>,
    return
  }
  func.func @transform_0(%arg0: i32) -> (i32, i32, i32) {
    %c0_i32 = arith.constant 0 : i32
    %c0_i32_0 = arith.constant 0 : i32
    %c0_i32_1 = arith.constant 0 : i32
    return %arg0, %c0_i32, %c0_i32_0 : i32, i32, i32
  }
  func.func @transform_1(%arg0: i32) -> (i32, i32, i32) {
    %c0_i32 = arith.constant 0 : i32
    %c0_i32_0 = arith.constant 0 : i32
    %c0_i32_1 = arith.constant 0 : i32
    return %arg0, %c0_i32, %c0_i32_0 : i32, i32, i32
  }
  func.func @transform_2(%arg0: i32) -> (i32, i32, i32) {
    %c0_i32 = arith.constant 0 : i32
    %c0_i32_0 = arith.constant 0 : i32
    %c0_i32_1 = arith.constant 0 : i32
    %c0_i32_2 = arith.constant 0 : i32
    return %c0_i32, %c0_i32_0, %c0_i32_1 : i32, i32, i32
  }
  func.func @transform_3(%arg0: i32) -> (i32, i32) {
    %c0_i32 = arith.constant 0 : i32
    %c0_i32_0 = arith.constant 0 : i32
    %c0_i32_1 = arith.constant 0 : i32
    return %c0_i32, %c0_i32_0 : i32, i32
  }
  func.func @transform_4(%arg0: i32) -> (i32, i32) {
    %c0_i32 = arith.constant 0 : i32
    %c0_i32_0 = arith.constant 0 : i32
    %c0_i32_1 = arith.constant 0 : i32
    return %c0_i32, %c0_i32_0 : i32, i32
  }
  func.func @transform_5(%arg0: i32) -> (i32, i32) {
    %c0_i32 = arith.constant 0 : i32
    %c0_i32_0 = arith.constant 0 : i32
    %c0_i32_1 = arith.constant 0 : i32
    return %c0_i32, %c0_i32_0 : i32, i32
  }
  func.func @transform_6(%arg0: i32) -> (i32, i32) {
    %c0_i32 = arith.constant 0 : i32
    %c0_i32_0 = arith.constant 0 : i32
    %c0_i32_1 = arith.constant 0 : i32
    return %c0_i32, %c0_i32_0 : i32, i32
  }
  func.func @transform_7(%arg0: i32) -> (i32, i32) {
    %c0_i32 = arith.constant 0 : i32
    %c0_i32_0 = arith.constant 0 : i32
    %c0_i32_1 = arith.constant 0 : i32
    return %c0_i32, %c0_i32_0 : i32, i32
  }
  func.func @transform_8(%arg0: i32) -> (i32, i32) {
    %c0_i32 = arith.constant 0 : i32
    %c0_i32_0 = arith.constant 0 : i32
    %c0_i32_1 = arith.constant 0 : i32
    return %c0_i32, %c0_i32_0 : i32, i32
  }
  func.func @transform_9(%arg0: i32) -> (i32, i32) {
    %c0_i32 = arith.constant 0 : i32
    %c0_i32_0 = arith.constant 0 : i32
    %c0_i32_1 = arith.constant 0 : i32
    return %c0_i32, %c0_i32_0 : i32, i32
  }
  func.func @transform_10(%arg0: i32) -> (i32, i32) {
    %c0_i32 = arith.constant 0 : i32
    %c0_i32_0 = arith.constant 0 : i32
    %c0_i32_1 = arith.constant 0 : i32
    return %c0_i32, %c0_i32_0 : i32, i32
  }
  func.func @transform_11(%arg0: i32) -> (i32, i32) {
    %c0_i32 = arith.constant 0 : i32
    %c0_i32_0 = arith.constant 0 : i32
    %c0_i32_1 = arith.constant 0 : i32
    return %c0_i32, %c0_i32_0 : i32, i32
  }
  func.func @transform_12(%arg0: i32) -> (i32, i32) {
    %c0_i32 = arith.constant 0 : i32
    %c0_i32_0 = arith.constant 0 : i32
    %c0_i32_1 = arith.constant 0 : i32
    return %c0_i32, %c0_i32_0 : i32, i32
  }
  func.func @transform_13(%arg0: i32) -> (i32, i32) {
    %c0_i32 = arith.constant 0 : i32
    %c0_i32_0 = arith.constant 0 : i32
    %c0_i32_1 = arith.constant 0 : i32
    return %c0_i32, %c0_i32_0 : i32, i32
  }
  func.func @transform_14(%arg0: i32) -> (i32, i32) {
    %c0_i32 = arith.constant 0 : i32
    %c0_i32_0 = arith.constant 0 : i32
    %c0_i32_1 = arith.constant 0 : i32
    return %c0_i32, %c0_i32_0 : i32, i32
  }
  func.func @transform_15(%arg0: i32) -> (i32, i32) {
    %c0_i32 = arith.constant 0 : i32
    %c0_i32_0 = arith.constant 0 : i32
    %c0_i32_1 = arith.constant 0 : i32
    return %c0_i32, %c0_i32_0 : i32, i32
  }
  func.func @transform_16(%arg0: i32) -> (i32, i32) {
    %c0_i32 = arith.constant 0 : i32
    %c0_i32_0 = arith.constant 0 : i32
    %c0_i32_1 = arith.constant 0 : i32
    return %c0_i32, %c0_i32_0 : i32, i32
  }
  func.func @transform_17(%arg0: i32) -> (i32, i32) {
    %c0_i32 = arith.constant 0 : i32
    %c0_i32_0 = arith.constant 0 : i32
    %c0_i32_1 = arith.constant 0 : i32
    return %c0_i32, %c0_i32_0 : i32, i32
  }
  func.func @transform_18(%arg0: i32) -> (i32, i32) {
    %c0_i32 = arith.constant 0 : i32
    %c0_i32_0 = arith.constant 0 : i32
    %c0_i32_1 = arith.constant 0 : i32
    return %c0_i32, %c0_i32_0 : i32, i32
  }
  func.func @transform_19(%arg0: i32) -> (i32, i32) {
    %c0_i32 = arith.constant 0 : i32
    %c0_i32_0 = arith.constant 0 : i32
    %c0_i32_1 = arith.constant 0 : i32
    return %c0_i32, %c0_i32_0 : i32, i32
  }
  func.func @transform_20(%arg0: i32) -> (i32, i32) {
    %c0_i32 = arith.constant 0 : i32
    %c0_i32_0 = arith.constant 0 : i32
    %c0_i32_1 = arith.constant 0 : i32
    return %c0_i32, %c0_i32_0 : i32, i32
  }
  func.func @transform_21(%arg0: i32) -> (i32, i32) {
    %c0_i32 = arith.constant 0 : i32
    %c0_i32_0 = arith.constant 0 : i32
    %c0_i32_1 = arith.constant 0 : i32
    return %c0_i32, %c0_i32_0 : i32, i32
  }
  func.func @transform_22(%arg0: i32) -> (i32, i32) {
    %c0_i32 = arith.constant 0 : i32
    %c0_i32_0 = arith.constant 0 : i32
    %c0_i32_1 = arith.constant 0 : i32
    return %c0_i32, %c0_i32_0 : i32, i32
  }
  func.func @transform_23(%arg0: i32) -> (i32, i32) {
    %c0_i32 = arith.constant 0 : i32
    %c0_i32_0 = arith.constant 0 : i32
    %c0_i32_1 = arith.constant 0 : i32
    return %c0_i32, %c0_i32_0 : i32, i32
  }
  func.func @transform_24(%arg0: i32) -> (i32, i32) {
    %c0_i32 = arith.constant 0 : i32
    %c0_i32_0 = arith.constant 0 : i32
    %c0_i32_1 = arith.constant 0 : i32
    return %c0_i32, %c0_i32_0 : i32, i32
  }
  func.func @transform_25(%arg0: i32) -> (i32, i32) {
    %c0_i32 = arith.constant 0 : i32
    %c0_i32_0 = arith.constant 0 : i32
    %c0_i32_1 = arith.constant 0 : i32
    return %c0_i32, %c0_i32_0 : i32, i32
  }
  func.func @transform_26(%arg0: i32) -> (i32, i32) {
    %c0_i32 = arith.constant 0 : i32
    %c0_i32_0 = arith.constant 0 : i32
    %c0_i32_1 = arith.constant 0 : i32
    return %c0_i32, %c0_i32_0 : i32, i32
  }
  func.func @transform_27(%arg0: i32) -> (i32, i32) {
    %c0_i32 = arith.constant 0 : i32
    %c0_i32_0 = arith.constant 0 : i32
    %c0_i32_1 = arith.constant 0 : i32
    return %c0_i32, %c0_i32_0 : i32, i32
  }
  func.func @transform_28(%arg0: i32) -> (i32, i32) {
    %c0_i32 = arith.constant 0 : i32
    %c0_i32_0 = arith.constant 0 : i32
    %c0_i32_1 = arith.constant 0 : i32
    return %c0_i32, %c0_i32_0 : i32, i32
  }
  func.func @transform_29(%arg0: i32) -> (i32, i32) {
    %c0_i32 = arith.constant 0 : i32
    %c0_i32_0 = arith.constant 0 : i32
    %c0_i32_1 = arith.constant 0 : i32
    return %c0_i32, %c0_i32_0 : i32, i32
  }
  func.func @transform_30(%arg0: i32) -> (i32, i32) {
    %c0_i32 = arith.constant 0 : i32
    %c0_i32_0 = arith.constant 0 : i32
    %c0_i32_1 = arith.constant 0 : i32
    return %c0_i32, %c0_i32_0 : i32, i32
  }
  func.func @transform_31(%arg0: i32) -> (i32, i32) {
    %c0_i32 = arith.constant 0 : i32
    %c0_i32_0 = arith.constant 0 : i32
    %c0_i32_1 = arith.constant 0 : i32
    return %c0_i32, %c0_i32_0 : i32, i32
  }
  func.func @transform_32(%arg0: i32) -> (i32, i32) {
    %c0_i32 = arith.constant 0 : i32
    %c0_i32_0 = arith.constant 0 : i32
    %c0_i32_1 = arith.constant 0 : i32
    return %c0_i32, %c0_i32_0 : i32, i32
  }
  func.func @transform_33(%arg0: i32) -> (i32, i32) {
    %c0_i32 = arith.constant 0 : i32
    %c0_i32_0 = arith.constant 0 : i32
    %c0_i32_1 = arith.constant 0 : i32
    return %c0_i32, %c0_i32_0 : i32, i32
  }
  func.func @transform_34(%arg0: i32) -> (i32, i32) {
    %c0_i32 = arith.constant 0 : i32
    %c0_i32_0 = arith.constant 0 : i32
    %c0_i32_1 = arith.constant 0 : i32
    return %c0_i32, %c0_i32_0 : i32, i32
  }
  func.func @transform_35(%arg0: i32) -> (i32, i32) {
    %c0_i32 = arith.constant 0 : i32
    %c0_i32_0 = arith.constant 0 : i32
    %c0_i32_1 = arith.constant 0 : i32
    return %c0_i32, %c0_i32_0 : i32, i32
  }
  func.func @transform_36(%arg0: i32) -> (i32, i32) {
    %c0_i32 = arith.constant 0 : i32
    %c0_i32_0 = arith.constant 0 : i32
    %c0_i32_1 = arith.constant 0 : i32
    return %c0_i32, %c0_i32_0 : i32, i32
  }
  func.func @transform_37(%arg0: i32) -> (i32, i32) {
    %c0_i32 = arith.constant 0 : i32
    %c0_i32_0 = arith.constant 0 : i32
    %c0_i32_1 = arith.constant 0 : i32
    return %c0_i32, %c0_i32_0 : i32, i32
  }
  func.func @transform_38(%arg0: i32) -> (i32, i32) {
    %c0_i32 = arith.constant 0 : i32
    %c0_i32_0 = arith.constant 0 : i32
    %c0_i32_1 = arith.constant 0 : i32
    return %c0_i32, %c0_i32_0 : i32, i32
  }
  func.func @transform_39(%arg0: i32) -> (i32, i32) {
    %c0_i32 = arith.constant 0 : i32
    %c0_i32_0 = arith.constant 0 : i32
    %c0_i32_1 = arith.constant 0 : i32
    return %c0_i32, %c0_i32_0 : i32, i32
  }
  func.func @transform_40(%arg0: i32) -> (i32, i32) {
    %c0_i32 = arith.constant 0 : i32
    %c0_i32_0 = arith.constant 0 : i32
    %c0_i32_1 = arith.constant 0 : i32
    return %c0_i32, %c0_i32_0 : i32, i32
  }
  func.func @transform_41(%arg0: i32) -> (i32, i32) {
    %c0_i32 = arith.constant 0 : i32
    %c0_i32_0 = arith.constant 0 : i32
    %c0_i32_1 = arith.constant 0 : i32
    return %c0_i32, %c0_i32_0 : i32, i32
  }
  func.func @transform_42(%arg0: i32) -> (i32, i32) {
    %c0_i32 = arith.constant 0 : i32
    %c0_i32_0 = arith.constant 0 : i32
    %c0_i32_1 = arith.constant 0 : i32
    return %c0_i32, %c0_i32_0 : i32, i32
  }
  func.func @transform_43(%arg0: i32) -> (i32, i32) {
    %c0_i32 = arith.constant 0 : i32
    %c0_i32_0 = arith.constant 0 : i32
    %c0_i32_1 = arith.constant 0 : i32
    return %c0_i32, %c0_i32_0 : i32, i32
  }
  func.func @transform_44(%arg0: i32) -> (i32, i32) {
    %c0_i32 = arith.constant 0 : i32
    %c0_i32_0 = arith.constant 0 : i32
    %c0_i32_1 = arith.constant 0 : i32
    return %c0_i32, %c0_i32_0 : i32, i32
  }
  func.func @transform_45(%arg0: i32) -> (i32, i32, i32) {
    %c0_i32 = arith.constant 0 : i32
    %c0_i32_0 = arith.constant 0 : i32
    %c0_i32_1 = arith.constant 0 : i32
    return %arg0, %c0_i32, %c0_i32_0 : i32, i32, i32
  }
}

</mosaic_0001>

<llo_original>
// kernel: vqaclip_forward.1
$region0: #{vqaclip_forward.1}
  #allocation0 [shape = 'u32[]', space=smem, size = 0x4, offset = 0x4, fixed_abs, tag = 'smem constant byte address 0x4 - core index']
  #allocation1 [shape = 'u32[72,128]{1,0:T(1,128)}', space=vmem, size = 0x9000, scoped, tag = 'internal scratch']
  #allocation2 [shape = 'f32[12,32]{1,0:T(8,128)}', space=vmem, size = 0x2000, scoped, tag = 'scratch operand']
  %s0 = inlined_call_operand.smem [shape: u32[46], index: -1, kind: input, shape index: {}]
  %s1 = sld [smem:[%s0]]
  %s2 = scalar_lea.smem %s0, 1
  %s3 = sld [smem:[%s2]]
  %s4 = scalar_lea.smem %s0, 2
  %s5 = sld [smem:[%s4]]
  %s6 = scalar_lea.smem %s0, 3
  %s7 = sld [smem:[%s6]]
  %s8 = scalar_lea.smem %s0, 4
  %s9 = sld [smem:[%s8]]
  %s10 = scalar_lea.smem %s0, 5
  %s11 = sld [smem:[%s10]]
  %s12 = scalar_lea.smem %s0, 6
  %s13 = sld [smem:[%s12]]
  %s14 = scalar_lea.smem %s0, 7
  %s15 = sld [smem:[%s14]]
  %s16 = scalar_lea.smem %s0, 8
  %s17 = sld [smem:[%s16]]
  %s18 = scalar_lea.smem %s0, 9
  %s19 = sld [smem:[%s18]]
  %s20 = scalar_lea.smem %s0, 10
  %s21 = sld [smem:[%s20]]
  %s22 = scalar_lea.smem %s0, 11
  %s23 = sld [smem:[%s22]]
  %s24 = scalar_lea.smem %s0, 12
  %s25 = sld [smem:[%s24]]
  %s26 = scalar_lea.smem %s0, 13
  %s27 = sld [smem:[%s26]]
  %s28 = scalar_lea.smem %s0, 14
  %s29 = sld [smem:[%s28]]
  %s30 = scalar_lea.smem %s0, 15
  %s31 = sld [smem:[%s30]]
  %s32 = scalar_lea.smem %s0, 16
  %s33 = sld [smem:[%s32]]
  %s34 = scalar_lea.smem %s0, 17
  %s35 = sld [smem:[%s34]]
  %s36 = scalar_lea.smem %s0, 18
  %s37 = sld [smem:[%s36]]
  %s38 = scalar_lea.smem %s0, 19
  %s39 = sld [smem:[%s38]]
  %s40 = scalar_lea.smem %s0, 20
  %s41 = sld [smem:[%s40]]
  %s42 = scalar_lea.smem %s0, 21
  %s43 = sld [smem:[%s42]]
  %s44 = scalar_lea.smem %s0, 22
  %s45 = sld [smem:[%s44]]
  %s46 = scalar_lea.smem %s0, 23
  %s47 = sld [smem:[%s46]]
  %s48 = scalar_lea.smem %s0, 24
  %s49 = sld [smem:[%s48]]
  %s50 = scalar_lea.smem %s0, 25
  %s51 = sld [smem:[%s50]]
  %s52 = scalar_lea.smem %s0, 26
  %s53 = sld [smem:[%s52]]
  %s54 = scalar_lea.smem %s0, 27
  %s55 = sld [smem:[%s54]]
  %s56 = scalar_lea.smem %s0, 28
  %s57 = sld [smem:[%s56]]
  %s58 = scalar_lea.smem %s0, 29
  %s59 = sld [smem:[%s58]]
  %s60 = scalar_lea.smem %s0, 30
  %s61 = sld [smem:[%s60]]
  %s62 = scalar_lea.smem %s0, 31
  %s63 = sld [smem:[%s62]]
  %s64 = scalar_lea.smem %s0, 32
  %s65 = sld [smem:[%s64]]
  %s66 = scalar_lea.smem %s0, 33
  %s67 = sld [smem:[%s66]]
  %s68 = scalar_lea.smem %s0, 34
  %s69 = sld [smem:[%s68]]
  %s70 = scalar_lea.smem %s0, 35
  %s71 = sld [smem:[%s70]]
  %s72 = scalar_lea.smem %s0, 36
  %s73 = sld [smem:[%s72]]
  %s74 = scalar_lea.smem %s0, 37
  %s75 = sld [smem:[%s74]]
  %s76 = scalar_lea.smem %s0, 38
  %s77 = sld [smem:[%s76]]
  %s78 = scalar_lea.smem %s0, 39
  %s79 = sld [smem:[%s78]]
  %s80 = scalar_lea.smem %s0, 40
  %s81 = sld [smem:[%s80]]
  %s82 = scalar_lea.smem %s0, 41
  %s83 = sld [smem:[%s82]]
  %s84 = scalar_lea.smem %s0, 42
  %s85 = sld [smem:[%s84]]
  %s86 = scalar_lea.smem %s0, 43
  %s87 = sld [smem:[%s86]]
  %s88 = scalar_lea.smem %s0, 44
  %s89 = sld [smem:[%s88]]
  %s90 = scalar_lea.smem %s0, 45
  %s91 = sld [smem:[%s90]]
  %s92 = sld [smem:[#allocation0]]
  $region225: #{vqaclip_forward.1} parent=0
    _
  %s94 = ssub.s32 1, %s92
  %s95 = scalar_select 0, %s94, %s92
  $region1: #{vqaclip_forward.1} parent=0
    #allocation3 [shape = 'u8[512]{0}', space=vmem, size = 0x400, scoped, tag = 'input window, operand 41, single buffered']
    #allocation4 [shape = 's32[2]{0}', space=sflag, size = 0x8, scoped, tag = 'scoped memory for vqaclip_forward.1']
    #allocation5 [shape = 'u8[512]{0}', space=vmem, size = 0x400, scoped, tag = 'input window, operand 42, single buffered']
    #allocation6 [shape = 's32[1]{0}', space=sflag, size = 0x4, scoped, tag = 'scoped memory for vqaclip_forward.1']
    #allocation7 [shape = 'u8[512]{0}', space=vmem, size = 0x400, scoped, tag = 'input window, operand 43, single buffered']
    %96 = vsyncpa [#allocation4], 0
    %97 = vsyncpa [#allocation6], 0
    loop: start=0, step=1, limit=4
    $region2: #{vqaclip_forward.1} parent=1 // loop_pre_header
      _
    $region3: #{vqaclip_forward.1} parent=1 // loop_header
      %s99 = sphi 0, %s103
      %p100 = scmp.ge.s32.totalorder %s99, 4
      %s109 = sphi 0, %s111
      %s112 = sphi 0, %s109
      %s113 = sphi 0, %s112
      %s129 = sphi 0, %s113
      %s135 = sphi 0, %s137
      %s138 = sphi 0, %s135
      %s139 = sphi 0, %s138
      %s155 = sphi 0, %s139
      %s159 = sphi 0, %s159
      %s161 = sphi 0, %s159
      %s162 = sphi 0, %s161
      %s176 = sphi 0, %s162
      %s180 = sphi 0, %s180
      %s182 = sphi 0, %s180
      %s183 = sphi 0, %s182
      %s197 = sphi 0, %s183
      %s201 = sphi 0, %s201
      %s203 = sphi 0, %s201
      %s204 = sphi 0, %s203
      %s218 = sphi 0, %s204
      %s222 = sphi 0, %s222
      %s224 = sphi 0, %s222
      %s225 = sphi 0, %s224
      %s239 = sphi 0, %s225
      %s243 = sphi 0, %s243
      %s245 = sphi 0, %s243
      %s246 = sphi 0, %s245
      %s260 = sphi 0, %s246
      %s264 = sphi 0, %s264
      %s266 = sphi 0, %s264
      %s267 = sphi 0, %s266
      %s281 = sphi 0, %s267
      %s285 = sphi 0, %s285
      %s287 = sphi 0, %s285
      %s288 = sphi 0, %s287
      %s302 = sphi 0, %s288
      %s306 = sphi 0, %s306
      %s308 = sphi 0, %s306
      %s309 = sphi 0, %s308
      %s323 = sphi 0, %s309
      %s327 = sphi 0, %s327
      %s329 = sphi 0, %s327
      %s330 = sphi 0, %s329
      %s344 = sphi 0, %s330
      %s348 = sphi 0, %s348
      %s350 = sphi 0, %s348
      %s351 = sphi 0, %s350
      %s365 = sphi 0, %s351
      %s369 = sphi 0, %s369
      %s371 = sphi 0, %s369
      %s372 = sphi 0, %s371
      %s386 = sphi 0, %s372
      %s390 = sphi 0, %s390
      %s392 = sphi 0, %s390
      %s393 = sphi 0, %s392
      %s407 = sphi 0, %s393
      %s411 = sphi 0, %s411
      %s413 = sphi 0, %s411
      %s414 = sphi 0, %s413
      %s428 = sphi 0, %s414
      %s432 = sphi 0, %s432
      %s434 = sphi 0, %s432
      %s435 = sphi 0, %s434
      %s449 = sphi 0, %s435
      %s453 = sphi 0, %s453
      %s455 = sphi 0, %s453
      %s456 = sphi 0, %s455
      %s470 = sphi 0, %s456
      %s474 = sphi 0, %s474
      %s476 = sphi 0, %s474
      %s477 = sphi 0, %s476
      %s491 = sphi 0, %s477
      %s495 = sphi 0, %s495
      %s497 = sphi 0, %s495
      %s498 = sphi 0, %s497
      %s512 = sphi 0, %s498
      %s516 = sphi 0, %s516
      %s518 = sphi 0, %s516
      %s519 = sphi 0, %s518
      %s533 = sphi 0, %s519
      %s537 = sphi 0, %s537
      %s539 = sphi 0, %s537
      %s540 = sphi 0, %s539
      %s554 = sphi 0, %s540
      %s558 = sphi 0, %s558
      %s560 = sphi 0, %s558
      %s561 = sphi 0, %s560
      %s575 = sphi 0, %s561
      %s579 = sphi 0, %s579
      %s581 = sphi 0, %s579
      %s582 = sphi 0, %s581
      %s596 = sphi 0, %s582
      %s600 = sphi 0, %s600
      %s602 = sphi 0, %s600
      %s603 = sphi 0, %s602
      %s617 = sphi 0, %s603
      %s621 = sphi 0, %s621
      %s623 = sphi 0, %s621
      %s624 = sphi 0, %s623
      %s638 = sphi 0, %s624
      %s642 = sphi 0, %s642
      %s644 = sphi 0, %s642
      %s645 = sphi 0, %s644
      %s659 = sphi 0, %s645
      %s663 = sphi 0, %s663
      %s665 = sphi 0, %s663
      %s666 = sphi 0, %s665
      %s680 = sphi 0, %s666
      %s684 = sphi 0, %s684
      %s686 = sphi 0, %s684
      %s687 = sphi 0, %s686
      %s701 = sphi 0, %s687
      %s705 = sphi 0, %s705
      %s707 = sphi 0, %s705
      %s708 = sphi 0, %s707
      %s722 = sphi 0, %s708
      %s726 = sphi 0, %s726
      %s728 = sphi 0, %s726
      %s729 = sphi 0, %s728
      %s743 = sphi 0, %s729
      %s747 = sphi 0, %s747
      %s749 = sphi 0, %s747
      %s750 = sphi 0, %s749
      %s764 = sphi 0, %s750
      %s768 = sphi 0, %s768
      %s770 = sphi 0, %s768
      %s771 = sphi 0, %s770
      %s785 = sphi 0, %s771
      %s789 = sphi 0, %s789
      %s791 = sphi 0, %s789
      %s792 = sphi 0, %s791
      %s806 = sphi 0, %s792
      %s810 = sphi 0, %s810
      %s812 = sphi 0, %s810
      %s813 = sphi 0, %s812
      %s827 = sphi 0, %s813
      %s831 = sphi 0, %s831
      %s833 = sphi 0, %s831
      %s834 = sphi 0, %s833
      %s848 = sphi 0, %s834
      %s852 = sphi 0, %s852
      %s854 = sphi 0, %s852
      %s855 = sphi 0, %s854
      %s869 = sphi 0, %s855
      %s873 = sphi 0, %s873
      %s875 = sphi 0, %s873
      %s876 = sphi 0, %s875
      %s890 = sphi 0, %s876
      %s894 = sphi 0, %s894
      %s896 = sphi 0, %s894
      %s897 = sphi 0, %s896
      %s911 = sphi 0, %s897
      %s915 = sphi 0, %s915
      %s917 = sphi 0, %s915
      %s918 = sphi 0, %s917
      %s932 = sphi 0, %s918
      %s936 = sphi 0, %s936
      %s938 = sphi 0, %s936
      %s939 = sphi 0, %s938
      %s953 = sphi 0, %s939
      %s957 = sphi 0, %s957
      %s959 = sphi 0, %s957
      %s960 = sphi 0, %s959
      %s974 = sphi 0, %s960
      %s978 = sphi 0, %s978
      %s980 = sphi 0, %s978
      %s981 = sphi 0, %s980
      %s995 = sphi 0, %s981
      %s999 = sphi 0, %s999
      %s1001 = sphi 0, %s999
      %s1002 = sphi 0, %s1001
      %s1016 = sphi 0, %s1002
      %s1020 = sphi 0, %s1020
      %s1022 = sphi 0, %s1020
      %s1023 = sphi 0, %s1022
      %s1037 = sphi 0, %s1023
      %s1041 = sphi 0, %s1041
      %s1043 = sphi 0, %s1041
      %s1044 = sphi 0, %s1043
      %s1058 = sphi 0, %s1044
      %s1064 = sphi 0, %s1066
      %s1067 = sphi 0, %s1064
      %s1068 = sphi 0, %s1067
      %s1084 = sphi 0, %s1068
    $region4: #{vqaclip_forward.1} parent=1 // loop_header_branch
      %102 = sbr.rel (%p100) target = $region8
    $region5: #{vqaclip_forward.1} parent=1 // loop_body
      %s104 = ssub.s32 %s99, 1
      %s105 = ssub.s32 %s99, 2
      %s106 = sadd.s32 %s99, 1
      %s107 = ssub.s32 %s99, %s106
      %p108 = scmp.eq.s32.totalorder %s107, 0
      %s110 = sadd.s32 %s109, 1
      %s111 = scalar_select %p108, %s109, %s110
      %p114 = pneg %p108
      %p115 = scmp.eq.s32.totalorder %s99, 1
      %p116 = por %p114, %p115
      %p117 = scmp.ne.s32.totalorder %s109, %s112
      %p118 = scmp.eq.s32.totalorder %s99, 0
      %p119 = por %p117, %p118
      %p120 = scmp.ne.s32.totalorder %s109, %s112
      %p121 = scmp.eq.s32.totalorder %s104, 1
      %p122 = por %p120, %p121
      %p123 = scmp.ne.s32.totalorder %s112, %s113
      %p124 = scmp.eq.s32.totalorder %s104, 0
      %p125 = por %p123, %p124
      %p126 = scmp.ne.s32.totalorder %s112, %s113
      %p127 = scmp.eq.s32.totalorder %s105, 1
      %p128 = por %p126, %p127
      %p130 = scmp.ne.s32.totalorder %s113, %s129
      %p131 = scmp.eq.s32.totalorder %s105, 0
      %p132 = por %p130, %p131
      %s133 = ssub.s32 %s99, %s106
      %p134 = scmp.eq.s32.totalorder %s133, 0
      %s136 = sadd.s32 %s135, 1
      %s137 = scalar_select %p134, %s135, %s136
      %p140 = pneg %p134
      %p141 = scmp.eq.s32.totalorder %s99, 1
      %p142 = por %p140, %p141
      %p143 = scmp.ne.s32.totalorder %s135, %s138
      %p144 = scmp.eq.s32.totalorder %s99, 0
      %p145 = por %p143, %p144
      %p146 = scmp.ne.s32.totalorder %s135, %s138
      %p147 = scmp.eq.s32.totalorder %s104, 1
      %p148 = por %p146, %p147
      %p149 = scmp.ne.s32.totalorder %s138, %s139
      %p150 = scmp.eq.s32.totalorder %s104, 0
      %p151 = por %p149, %p150
      %p152 = scmp.ne.s32.totalorder %s138, %s139
      %p153 = scmp.eq.s32.totalorder %s105, 1
      %p154 = por %p152, %p153
      %p156 = scmp.ne.s32.totalorder %s139, %s155
      %p157 = scmp.eq.s32.totalorder %s105, 0
      %p158 = por %p156, %p157
      %s160 = sadd.s32 %s159, 1
      %p163 = scmp.eq.s32.totalorder %s99, 1
      %p164 = scmp.ne.s32.totalorder %s159, %s161
      %p165 = scmp.eq.s32.totalorder %s99, 0
      %p166 = por %p164, %p165
      %p167 = scmp.ne.s32.totalorder %s159, %s161
      %p168 = scmp.eq.s32.totalorder %s104, 1
      %p169 = por %p167, %p168
      %p170 = scmp.ne.s32.totalorder %s161, %s162
      %p171 = scmp.eq.s32.totalorder %s104, 0
      %p172 = por %p170, %p171
      %p173 = scmp.ne.s32.totalorder %s161, %s162
      %p174 = scmp.eq.s32.totalorder %s105, 1
      %p175 = por %p173, %p174
      %p177 = scmp.ne.s32.totalorder %s162, %s176
      %p178 = scmp.eq.s32.totalorder %s105, 0
      %p179 = por %p177, %p178
      %s181 = sadd.s32 %s180, 1
      %p184 = scmp.eq.s32.totalorder %s99, 1
      %p185 = scmp.ne.s32.totalorder %s180, %s182
      %p186 = scmp.eq.s32.totalorder %s99, 0
      %p187 = por %p185, %p186
      %p188 = scmp.ne.s32.totalorder %s180, %s182
      %p189 = scmp.eq.s32.totalorder %s104, 1
      %p190 = por %p188, %p189
      %p191 = scmp.ne.s32.totalorder %s182, %s183
      %p192 = scmp.eq.s32.totalorder %s104, 0
      %p193 = por %p191, %p192
      %p194 = scmp.ne.s32.totalorder %s182, %s183
      %p195 = scmp.eq.s32.totalorder %s105, 1
      %p196 = por %p194, %p195
      %p198 = scmp.ne.s32.totalorder %s183, %s197
      %p199 = scmp.eq.s32.totalorder %s105, 0
      %p200 = por %p198, %p199
      %s202 = sadd.s32 %s201, 1
      %p205 = scmp.eq.s32.totalorder %s99, 1
      %p206 = scmp.ne.s32.totalorder %s201, %s203
      %p207 = scmp.eq.s32.totalorder %s99, 0
      %p208 = por %p206, %p207
      %p209 = scmp.ne.s32.totalorder %s201, %s203
      %p210 = scmp.eq.s32.totalorder %s104, 1
      %p211 = por %p209, %p210
      %p212 = scmp.ne.s32.totalorder %s203, %s204
      %p213 = scmp.eq.s32.totalorder %s104, 0
      %p214 = por %p212, %p213
      %p215 = scmp.ne.s32.totalorder %s203, %s204
      %p216 = scmp.eq.s32.totalorder %s105, 1
      %p217 = por %p215, %p216
      %p219 = scmp.ne.s32.totalorder %s204, %s218
      %p220 = scmp.eq.s32.totalorder %s105, 0
      %p221 = por %p219, %p220
      %s223 = sadd.s32 %s222, 1
      %p226 = scmp.eq.s32.totalorder %s99, 1
      %p227 = scmp.ne.s32.totalorder %s222, %s224
      %p228 = scmp.eq.s32.totalorder %s99, 0
      %p229 = por %p227, %p228
      %p230 = scmp.ne.s32.totalorder %s222, %s224
      %p231 = scmp.eq.s32.totalorder %s104, 1
      %p232 = por %p230, %p231
      %p233 = scmp.ne.s32.totalorder %s224, %s225
      %p234 = scmp.eq.s32.totalorder %s104, 0
      %p235 = por %p233, %p234
      %p236 = scmp.ne.s32.totalorder %s224, %s225
      %p237 = scmp.eq.s32.totalorder %s105, 1
      %p238 = por %p236, %p237
      %p240 = scmp.ne.s32.totalorder %s225, %s239
      %p241 = scmp.eq.s32.totalorder %s105, 0
      %p242 = por %p240, %p241
      %s244 = sadd.s32 %s243, 1
      %p247 = scmp.eq.s32.totalorder %s99, 1
      %p248 = scmp.ne.s32.totalorder %s243, %s245
      %p249 = scmp.eq.s32.totalorder %s99, 0
      %p250 = por %p248, %p249
      %p251 = scmp.ne.s32.totalorder %s243, %s245
      %p252 = scmp.eq.s32.totalorder %s104, 1
      %p253 = por %p251, %p252
      %p254 = scmp.ne.s32.totalorder %s245, %s246
      %p255 = scmp.eq.s32.totalorder %s104, 0
      %p256 = por %p254, %p255
      %p257 = scmp.ne.s32.totalorder %s245, %s246
      %p258 = scmp.eq.s32.totalorder %s105, 1
      %p259 = por %p257, %p258
      %p261 = scmp.ne.s32.totalorder %s246, %s260
      %p262 = scmp.eq.s32.totalorder %s105, 0
      %p263 = por %p261, %p262
      %s265 = sadd.s32 %s264, 1
      %p268 = scmp.eq.s32.totalorder %s99, 1
      %p269 = scmp.ne.s32.totalorder %s264, %s266
      %p270 = scmp.eq.s32.totalorder %s99, 0
      %p271 = por %p269, %p270
      %p272 = scmp.ne.s32.totalorder %s264, %s266
      %p273 = scmp.eq.s32.totalorder %s104, 1
      %p274 = por %p272, %p273
      %p275 = scmp.ne.s32.totalorder %s266, %s267
      %p276 = scmp.eq.s32.totalorder %s104, 0
      %p277 = por %p275, %p276
      %p278 = scmp.ne.s32.totalorder %s266, %s267
      %p279 = scmp.eq.s32.totalorder %s105, 1
      %p280 = por %p278, %p279
      %p282 = scmp.ne.s32.totalorder %s267, %s281
      %p283 = scmp.eq.s32.totalorder %s105, 0
      %p284 = por %p282, %p283
      %s286 = sadd.s32 %s285, 1
      %p289 = scmp.eq.s32.totalorder %s99, 1
      %p290 = scmp.ne.s32.totalorder %s285, %s287
      %p291 = scmp.eq.s32.totalorder %s99, 0
      %p292 = por %p290, %p291
      %p293 = scmp.ne.s32.totalorder %s285, %s287
      %p294 = scmp.eq.s32.totalorder %s104, 1
      %p295 = por %p293, %p294
      %p296 = scmp.ne.s32.totalorder %s287, %s288
      %p297 = scmp.eq.s32.totalorder %s104, 0
      %p298 = por %p296, %p297
      %p299 = scmp.ne.s32.totalorder %s287, %s288
      %p300 = scmp.eq.s32.totalorder %s105, 1
      %p301 = por %p299, %p300
      %p303 = scmp.ne.s32.totalorder %s288, %s302
      %p304 = scmp.eq.s32.totalorder %s105, 0
      %p305 = por %p303, %p304
      %s307 = sadd.s32 %s306, 1
      %p310 = scmp.eq.s32.totalorder %s99, 1
      %p311 = scmp.ne.s32.totalorder %s306, %s308
      %p312 = scmp.eq.s32.totalorder %s99, 0
      %p313 = por %p311, %p312
      %p314 = scmp.ne.s32.totalorder %s306, %s308
      %p315 = scmp.eq.s32.totalorder %s104, 1
      %p316 = por %p314, %p315
      %p317 = scmp.ne.s32.totalorder %s308, %s309
      %p318 = scmp.eq.s32.totalorder %s104, 0
      %p319 = por %p317, %p318
      %p320 = scmp.ne.s32.totalorder %s308, %s309
      %p321 = scmp.eq.s32.totalorder %s105, 1
      %p322 = por %p320, %p321
      %p324 = scmp.ne.s32.totalorder %s309, %s323
      %p325 = scmp.eq.s32.totalorder %s105, 0
      %p326 = por %p324, %p325
      %s328 = sadd.s32 %s327, 1
      %p331 = scmp.eq.s32.totalorder %s99, 1
      %p332 = scmp.ne.s32.totalorder %s327, %s329
      %p333 = scmp.eq.s32.totalorder %s99, 0
      %p334 = por %p332, %p333
      %p335 = scmp.ne.s32.totalorder %s327, %s329
      %p336 = scmp.eq.s32.totalorder %s104, 1
      %p337 = por %p335, %p336
      %p338 = scmp.ne.s32.totalorder %s329, %s330
      %p339 = scmp.eq.s32.totalorder %s104, 0
      %p340 = por %p338, %p339
      %p341 = scmp.ne.s32.totalorder %s329, %s330
      %p342 = scmp.eq.s32.totalorder %s105, 1
      %p343 = por %p341, %p342
      %p345 = scmp.ne.s32.totalorder %s330, %s344
      %p346 = scmp.eq.s32.totalorder %s105, 0
      %p347 = por %p345, %p346
      %s349 = sadd.s32 %s348, 1
      %p352 = scmp.eq.s32.totalorder %s99, 1
      %p353 = scmp.ne.s32.totalorder %s348, %s350
      %p354 = scmp.eq.s32.totalorder %s99, 0
      %p355 = por %p353, %p354
      %p356 = scmp.ne.s32.totalorder %s348, %s350
      %p357 = scmp.eq.s32.totalorder %s104, 1
      %p358 = por %p356, %p357
      %p359 = scmp.ne.s32.totalorder %s350, %s351
      %p360 = scmp.eq.s32.totalorder %s104, 0
      %p361 = por %p359, %p360
      %p362 = scmp.ne.s32.totalorder %s350, %s351
      %p363 = scmp.eq.s32.totalorder %s105, 1
      %p364 = por %p362, %p363
      %p366 = scmp.ne.s32.totalorder %s351, %s365
      %p367 = scmp.eq.s32.totalorder %s105, 0
      %p368 = por %p366, %p367
      %s370 = sadd.s32 %s369, 1
      %p373 = scmp.eq.s32.totalorder %s99, 1
      %p374 = scmp.ne.s32.totalorder %s369, %s371
      %p375 = scmp.eq.s32.totalorder %s99, 0
      %p376 = por %p374, %p375
      %p377 = scmp.ne.s32.totalorder %s369, %s371
      %p378 = scmp.eq.s32.totalorder %s104, 1
      %p379 = por %p377, %p378
      %p380 = scmp.ne.s32.totalorder %s371, %s372
      %p381 = scmp.eq.s32.totalorder %s104, 0
      %p382 = por %p380, %p381
      %p383 = scmp.ne.s32.totalorder %s371, %s372
      %p384 = scmp.eq.s32.totalorder %s105, 1
      %p385 = por %p383, %p384
      %p387 = scmp.ne.s32.totalorder %s372, %s386
      %p388 = scmp.eq.s32.totalorder %s105, 0
      %p389 = por %p387, %p388
      %s391 = sadd.s32 %s390, 1
      %p394 = scmp.eq.s32.totalorder %s99, 1
      %p395 = scmp.ne.s32.totalorder %s390, %s392
      %p396 = scmp.eq.s32.totalorder %s99, 0
      %p397 = por %p395, %p396
      %p398 = scmp.ne.s32.totalorder %s390, %s392
      %p399 = scmp.eq.s32.totalorder %s104, 1
      %p400 = por %p398, %p399
      %p401 = scmp.ne.s32.totalorder %s392, %s393
      %p402 = scmp.eq.s32.totalorder %s104, 0
      %p403 = por %p401, %p402
      %p404 = scmp.ne.s32.totalorder %s392, %s393
      %p405 = scmp.eq.s32.totalorder %s105, 1
      %p406 = por %p404, %p405
      %p408 = scmp.ne.s32.totalorder %s393, %s407
      %p409 = scmp.eq.s32.totalorder %s105, 0
      %p410 = por %p408, %p409
      %s412 = sadd.s32 %s411, 1
      %p415 = scmp.eq.s32.totalorder %s99, 1
      %p416 = scmp.ne.s32.totalorder %s411, %s413
      %p417 = scmp.eq.s32.totalorder %s99, 0
      %p418 = por %p416, %p417
      %p419 = scmp.ne.s32.totalorder %s411, %s413
      %p420 = scmp.eq.s32.totalorder %s104, 1
      %p421 = por %p419, %p420
      %p422 = scmp.ne.s32.totalorder %s413, %s414
      %p423 = scmp.eq.s32.totalorder %s104, 0
      %p424 = por %p422, %p423
      %p425 = scmp.ne.s32.totalorder %s413, %s414
      %p426 = scmp.eq.s32.totalorder %s105, 1
      %p427 = por %p425, %p426
      %p429 = scmp.ne.s32.totalorder %s414, %s428
      %p430 = scmp.eq.s32.totalorder %s105, 0
      %p431 = por %p429, %p430
      %s433 = sadd.s32 %s432, 1
      %p436 = scmp.eq.s32.totalorder %s99, 1
      %p437 = scmp.ne.s32.totalorder %s432, %s434
      %p438 = scmp.eq.s32.totalorder %s99, 0
      %p439 = por %p437, %p438
      %p440 = scmp.ne.s32.totalorder %s432, %s434
      %p441 = scmp.eq.s32.totalorder %s104, 1
      %p442 = por %p440, %p441
      %p443 = scmp.ne.s32.totalorder %s434, %s435
      %p444 = scmp.eq.s32.totalorder %s104, 0
      %p445 = por %p443, %p444
      %p446 = scmp.ne.s32.totalorder %s434, %s435
      %p447 = scmp.eq.s32.totalorder %s105, 1
      %p448 = por %p446, %p447
      %p450 = scmp.ne.s32.totalorder %s435, %s449
      %p451 = scmp.eq.s32.totalorder %s105, 0
      %p452 = por %p450, %p451
      %s454 = sadd.s32 %s453, 1
      %p457 = scmp.eq.s32.totalorder %s99, 1
      %p458 = scmp.ne.s32.totalorder %s453, %s455
      %p459 = scmp.eq.s32.totalorder %s99, 0
      %p460 = por %p458, %p459
      %p461 = scmp.ne.s32.totalorder %s453, %s455
      %p462 = scmp.eq.s32.totalorder %s104, 1
      %p463 = por %p461, %p462
      %p464 = scmp.ne.s32.totalorder %s455, %s456
      %p465 = scmp.eq.s32.totalorder %s104, 0
      %p466 = por %p464, %p465
      %p467 = scmp.ne.s32.totalorder %s455, %s456
      %p468 = scmp.eq.s32.totalorder %s105, 1
      %p469 = por %p467, %p468
      %p471 = scmp.ne.s32.totalorder %s456, %s470
      %p472 = scmp.eq.s32.totalorder %s105, 0
      %p473 = por %p471, %p472
      %s475 = sadd.s32 %s474, 1
      %p478 = scmp.eq.s32.totalorder %s99, 1
      %p479 = scmp.ne.s32.totalorder %s474, %s476
      %p480 = scmp.eq.s32.totalorder %s99, 0
      %p481 = por %p479, %p480
      %p482 = scmp.ne.s32.totalorder %s474, %s476
      %p483 = scmp.eq.s32.totalorder %s104, 1
      %p484 = por %p482, %p483
      %p485 = scmp.ne.s32.totalorder %s476, %s477
      %p486 = scmp.eq.s32.totalorder %s104, 0
      %p487 = por %p485, %p486
      %p488 = scmp.ne.s32.totalorder %s476, %s477
      %p489 = scmp.eq.s32.totalorder %s105, 1
      %p490 = por %p488, %p489
      %p492 = scmp.ne.s32.totalorder %s477, %s491
      %p493 = scmp.eq.s32.totalorder %s105, 0
      %p494 = por %p492, %p493
      %s496 = sadd.s32 %s495, 1
      %p499 = scmp.eq.s32.totalorder %s99, 1
      %p500 = scmp.ne.s32.totalorder %s495, %s497
      %p501 = scmp.eq.s32.totalorder %s99, 0
      %p502 = por %p500, %p501
      %p503 = scmp.ne.s32.totalorder %s495, %s497
      %p504 = scmp.eq.s32.totalorder %s104, 1
      %p505 = por %p503, %p504
      %p506 = scmp.ne.s32.totalorder %s497, %s498
      %p507 = scmp.eq.s32.totalorder %s104, 0
      %p508 = por %p506, %p507
      %p509 = scmp.ne.s32.totalorder %s497, %s498
      %p510 = scmp.eq.s32.totalorder %s105, 1
      %p511 = por %p509, %p510
      %p513 = scmp.ne.s32.totalorder %s498, %s512
      %p514 = scmp.eq.s32.totalorder %s105, 0
      %p515 = por %p513, %p514
      %s517 = sadd.s32 %s516, 1
      %p520 = scmp.eq.s32.totalorder %s99, 1
      %p521 = scmp.ne.s32.totalorder %s516, %s518
      %p522 = scmp.eq.s32.totalorder %s99, 0
      %p523 = por %p521, %p522
      %p524 = scmp.ne.s32.totalorder %s516, %s518
      %p525 = scmp.eq.s32.totalorder %s104, 1
      %p526 = por %p524, %p525
      %p527 = scmp.ne.s32.totalorder %s518, %s519
      %p528 = scmp.eq.s32.totalorder %s104, 0
      %p529 = por %p527, %p528
      %p530 = scmp.ne.s32.totalorder %s518, %s519
      %p531 = scmp.eq.s32.totalorder %s105, 1
      %p532 = por %p530, %p531
      %p534 = scmp.ne.s32.totalorder %s519, %s533
      %p535 = scmp.eq.s32.totalorder %s105, 0
      %p536 = por %p534, %p535
      %s538 = sadd.s32 %s537, 1
      %p541 = scmp.eq.s32.totalorder %s99, 1
      %p542 = scmp.ne.s32.totalorder %s537, %s539
      %p543 = scmp.eq.s32.totalorder %s99, 0
      %p544 = por %p542, %p543
      %p545 = scmp.ne.s32.totalorder %s537, %s539
      %p546 = scmp.eq.s32.totalorder %s104, 1
      %p547 = por %p545, %p546
      %p548 = scmp.ne.s32.totalorder %s539, %s540
      %p549 = scmp.eq.s32.totalorder %s104, 0
      %p550 = por %p548, %p549
      %p551 = scmp.ne.s32.totalorder %s539, %s540
      %p552 = scmp.eq.s32.totalorder %s105, 1
      %p553 = por %p551, %p552
      %p555 = scmp.ne.s32.totalorder %s540, %s554
      %p556 = scmp.eq.s32.totalorder %s105, 0
      %p557 = por %p555, %p556
      %s559 = sadd.s32 %s558, 1
      %p562 = scmp.eq.s32.totalorder %s99, 1
      %p563 = scmp.ne.s32.totalorder %s558, %s560
      %p564 = scmp.eq.s32.totalorder %s99, 0
      %p565 = por %p563, %p564
      %p566 = scmp.ne.s32.totalorder %s558, %s560
      %p567 = scmp.eq.s32.totalorder %s104, 1
      %p568 = por %p566, %p567
      %p569 = scmp.ne.s32.totalorder %s560, %s561
      %p570 = scmp.eq.s32.totalorder %s104, 0
      %p571 = por %p569, %p570
      %p572 = scmp.ne.s32.totalorder %s560, %s561
      %p573 = scmp.eq.s32.totalorder %s105, 1
      %p574 = por %p572, %p573
      %p576 = scmp.ne.s32.totalorder %s561, %s575
      %p577 = scmp.eq.s32.totalorder %s105, 0
      %p578 = por %p576, %p577
      %s580 = sadd.s32 %s579, 1
      %p583 = scmp.eq.s32.totalorder %s99, 1
      %p584 = scmp.ne.s32.totalorder %s579, %s581
      %p585 = scmp.eq.s32.totalorder %s99, 0
      %p586 = por %p584, %p585
      %p587 = scmp.ne.s32.totalorder %s579, %s581
      %p588 = scmp.eq.s32.totalorder %s104, 1
      %p589 = por %p587, %p588
      %p590 = scmp.ne.s32.totalorder %s581, %s582
      %p591 = scmp.eq.s32.totalorder %s104, 0
      %p592 = por %p590, %p591
      %p593 = scmp.ne.s32.totalorder %s581, %s582
      %p594 = scmp.eq.s32.totalorder %s105, 1
      %p595 = por %p593, %p594
      %p597 = scmp.ne.s32.totalorder %s582, %s596
      %p598 = scmp.eq.s32.totalorder %s105, 0
      %p599 = por %p597, %p598
      %s601 = sadd.s32 %s600, 1
      %p604 = scmp.eq.s32.totalorder %s99, 1
      %p605 = scmp.ne.s32.totalorder %s600, %s602
      %p606 = scmp.eq.s32.totalorder %s99, 0
      %p607 = por %p605, %p606
      %p608 = scmp.ne.s32.totalorder %s600, %s602
      %p609 = scmp.eq.s32.totalorder %s104, 1
      %p610 = por %p608, %p609
      %p611 = scmp.ne.s32.totalorder %s602, %s603
      %p612 = scmp.eq.s32.totalorder %s104, 0
      %p613 = por %p611, %p612
      %p614 = scmp.ne.s32.totalorder %s602, %s603
      %p615 = scmp.eq.s32.totalorder %s105, 1
      %p616 = por %p614, %p615
      %p618 = scmp.ne.s32.totalorder %s603, %s617
      %p619 = scmp.eq.s32.totalorder %s105, 0
      %p620 = por %p618, %p619
      %s622 = sadd.s32 %s621, 1
      %p625 = scmp.eq.s32.totalorder %s99, 1
      %p626 = scmp.ne.s32.totalorder %s621, %s623
      %p627 = scmp.eq.s32.totalorder %s99, 0
      %p628 = por %p626, %p627
      %p629 = scmp.ne.s32.totalorder %s621, %s623
      %p630 = scmp.eq.s32.totalorder %s104, 1
      %p631 = por %p629, %p630
      %p632 = scmp.ne.s32.totalorder %s623, %s624
      %p633 = scmp.eq.s32.totalorder %s104, 0
      %p634 = por %p632, %p633
      %p635 = scmp.ne.s32.totalorder %s623, %s624
      %p636 = scmp.eq.s32.totalorder %s105, 1
      %p637 = por %p635, %p636
      %p639 = scmp.ne.s32.totalorder %s624, %s638
      %p640 = scmp.eq.s32.totalorder %s105, 0
      %p641 = por %p639, %p640
      %s643 = sadd.s32 %s642, 1
      %p646 = scmp.eq.s32.totalorder %s99, 1
      %p647 = scmp.ne.s32.totalorder %s642, %s644
      %p648 = scmp.eq.s32.totalorder %s99, 0
      %p649 = por %p647, %p648
      %p650 = scmp.ne.s32.totalorder %s642, %s644
      %p651 = scmp.eq.s32.totalorder %s104, 1
      %p652 = por %p650, %p651
      %p653 = scmp.ne.s32.totalorder %s644, %s645
      %p654 = scmp.eq.s32.totalorder %s104, 0
      %p655 = por %p653, %p654
      %p656 = scmp.ne.s32.totalorder %s644, %s645
      %p657 = scmp.eq.s32.totalorder %s105, 1
      %p658 = por %p656, %p657
      %p660 = scmp.ne.s32.totalorder %s645, %s659
      %p661 = scmp.eq.s32.totalorder %s105, 0
      %p662 = por %p660, %p661
      %s664 = sadd.s32 %s663, 1
      %p667 = scmp.eq.s32.totalorder %s99, 1
      %p668 = scmp.ne.s32.totalorder %s663, %s665
      %p669 = scmp.eq.s32.totalorder %s99, 0
      %p670 = por %p668, %p669
      %p671 = scmp.ne.s32.totalorder %s663, %s665
      %p672 = scmp.eq.s32.totalorder %s104, 1
      %p673 = por %p671, %p672
      %p674 = scmp.ne.s32.totalorder %s665, %s666
      %p675 = scmp.eq.s32.totalorder %s104, 0
      %p676 = por %p674, %p675
      %p677 = scmp.ne.s32.totalorder %s665, %s666
      %p678 = scmp.eq.s32.totalorder %s105, 1
      %p679 = por %p677, %p678
      %p681 = scmp.ne.s32.totalorder %s666, %s680
      %p682 = scmp.eq.s32.totalorder %s105, 0
      %p683 = por %p681, %p682
      %s685 = sadd.s32 %s684, 1
      %p688 = scmp.eq.s32.totalorder %s99, 1
      %p689 = scmp.ne.s32.totalorder %s684, %s686
      %p690 = scmp.eq.s32.totalorder %s99, 0
      %p691 = por %p689, %p690
      %p692 = scmp.ne.s32.totalorder %s684, %s686
      %p693 = scmp.eq.s32.totalorder %s104, 1
      %p694 = por %p692, %p693
      %p695 = scmp.ne.s32.totalorder %s686, %s687
      %p696 = scmp.eq.s32.totalorder %s104, 0
      %p697 = por %p695, %p696
      %p698 = scmp.ne.s32.totalorder %s686, %s687
      %p699 = scmp.eq.s32.totalorder %s105, 1
      %p700 = por %p698, %p699
      %p702 = scmp.ne.s32.totalorder %s687, %s701
      %p703 = scmp.eq.s32.totalorder %s105, 0
      %p704 = por %p702, %p703
      %s706 = sadd.s32 %s705, 1
      %p709 = scmp.eq.s32.totalorder %s99, 1
      %p710 = scmp.ne.s32.totalorder %s705, %s707
      %p711 = scmp.eq.s32.totalorder %s99, 0
      %p712 = por %p710, %p711
      %p713 = scmp.ne.s32.totalorder %s705, %s707
      %p714 = scmp.eq.s32.totalorder %s104, 1
      %p715 = por %p713, %p714
      %p716 = scmp.ne.s32.totalorder %s707, %s708
      %p717 = scmp.eq.s32.totalorder %s104, 0
      %p718 = por %p716, %p717
      %p719 = scmp.ne.s32.totalorder %s707, %s708
      %p720 = scmp.eq.s32.totalorder %s105, 1
      %p721 = por %p719, %p720
      %p723 = scmp.ne.s32.totalorder %s708, %s722
      %p724 = scmp.eq.s32.totalorder %s105, 0
      %p725 = por %p723, %p724
      %s727 = sadd.s32 %s726, 1
      %p730 = scmp.eq.s32.totalorder %s99, 1
      %p731 = scmp.ne.s32.totalorder %s726, %s728
      %p732 = scmp.eq.s32.totalorder %s99, 0
      %p733 = por %p731, %p732
      %p734 = scmp.ne.s32.totalorder %s726, %s728
      %p735 = scmp.eq.s32.totalorder %s104, 1
      %p736 = por %p734, %p735
      %p737 = scmp.ne.s32.totalorder %s728, %s729
      %p738 = scmp.eq.s32.totalorder %s104, 0
      %p739 = por %p737, %p738
      %p740 = scmp.ne.s32.totalorder %s728, %s729
      %p741 = scmp.eq.s32.totalorder %s105, 1
      %p742 = por %p740, %p741
      %p744 = scmp.ne.s32.totalorder %s729, %s743
      %p745 = scmp.eq.s32.totalorder %s105, 0
      %p746 = por %p744, %p745
      %s748 = sadd.s32 %s747, 1
      %p751 = scmp.eq.s32.totalorder %s99, 1
      %p752 = scmp.ne.s32.totalorder %s747, %s749
      %p753 = scmp.eq.s32.totalorder %s99, 0
      %p754 = por %p752, %p753
      %p755 = scmp.ne.s32.totalorder %s747, %s749
      %p756 = scmp.eq.s32.totalorder %s104, 1
      %p757 = por %p755, %p756
      %p758 = scmp.ne.s32.totalorder %s749, %s750
      %p759 = scmp.eq.s32.totalorder %s104, 0
      %p760 = por %p758, %p759
      %p761 = scmp.ne.s32.totalorder %s749, %s750
      %p762 = scmp.eq.s32.totalorder %s105, 1
      %p763 = por %p761, %p762
      %p765 = scmp.ne.s32.totalorder %s750, %s764
      %p766 = scmp.eq.s32.totalorder %s105, 0
      %p767 = por %p765, %p766
      %s769 = sadd.s32 %s768, 1
      %p772 = scmp.eq.s32.totalorder %s99, 1
      %p773 = scmp.ne.s32.totalorder %s768, %s770
      %p774 = scmp.eq.s32.totalorder %s99, 0
      %p775 = por %p773, %p774
      %p776 = scmp.ne.s32.totalorder %s768, %s770
      %p777 = scmp.eq.s32.totalorder %s104, 1
      %p778 = por %p776, %p777
      %p779 = scmp.ne.s32.totalorder %s770, %s771
      %p780 = scmp.eq.s32.totalorder %s104, 0
      %p781 = por %p779, %p780
      %p782 = scmp.ne.s32.totalorder %s770, %s771
      %p783 = scmp.eq.s32.totalorder %s105, 1
      %p784 = por %p782, %p783
      %p786 = scmp.ne.s32.totalorder %s771, %s785
      %p787 = scmp.eq.s32.totalorder %s105, 0
      %p788 = por %p786, %p787
      %s790 = sadd.s32 %s789, 1
      %p793 = scmp.eq.s32.totalorder %s99, 1
      %p794 = scmp.ne.s32.totalorder %s789, %s791
      %p795 = scmp.eq.s32.totalorder %s99, 0
      %p796 = por %p794, %p795
      %p797 = scmp.ne.s32.totalorder %s789, %s791
      %p798 = scmp.eq.s32.totalorder %s104, 1
      %p799 = por %p797, %p798
      %p800 = scmp.ne.s32.totalorder %s791, %s792
      %p801 = scmp.eq.s32.totalorder %s104, 0
      %p802 = por %p800, %p801
      %p803 = scmp.ne.s32.totalorder %s791, %s792
      %p804 = scmp.eq.s32.totalorder %s105, 1
      %p805 = por %p803, %p804
      %p807 = scmp.ne.s32.totalorder %s792, %s806
      %p808 = scmp.eq.s32.totalorder %s105, 0
      %p809 = por %p807, %p808
      %s811 = sadd.s32 %s810, 1
      %p814 = scmp.eq.s32.totalorder %s99, 1
      %p815 = scmp.ne.s32.totalorder %s810, %s812
      %p816 = scmp.eq.s32.totalorder %s99, 0
      %p817 = por %p815, %p816
      %p818 = scmp.ne.s32.totalorder %s810, %s812
      %p819 = scmp.eq.s32.totalorder %s104, 1
      %p820 = por %p818, %p819
      %p821 = scmp.ne.s32.totalorder %s812, %s813
      %p822 = scmp.eq.s32.totalorder %s104, 0
      %p823 = por %p821, %p822
      %p824 = scmp.ne.s32.totalorder %s812, %s813
      %p825 = scmp.eq.s32.totalorder %s105, 1
      %p826 = por %p824, %p825
      %p828 = scmp.ne.s32.totalorder %s813, %s827
      %p829 = scmp.eq.s32.totalorder %s105, 0
      %p830 = por %p828, %p829
      %s832 = sadd.s32 %s831, 1
      %p835 = scmp.eq.s32.totalorder %s99, 1
      %p836 = scmp.ne.s32.totalorder %s831, %s833
      %p837 = scmp.eq.s32.totalorder %s99, 0
      %p838 = por %p836, %p837
      %p839 = scmp.ne.s32.totalorder %s831, %s833
      %p840 = scmp.eq.s32.totalorder %s104, 1
      %p841 = por %p839, %p840
      %p842 = scmp.ne.s32.totalorder %s833, %s834
      %p843 = scmp.eq.s32.totalorder %s104, 0
      %p844 = por %p842, %p843
      %p845 = scmp.ne.s32.totalorder %s833, %s834
      %p846 = scmp.eq.s32.totalorder %s105, 1
      %p847 = por %p845, %p846
      %p849 = scmp.ne.s32.totalorder %s834, %s848
      %p850 = scmp.eq.s32.totalorder %s105, 0
      %p851 = por %p849, %p850
      %s853 = sadd.s32 %s852, 1
      %p856 = scmp.eq.s32.totalorder %s99, 1
      %p857 = scmp.ne.s32.totalorder %s852, %s854
      %p858 = scmp.eq.s32.totalorder %s99, 0
      %p859 = por %p857, %p858
      %p860 = scmp.ne.s32.totalorder %s852, %s854
      %p861 = scmp.eq.s32.totalorder %s104, 1
      %p862 = por %p860, %p861
      %p863 = scmp.ne.s32.totalorder %s854, %s855
      %p864 = scmp.eq.s32.totalorder %s104, 0
      %p865 = por %p863, %p864
      %p866 = scmp.ne.s32.totalorder %s854, %s855
      %p867 = scmp.eq.s32.totalorder %s105, 1
      %p868 = por %p866, %p867
      %p870 = scmp.ne.s32.totalorder %s855, %s869
      %p871 = scmp.eq.s32.totalorder %s105, 0
      %p872 = por %p870, %p871
      %s874 = sadd.s32 %s873, 1
      %p877 = scmp.eq.s32.totalorder %s99, 1
      %p878 = scmp.ne.s32.totalorder %s873, %s875
      %p879 = scmp.eq.s32.totalorder %s99, 0
      %p880 = por %p878, %p879
      %p881 = scmp.ne.s32.totalorder %s873, %s875
      %p882 = scmp.eq.s32.totalorder %s104, 1
      %p883 = por %p881, %p882
      %p884 = scmp.ne.s32.totalorder %s875, %s876
      %p885 = scmp.eq.s32.totalorder %s104, 0
      %p886 = por %p884, %p885
      %p887 = scmp.ne.s32.totalorder %s875, %s876
      %p888 = scmp.eq.s32.totalorder %s105, 1
      %p889 = por %p887, %p888
      %p891 = scmp.ne.s32.totalorder %s876, %s890
      %p892 = scmp.eq.s32.totalorder %s105, 0
      %p893 = por %p891, %p892
      %s895 = sadd.s32 %s894, 1
      %p898 = scmp.eq.s32.totalorder %s99, 1
      %p899 = scmp.ne.s32.totalorder %s894, %s896
      %p900 = scmp.eq.s32.totalorder %s99, 0
      %p901 = por %p899, %p900
      %p902 = scmp.ne.s32.totalorder %s894, %s896
      %p903 = scmp.eq.s32.totalorder %s104, 1
      %p904 = por %p902, %p903
      %p905 = scmp.ne.s32.totalorder %s896, %s897
      %p906 = scmp.eq.s32.totalorder %s104, 0
      %p907 = por %p905, %p906
      %p908 = scmp.ne.s32.totalorder %s896, %s897
      %p909 = scmp.eq.s32.totalorder %s105, 1
      %p910 = por %p908, %p909
      %p912 = scmp.ne.s32.totalorder %s897, %s911
      %p913 = scmp.eq.s32.totalorder %s105, 0
      %p914 = por %p912, %p913
      %s916 = sadd.s32 %s915, 1
      %p919 = scmp.eq.s32.totalorder %s99, 1
      %p920 = scmp.ne.s32.totalorder %s915, %s917
      %p921 = scmp.eq.s32.totalorder %s99, 0
      %p922 = por %p920, %p921
      %p923 = scmp.ne.s32.totalorder %s915, %s917
      %p924 = scmp.eq.s32.totalorder %s104, 1
      %p925 = por %p923, %p924
      %p926 = scmp.ne.s32.totalorder %s917, %s918
      %p927 = scmp.eq.s32.totalorder %s104, 0
      %p928 = por %p926, %p927
      %p929 = scmp.ne.s32.totalorder %s917, %s918
      %p930 = scmp.eq.s32.totalorder %s105, 1
      %p931 = por %p929, %p930
      %p933 = scmp.ne.s32.totalorder %s918, %s932
      %p934 = scmp.eq.s32.totalorder %s105, 0
      %p935 = por %p933, %p934
      %s937 = sadd.s32 %s936, 1
      %p940 = scmp.eq.s32.totalorder %s99, 1
      %p941 = scmp.ne.s32.totalorder %s936, %s938
      %p942 = scmp.eq.s32.totalorder %s99, 0
      %p943 = por %p941, %p942
      %p944 = scmp.ne.s32.totalorder %s936, %s938
      %p945 = scmp.eq.s32.totalorder %s104, 1
      %p946 = por %p944, %p945
      %p947 = scmp.ne.s32.totalorder %s938, %s939
      %p948 = scmp.eq.s32.totalorder %s104, 0
      %p949 = por %p947, %p948
      %p950 = scmp.ne.s32.totalorder %s938, %s939
      %p951 = scmp.eq.s32.totalorder %s105, 1
      %p952 = por %p950, %p951
      %p954 = scmp.ne.s32.totalorder %s939, %s953
      %p955 = scmp.eq.s32.totalorder %s105, 0
      %p956 = por %p954, %p955
      %s958 = sadd.s32 %s957, 1
      %p961 = scmp.eq.s32.totalorder %s99, 1
      %p962 = scmp.ne.s32.totalorder %s957, %s959
      %p963 = scmp.eq.s32.totalorder %s99, 0
      %p964 = por %p962, %p963
      %p965 = scmp.ne.s32.totalorder %s957, %s959
      %p966 = scmp.eq.s32.totalorder %s104, 1
      %p967 = por %p965, %p966
      %p968 = scmp.ne.s32.totalorder %s959, %s960
      %p969 = scmp.eq.s32.totalorder %s104, 0
      %p970 = por %p968, %p969
      %p971 = scmp.ne.s32.totalorder %s959, %s960
      %p972 = scmp.eq.s32.totalorder %s105, 1
      %p973 = por %p971, %p972
      %p975 = scmp.ne.s32.totalorder %s960, %s974
      %p976 = scmp.eq.s32.totalorder %s105, 0
      %p977 = por %p975, %p976
      %s979 = sadd.s32 %s978, 1
      %p982 = scmp.eq.s32.totalorder %s99, 1
      %p983 = scmp.ne.s32.totalorder %s978, %s980
      %p984 = scmp.eq.s32.totalorder %s99, 0
      %p985 = por %p983, %p984
      %p986 = scmp.ne.s32.totalorder %s978, %s980
      %p987 = scmp.eq.s32.totalorder %s104, 1
      %p988 = por %p986, %p987
      %p989 = scmp.ne.s32.totalorder %s980, %s981
      %p990 = scmp.eq.s32.totalorder %s104, 0
      %p991 = por %p989, %p990
      %p992 = scmp.ne.s32.totalorder %s980, %s981
      %p993 = scmp.eq.s32.totalorder %s105, 1
      %p994 = por %p992, %p993
      %p996 = scmp.ne.s32.totalorder %s981, %s995
      %p997 = scmp.eq.s32.totalorder %s105, 0
      %p998 = por %p996, %p997
      %s1000 = sadd.s32 %s999, 1
      %p1003 = scmp.eq.s32.totalorder %s99, 1
      %p1004 = scmp.ne.s32.totalorder %s999, %s1001
      %p1005 = scmp.eq.s32.totalorder %s99, 0
      %p1006 = por %p1004, %p1005
      %p1007 = scmp.ne.s32.totalorder %s999, %s1001
      %p1008 = scmp.eq.s32.totalorder %s104, 1
      %p1009 = por %p1007, %p1008
      %p1010 = scmp.ne.s32.totalorder %s1001, %s1002
      %p1011 = scmp.eq.s32.totalorder %s104, 0
      %p1012 = por %p1010, %p1011
      %p1013 = scmp.ne.s32.totalorder %s1001, %s1002
      %p1014 = scmp.eq.s32.totalorder %s105, 1
      %p1015 = por %p1013, %p1014
      %p1017 = scmp.ne.s32.totalorder %s1002, %s1016
      %p1018 = scmp.eq.s32.totalorder %s105, 0
      %p1019 = por %p1017, %p1018
      %s1021 = sadd.s32 %s1020, 1
      %p1024 = scmp.eq.s32.totalorder %s99, 1
      %p1025 = scmp.ne.s32.totalorder %s1020, %s1022
      %p1026 = scmp.eq.s32.totalorder %s99, 0
      %p1027 = por %p1025, %p1026
      %p1028 = scmp.ne.s32.totalorder %s1020, %s1022
      %p1029 = scmp.eq.s32.totalorder %s104, 1
      %p1030 = por %p1028, %p1029
      %p1031 = scmp.ne.s32.totalorder %s1022, %s1023
      %p1032 = scmp.eq.s32.totalorder %s104, 0
      %p1033 = por %p1031, %p1032
      %p1034 = scmp.ne.s32.totalorder %s1022, %s1023
      %p1035 = scmp.eq.s32.totalorder %s105, 1
      %p1036 = por %p1034, %p1035
      %p1038 = scmp.ne.s32.totalorder %s1023, %s1037
      %p1039 = scmp.eq.s32.totalorder %s105, 0
      %p1040 = por %p1038, %p1039
      %s1042 = sadd.s32 %s1041, 1
      %p1045 = scmp.eq.s32.totalorder %s99, 1
      %p1046 = scmp.ne.s32.totalorder %s1041, %s1043
      %p1047 = scmp.eq.s32.totalorder %s99, 0
      %p1048 = por %p1046, %p1047
      %p1049 = scmp.ne.s32.totalorder %s1041, %s1043
      %p1050 = scmp.eq.s32.totalorder %s104, 1
      %p1051 = por %p1049, %p1050
      %p1052 = scmp.ne.s32.totalorder %s1043, %s1044
      %p1053 = scmp.eq.s32.totalorder %s104, 0
      %p1054 = por %p1052, %p1053
      %p1055 = scmp.ne.s32.totalorder %s1043, %s1044
      %p1056 = scmp.eq.s32.totalorder %s105, 1
      %p1057 = por %p1055, %p1056
      %p1059 = scmp.ne.s32.totalorder %s1044, %s1058
      %p1060 = scmp.eq.s32.totalorder %s105, 0
      %p1061 = por %p1059, %p1060
      %s1062 = ssub.s32 %s99, %s106
      %p1063 = scmp.eq.s32.totalorder %s1062, 0
      %s1065 = sadd.s32 %s1064, 1
      %s1066 = scalar_select %p1063, %s1064, %s1065
      %p1069 = pneg %p1063
      %p1070 = scmp.eq.s32.totalorder %s99, 1
      %p1071 = por %p1069, %p1070
      %p1072 = scmp.ne.s32.totalorder %s1064, %s1067
      %p1073 = scmp.eq.s32.totalorder %s99, 0
      %p1074 = por %p1072, %p1073
      %p1075 = scmp.ne.s32.totalorder %s1064, %s1067
      %p1076 = scmp.eq.s32.totalorder %s104, 1
      %p1077 = por %p1075, %p1076
      %p1078 = scmp.ne.s32.totalorder %s1067, %s1068
      %p1079 = scmp.eq.s32.totalorder %s104, 0
      %p1080 = por %p1078, %p1079
      %p1081 = scmp.ne.s32.totalorder %s1067, %s1068
      %p1082 = scmp.eq.s32.totalorder %s105, 1
      %p1083 = por %p1081, %p1082
      %p1085 = scmp.ne.s32.totalorder %s1068, %s1084
      %p1086 = scmp.eq.s32.totalorder %s105, 0
      %p1087 = por %p1085, %p1086
      %p1088 = scmp.le.s32.totalorder 1, %s99
      %p1089 = scmp.lt.s32.totalorder %s99, 3
      %p1090 = pnand %p1088, %p1089
      %p1091 = pneg %p1090
      // Predicated region
      $region9: #{vqaclip_forward.1} parent=5 // pred_check
        _
      $region10: #{vqaclip_forward.1} parent=5 // pred_check_branch
        %1093 = sbr.rel (%p1090) target = $region12
      $region11: #{vqaclip_forward.1} parent=5 // pred_region
        %s1094 = ssub.s32 %s99, 1
        // Predicated region
        $region13: #{vqaclip_forward.1} parent=11 // pred_check
          %p1095 = pneg %p172
        $region14: #{vqaclip_forward.1} parent=11 // pred_check_branch
          %1097 = sbr.rel (%p1095) target = $region16
        $region15: #{vqaclip_forward.1} parent=11 // pred_region
          _
        $region16: #{vqaclip_forward.1} parent=11 // pred_fallthru
          _
        // Predicated region
        $region17: #{vqaclip_forward.1} parent=11 // pred_check
          %p1098 = pneg %p193
        $region18: #{vqaclip_forward.1} parent=11 // pred_check_branch
          %1100 = sbr.rel (%p1098) target = $region20
        $region19: #{vqaclip_forward.1} parent=11 // pred_region
          _
        $region20: #{vqaclip_forward.1} parent=11 // pred_fallthru
          _
        // Predicated region
        $region21: #{vqaclip_forward.1} parent=11 // pred_check
          %p1101 = pneg %p214
        $region22: #{vqaclip_forward.1} parent=11 // pred_check_branch
          %1103 = sbr.rel (%p1101) target = $region24
        $region23: #{vqaclip_forward.1} parent=11 // pred_region
          _
        $region24: #{vqaclip_forward.1} parent=11 // pred_fallthru
          _
        // Predicated region
        $region25: #{vqaclip_forward.1} parent=11 // pred_check
          %p1104 = pneg %p235
        $region26: #{vqaclip_forward.1} parent=11 // pred_check_branch
          %1106 = sbr.rel (%p1104) target = $region28
        $region27: #{vqaclip_forward.1} parent=11 // pred_region
          _
        $region28: #{vqaclip_forward.1} parent=11 // pred_fallthru
          _
        // Predicated region
        $region29: #{vqaclip_forward.1} parent=11 // pred_check
          %p1107 = pneg %p256
        $region30: #{vqaclip_forward.1} parent=11 // pred_check_branch
          %1109 = sbr.rel (%p1107) target = $region32
        $region31: #{vqaclip_forward.1} parent=11 // pred_region
          _
        $region32: #{vqaclip_forward.1} parent=11 // pred_fallthru
          _
        // Predicated region
        $region33: #{vqaclip_forward.1} parent=11 // pred_check
          %p1110 = pneg %p277
        $region34: #{vqaclip_forward.1} parent=11 // pred_check_branch
          %1112 = sbr.rel (%p1110) target = $region36
        $region35: #{vqaclip_forward.1} parent=11 // pred_region
          _
        $region36: #{vqaclip_forward.1} parent=11 // pred_fallthru
          _
        // Predicated region
        $region37: #{vqaclip_forward.1} parent=11 // pred_check
          %p1113 = pneg %p298
        $region38: #{vqaclip_forward.1} parent=11 // pred_check_branch
          %1115 = sbr.rel (%p1113) target = $region40
        $region39: #{vqaclip_forward.1} parent=11 // pred_region
          _
        $region40: #{vqaclip_forward.1} parent=11 // pred_fallthru
          _
        // Predicated region
        $region41: #{vqaclip_forward.1} parent=11 // pred_check
          %p1116 = pneg %p319
        $region42: #{vqaclip_forward.1} parent=11 // pred_check_branch
          %1118 = sbr.rel (%p1116) target = $region44
        $region43: #{vqaclip_forward.1} parent=11 // pred_region
          _
        $region44: #{vqaclip_forward.1} parent=11 // pred_fallthru
          _
        // Predicated region
        $region45: #{vqaclip_forward.1} parent=11 // pred_check
          %p1119 = pneg %p340
        $region46: #{vqaclip_forward.1} parent=11 // pred_check_branch
          %1121 = sbr.rel (%p1119) target = $region48
        $region47: #{vqaclip_forward.1} parent=11 // pred_region
          _
        $region48: #{vqaclip_forward.1} parent=11 // pred_fallthru
          _
        // Predicated region
        $region49: #{vqaclip_forward.1} parent=11 // pred_check
          %p1122 = pneg %p361
        $region50: #{vqaclip_forward.1} parent=11 // pred_check_branch
          %1124 = sbr.rel (%p1122) target = $region52
        $region51: #{vqaclip_forward.1} parent=11 // pred_region
          _
        $region52: #{vqaclip_forward.1} parent=11 // pred_fallthru
          _
        // Predicated region
        $region53: #{vqaclip_forward.1} parent=11 // pred_check
          %p1125 = pneg %p382
        $region54: #{vqaclip_forward.1} parent=11 // pred_check_branch
          %1127 = sbr.rel (%p1125) target = $region56
        $region55: #{vqaclip_forward.1} parent=11 // pred_region
          _
        $region56: #{vqaclip_forward.1} parent=11 // pred_fallthru
          _
        // Predicated region
        $region57: #{vqaclip_forward.1} parent=11 // pred_check
          %p1128 = pneg %p403
        $region58: #{vqaclip_forward.1} parent=11 // pred_check_branch
          %1130 = sbr.rel (%p1128) target = $region60
        $region59: #{vqaclip_forward.1} parent=11 // pred_region
          _
        $region60: #{vqaclip_forward.1} parent=11 // pred_fallthru
          _
        // Predicated region
        $region61: #{vqaclip_forward.1} parent=11 // pred_check
          %p1131 = pneg %p424
        $region62: #{vqaclip_forward.1} parent=11 // pred_check_branch
          %1133 = sbr.rel (%p1131) target = $region64
        $region63: #{vqaclip_forward.1} parent=11 // pred_region
          _
        $region64: #{vqaclip_forward.1} parent=11 // pred_fallthru
          _
        // Predicated region
        $region65: #{vqaclip_forward.1} parent=11 // pred_check
          %p1134 = pneg %p445
        $region66: #{vqaclip_forward.1} parent=11 // pred_check_branch
          %1136 = sbr.rel (%p1134) target = $region68
        $region67: #{vqaclip_forward.1} parent=11 // pred_region
          _
        $region68: #{vqaclip_forward.1} parent=11 // pred_fallthru
          _
        // Predicated region
        $region69: #{vqaclip_forward.1} parent=11 // pred_check
          %p1137 = pneg %p466
        $region70: #{vqaclip_forward.1} parent=11 // pred_check_branch
          %1139 = sbr.rel (%p1137) target = $region72
        $region71: #{vqaclip_forward.1} parent=11 // pred_region
          _
        $region72: #{vqaclip_forward.1} parent=11 // pred_fallthru
          _
        // Predicated region
        $region73: #{vqaclip_forward.1} parent=11 // pred_check
          %p1140 = pneg %p487
        $region74: #{vqaclip_forward.1} parent=11 // pred_check_branch
          %1142 = sbr.rel (%p1140) target = $region76
        $region75: #{vqaclip_forward.1} parent=11 // pred_region
          _
        $region76: #{vqaclip_forward.1} parent=11 // pred_fallthru
          _
        // Predicated region
        $region77: #{vqaclip_forward.1} parent=11 // pred_check
          %p1143 = pneg %p508
        $region78: #{vqaclip_forward.1} parent=11 // pred_check_branch
          %1145 = sbr.rel (%p1143) target = $region80
        $region79: #{vqaclip_forward.1} parent=11 // pred_region
          _
        $region80: #{vqaclip_forward.1} parent=11 // pred_fallthru
          _
        // Predicated region
        $region81: #{vqaclip_forward.1} parent=11 // pred_check
          %p1146 = pneg %p529
        $region82: #{vqaclip_forward.1} parent=11 // pred_check_branch
          %1148 = sbr.rel (%p1146) target = $region84
        $region83: #{vqaclip_forward.1} parent=11 // pred_region
          _
        $region84: #{vqaclip_forward.1} parent=11 // pred_fallthru
          _
        // Predicated region
        $region85: #{vqaclip_forward.1} parent=11 // pred_check
          %p1149 = pneg %p550
        $region86: #{vqaclip_forward.1} parent=11 // pred_check_branch
          %1151 = sbr.rel (%p1149) target = $region88
        $region87: #{vqaclip_forward.1} parent=11 // pred_region
          _
        $region88: #{vqaclip_forward.1} parent=11 // pred_fallthru
          _
        // Predicated region
        $region89: #{vqaclip_forward.1} parent=11 // pred_check
          %p1152 = pneg %p571
        $region90: #{vqaclip_forward.1} parent=11 // pred_check_branch
          %1154 = sbr.rel (%p1152) target = $region92
        $region91: #{vqaclip_forward.1} parent=11 // pred_region
          _
        $region92: #{vqaclip_forward.1} parent=11 // pred_fallthru
          _
        // Predicated region
        $region93: #{vqaclip_forward.1} parent=11 // pred_check
          %p1155 = pneg %p592
        $region94: #{vqaclip_forward.1} parent=11 // pred_check_branch
          %1157 = sbr.rel (%p1155) target = $region96
        $region95: #{vqaclip_forward.1} parent=11 // pred_region
          _
        $region96: #{vqaclip_forward.1} parent=11 // pred_fallthru
          _
        // Predicated region
        $region97: #{vqaclip_forward.1} parent=11 // pred_check
          %p1158 = pneg %p613
        $region98: #{vqaclip_forward.1} parent=11 // pred_check_branch
          %1160 = sbr.rel (%p1158) target = $region100
        $region99: #{vqaclip_forward.1} parent=11 // pred_region
          _
        $region100: #{vqaclip_forward.1} parent=11 // pred_fallthru
          _
        // Predicated region
        $region101: #{vqaclip_forward.1} parent=11 // pred_check
          %p1161 = pneg %p634
        $region102: #{vqaclip_forward.1} parent=11 // pred_check_branch
          %1163 = sbr.rel (%p1161) target = $region104
        $region103: #{vqaclip_forward.1} parent=11 // pred_region
          _
        $region104: #{vqaclip_forward.1} parent=11 // pred_fallthru
          _
        // Predicated region
        $region105: #{vqaclip_forward.1} parent=11 // pred_check
          %p1164 = pneg %p655
        $region106: #{vqaclip_forward.1} parent=11 // pred_check_branch
          %1166 = sbr.rel (%p1164) target = $region108
        $region107: #{vqaclip_forward.1} parent=11 // pred_region
          _
        $region108: #{vqaclip_forward.1} parent=11 // pred_fallthru
          _
        // Predicated region
        $region109: #{vqaclip_forward.1} parent=11 // pred_check
          %p1167 = pneg %p676
        $region110: #{vqaclip_forward.1} parent=11 // pred_check_branch
          %1169 = sbr.rel (%p1167) target = $region112
        $region111: #{vqaclip_forward.1} parent=11 // pred_region
          _
        $region112: #{vqaclip_forward.1} parent=11 // pred_fallthru
          _
        // Predicated region
        $region113: #{vqaclip_forward.1} parent=11 // pred_check
          %p1170 = pneg %p697
        $region114: #{vqaclip_forward.1} parent=11 // pred_check_branch
          %1172 = sbr.rel (%p1170) target = $region116
        $region115: #{vqaclip_forward.1} parent=11 // pred_region
          _
        $region116: #{vqaclip_forward.1} parent=11 // pred_fallthru
          _
        // Predicated region
        $region117: #{vqaclip_forward.1} parent=11 // pred_check
          %p1173 = pneg %p718
        $region118: #{vqaclip_forward.1} parent=11 // pred_check_branch
          %1175 = sbr.rel (%p1173) target = $region120
        $region119: #{vqaclip_forward.1} parent=11 // pred_region
          _
        $region120: #{vqaclip_forward.1} parent=11 // pred_fallthru
          _
        // Predicated region
        $region121: #{vqaclip_forward.1} parent=11 // pred_check
          %p1176 = pneg %p739
        $region122: #{vqaclip_forward.1} parent=11 // pred_check_branch
          %1178 = sbr.rel (%p1176) target = $region124
        $region123: #{vqaclip_forward.1} parent=11 // pred_region
          _
        $region124: #{vqaclip_forward.1} parent=11 // pred_fallthru
          _
        // Predicated region
        $region125: #{vqaclip_forward.1} parent=11 // pred_check
          %p1179 = pneg %p760
        $region126: #{vqaclip_forward.1} parent=11 // pred_check_branch
          %1181 = sbr.rel (%p1179) target = $region128
        $region127: #{vqaclip_forward.1} parent=11 // pred_region
          _
        $region128: #{vqaclip_forward.1} parent=11 // pred_fallthru
          _
        // Predicated region
        $region129: #{vqaclip_forward.1} parent=11 // pred_check
          %p1182 = pneg %p781
        $region130: #{vqaclip_forward.1} parent=11 // pred_check_branch
          %1184 = sbr.rel (%p1182) target = $region132
        $region131: #{vqaclip_forward.1} parent=11 // pred_region
          _
        $region132: #{vqaclip_forward.1} parent=11 // pred_fallthru
          _
        // Predicated region
        $region133: #{vqaclip_forward.1} parent=11 // pred_check
          %p1185 = pneg %p802
        $region134: #{vqaclip_forward.1} parent=11 // pred_check_branch
          %1187 = sbr.rel (%p1185) target = $region136
        $region135: #{vqaclip_forward.1} parent=11 // pred_region
          _
        $region136: #{vqaclip_forward.1} parent=11 // pred_fallthru
          _
        // Predicated region
        $region137: #{vqaclip_forward.1} parent=11 // pred_check
          %p1188 = pneg %p823
        $region138: #{vqaclip_forward.1} parent=11 // pred_check_branch
          %1190 = sbr.rel (%p1188) target = $region140
        $region139: #{vqaclip_forward.1} parent=11 // pred_region
          _
        $region140: #{vqaclip_forward.1} parent=11 // pred_fallthru
          _
        // Predicated region
        $region141: #{vqaclip_forward.1} parent=11 // pred_check
          %p1191 = pneg %p844
        $region142: #{vqaclip_forward.1} parent=11 // pred_check_branch
          %1193 = sbr.rel (%p1191) target = $region144
        $region143: #{vqaclip_forward.1} parent=11 // pred_region
          _
        $region144: #{vqaclip_forward.1} parent=11 // pred_fallthru
          _
        // Predicated region
        $region145: #{vqaclip_forward.1} parent=11 // pred_check
          %p1194 = pneg %p865
        $region146: #{vqaclip_forward.1} parent=11 // pred_check_branch
          %1196 = sbr.rel (%p1194) target = $region148
        $region147: #{vqaclip_forward.1} parent=11 // pred_region
          _
        $region148: #{vqaclip_forward.1} parent=11 // pred_fallthru
          _
        // Predicated region
        $region149: #{vqaclip_forward.1} parent=11 // pred_check
          %p1197 = pneg %p886
        $region150: #{vqaclip_forward.1} parent=11 // pred_check_branch
          %1199 = sbr.rel (%p1197) target = $region152
        $region151: #{vqaclip_forward.1} parent=11 // pred_region
          _
        $region152: #{vqaclip_forward.1} parent=11 // pred_fallthru
          _
        // Predicated region
        $region153: #{vqaclip_forward.1} parent=11 // pred_check
          %p1200 = pneg %p907
        $region154: #{vqaclip_forward.1} parent=11 // pred_check_branch
          %1202 = sbr.rel (%p1200) target = $region156
        $region155: #{vqaclip_forward.1} parent=11 // pred_region
          _
        $region156: #{vqaclip_forward.1} parent=11 // pred_fallthru
          _
        // Predicated region
        $region157: #{vqaclip_forward.1} parent=11 // pred_check
          %p1203 = pneg %p928
        $region158: #{vqaclip_forward.1} parent=11 // pred_check_branch
          %1205 = sbr.rel (%p1203) target = $region160
        $region159: #{vqaclip_forward.1} parent=11 // pred_region
          _
        $region160: #{vqaclip_forward.1} parent=11 // pred_fallthru
          _
        // Predicated region
        $region161: #{vqaclip_forward.1} parent=11 // pred_check
          %p1206 = pneg %p949
        $region162: #{vqaclip_forward.1} parent=11 // pred_check_branch
          %1208 = sbr.rel (%p1206) target = $region164
        $region163: #{vqaclip_forward.1} parent=11 // pred_region
          _
        $region164: #{vqaclip_forward.1} parent=11 // pred_fallthru
          _
        // Predicated region
        $region165: #{vqaclip_forward.1} parent=11 // pred_check
          %p1209 = pneg %p970
        $region166: #{vqaclip_forward.1} parent=11 // pred_check_branch
          %1211 = sbr.rel (%p1209) target = $region168
        $region167: #{vqaclip_forward.1} parent=11 // pred_region
          _
        $region168: #{vqaclip_forward.1} parent=11 // pred_fallthru
          _
        // Predicated region
        $region169: #{vqaclip_forward.1} parent=11 // pred_check
          %p1212 = pneg %p991
        $region170: #{vqaclip_forward.1} parent=11 // pred_check_branch
          %1214 = sbr.rel (%p1212) target = $region172
        $region171: #{vqaclip_forward.1} parent=11 // pred_region
          %1216 = vsyncadd [#allocation4], 0
          %s1218 = sshll.u32 %s83, 4
          %s1219 = int_to_ptr.hbm [resolvable:$true] %s1218
          %s1220 = sshll.u32 [#allocation3], 4
          %s1221 = int_to_ptr.vmem [resolvable:$true] %s1220
          %1223 = dma.hbm_to_vmem [thread:$0]  %s1219, 16, %s1221, [#allocation4]
        $region172: #{vqaclip_forward.1} parent=11 // pred_fallthru
          _
        // Predicated region
        $region173: #{vqaclip_forward.1} parent=11 // pred_check
          %p1224 = pneg %p1012
        $region174: #{vqaclip_forward.1} parent=11 // pred_check_branch
          %1226 = sbr.rel (%p1224) target = $region176
        $region175: #{vqaclip_forward.1} parent=11 // pred_region
          %1228 = vsyncadd [#allocation6], 0
          %s1230 = sshll.u32 %s85, 4
          %s1231 = int_to_ptr.hbm [resolvable:$true] %s1230
          %s1232 = sshll.u32 [#allocation5], 4
          %s1233 = int_to_ptr.vmem [resolvable:$true] %s1232
          %1235 = dma.hbm_to_vmem [thread:$0]  %s1231, 16, %s1233, [#allocation6]
        $region176: #{vqaclip_forward.1} parent=11 // pred_fallthru
          _
        // Predicated region
        $region177: #{vqaclip_forward.1} parent=11 // pred_check
          %p1236 = pneg %p1033
        $region178: #{vqaclip_forward.1} parent=11 // pred_check_branch
          %1238 = sbr.rel (%p1236) target = $region180
        $region179: #{vqaclip_forward.1} parent=11 // pred_region
          %1240 = vsyncadd [#allocation6], 0
          %s1242 = sshll.u32 %s87, 4
          %s1243 = int_to_ptr.hbm [resolvable:$true] %s1242
          %s1244 = sshll.u32 [#allocation7], 4
          %s1245 = int_to_ptr.vmem [resolvable:$true] %s1244
          %1247 = dma.hbm_to_vmem [thread:$0]  %s1243, 16, %s1245, [#allocation6]
        $region180: #{vqaclip_forward.1} parent=11 // pred_fallthru
          _
        // Predicated region
        $region181: #{vqaclip_forward.1} parent=11 // pred_check
          %p1248 = pneg %p1054
        $region182: #{vqaclip_forward.1} parent=11 // pred_check_branch
          %1250 = sbr.rel (%p1248) target = $region184
        $region183: #{vqaclip_forward.1} parent=11 // pred_region
          _
        $region184: #{vqaclip_forward.1} parent=11 // pred_fallthru
          _
      $region12: #{vqaclip_forward.1} parent=5 // pred_fallthru
        _
      %p1251 = scmp.lt.s32.totalorder %s99, 2
      // Predicated region
      $region185: #{vqaclip_forward.1} parent=5 // pred_check
        %p1252 = pneg %p1251
      $region186: #{vqaclip_forward.1} parent=5 // pred_check_branch
        %1254 = sbr.rel (%p1252) target = $region188
      $region187: #{vqaclip_forward.1} parent=5 // pred_region
        // Predicated region
        $region189: #{vqaclip_forward.1} parent=187 // pred_check
          %p1255 = pneg %p119
        $region190: #{vqaclip_forward.1} parent=187 // pred_check_branch
          %1257 = sbr.rel (%p1255) target = $region192
        $region191: #{vqaclip_forward.1} parent=187 // pred_region
          %p1258 = scmp.lt.s32.totalorder %s99, 1
          %s1259 = scalar_select %p1258, %s99, 1
          %s1260 = scalar_lea.vmem %s1, %s1259
        $region192: #{vqaclip_forward.1} parent=187 // pred_fallthru
          _
        // Predicated region
        $region193: #{vqaclip_forward.1} parent=187 // pred_check
          %p1261 = pneg %p145
        $region194: #{vqaclip_forward.1} parent=187 // pred_check_branch
          %1263 = sbr.rel (%p1261) target = $region196
        $region195: #{vqaclip_forward.1} parent=187 // pred_region
          %p1264 = scmp.lt.s32.totalorder %s99, 1
          %s1265 = scalar_select %p1264, %s99, 1
          %s1266 = smul.addr %s1265, 8
          %s1267 = scalar_lea.vmem %s3, %s1266
        $region196: #{vqaclip_forward.1} parent=187 // pred_fallthru
          _
      $region188: #{vqaclip_forward.1} parent=5 // pred_fallthru
        _
      %p1268 = scmp.le.s32.totalorder 1, %s99
      %p1269 = scmp.lt.s32.totalorder %s99, 3
      %p1270 = pnand %p1268, %p1269
      %p1271 = pneg %p1270
      // Predicated region
      $region197: #{vqaclip_forward.1} parent=5 // pred_check
        _
      $region198: #{vqaclip_forward.1} parent=5 // pred_check_branch
        %1273 = sbr.rel (%p1270) target = $region200
      $region199: #{vqaclip_forward.1} parent=5 // pred_region
        %s1274 = ssub.s32 %s99, 1
        // Predicated region
        $region201: #{vqaclip_forward.1} parent=199 // pred_check
          %p1275 = pneg %p991
        $region202: #{vqaclip_forward.1} parent=199 // pred_check_branch
          %1277 = sbr.rel (%p1275) target = $region204
        $region203: #{vqaclip_forward.1} parent=199 // pred_region
          %1279 = dma.done [#allocation4], 16
        $region204: #{vqaclip_forward.1} parent=199 // pred_fallthru
          _
        // Predicated region
        $region205: #{vqaclip_forward.1} parent=199 // pred_check
          %p1280 = pneg %p1012
        $region206: #{vqaclip_forward.1} parent=199 // pred_check_branch
          %1282 = sbr.rel (%p1280) target = $region208
        $region207: #{vqaclip_forward.1} parent=199 // pred_region
          %1284 = dma.done [#allocation6], 16
        $region208: #{vqaclip_forward.1} parent=199 // pred_fallthru
          _
        // Predicated region
        $region209: #{vqaclip_forward.1} parent=199 // pred_check
          %p1285 = pneg %p1033
        $region210: #{vqaclip_forward.1} parent=199 // pred_check_branch
          %1287 = sbr.rel (%p1285) target = $region212
        $region211: #{vqaclip_forward.1} parent=199 // pred_region
          %1289 = dma.done [#allocation6], 16
        $region212: #{vqaclip_forward.1} parent=199 // pred_fallthru
          _
        %p1290 = scmp.lt.s32.totalorder %s104, 1
        %s1291 = scalar_select %p1290, %s104, 1
        %s1292 = scalar_lea.vmem %s1, %s1291
        %p1293 = pneg %p125
        %p1294 = pneg %p122
        %p1295 = scmp.lt.s32.totalorder %s104, 1
        %s1296 = scalar_select %p1295, %s104, 1
        %s1297 = smul.addr %s1296, 8
        %s1298 = scalar_lea.vmem %s3, %s1297
        %p1299 = pneg %p151
        %p1300 = pneg %p148
        %p1301 = pneg %p172
        %p1302 = pneg %p169
        %p1303 = pneg %p193
        %p1304 = pneg %p190
        %p1305 = pneg %p214
        %p1306 = pneg %p211
        %p1307 = pneg %p235
        %p1308 = pneg %p232
        %p1309 = pneg %p256
        %p1310 = pneg %p253
        %p1311 = pneg %p277
        %p1312 = pneg %p274
        %p1313 = pneg %p298
        %p1314 = pneg %p295
        %p1315 = pneg %p319
        %p1316 = pneg %p316
        %p1317 = pneg %p340
        %p1318 = pneg %p337
        %p1319 = pneg %p361
        %p1320 = pneg %p358
        %p1321 = pneg %p382
        %p1322 = pneg %p379
        %p1323 = pneg %p403
        %p1324 = pneg %p400
        %p1325 = pneg %p424
        %p1326 = pneg %p421
        %p1327 = pneg %p445
        %p1328 = pneg %p442
        %p1329 = pneg %p466
        %p1330 = pneg %p463
        %p1331 = pneg %p487
        %p1332 = pneg %p484
        %p1333 = pneg %p508
        %p1334 = pneg %p505
        %p1335 = pneg %p529
        %p1336 = pneg %p526
        %p1337 = pneg %p550
        %p1338 = pneg %p547
        %p1339 = pneg %p571
        %p1340 = pneg %p568
        %p1341 = pneg %p592
        %p1342 = pneg %p589
        %p1343 = pneg %p613
        %p1344 = pneg %p610
        %p1345 = pneg %p634
        %p1346 = pneg %p631
        %p1347 = pneg %p655
        %p1348 = pneg %p652
        %p1349 = pneg %p676
        %p1350 = pneg %p673
        %p1351 = pneg %p697
        %p1352 = pneg %p694
        %p1353 = pneg %p718
        %p1354 = pneg %p715
        %p1355 = pneg %p739
        %p1356 = pneg %p736
        %p1357 = pneg %p760
        %p1358 = pneg %p757
        %p1359 = pneg %p781
        %p1360 = pneg %p778
        %p1361 = pneg %p802
        %p1362 = pneg %p799
        %p1363 = pneg %p823
        %p1364 = pneg %p820
        %p1365 = pneg %p844
        %p1366 = pneg %p841
        %p1367 = pneg %p865
        %p1368 = pneg %p862
        %p1369 = pneg %p886
        %p1370 = pneg %p883
        %p1371 = pneg %p907
        %p1372 = pneg %p904
        %p1373 = pneg %p928
        %p1374 = pneg %p925
        %p1375 = pneg %p949
        %p1376 = pneg %p946
        %p1377 = pneg %p970
        %p1378 = pneg %p967
        %p1379 = pneg %p991
        %p1380 = pneg %p988
        %p1381 = pneg %p1012
        %p1382 = pneg %p1009
        %p1383 = pneg %p1033
        %p1384 = pneg %p1030
        %p1385 = pneg %p1054
        %p1386 = pneg %p1051
        %p1387 = pneg %p1080
        %p1388 = pneg %p1077
        %p1389 = scmp.lt.s32.totalorder %s104, 1
        %s1390 = scalar_select %p1389, %s104, 1
        %s1391 = smul.addr %s1390, 2
        %s1392 = smul.addr %s1391, 8
        %s1393 = scalar_lea.vmem %s91, %s1392
        %p1394 = scmp.lt.s32.totalorder %s104, 1
        %s1395 = scalar_select %p1394, %s104, 1
        %s1396 = scalar_lea.vmem %s1, %s1395
        %p1397 = scmp.lt.s32.totalorder %s104, 1
        %s1398 = scalar_select %p1397, %s104, 1
        %s1399 = smul.addr %s1398, 8
        %s1400 = scalar_lea.vmem %s3, %s1399
        %p1401 = scmp.lt.s32.totalorder %s104, 1
        %s1402 = scalar_select %p1401, %s104, 1
        %s1403 = smul.addr %s1402, 2
        %s1404 = smul.addr %s1403, 8
        %s1405 = scalar_lea.vmem %s91, %s1404
        %v1407 = vld [vmem:[%s1396] sm:$0x1]
        %v1408 = vpack.c.bf16 %v1407, %v1407
        %v1409 = vld [vmem:[%s5] sm:$0xf]
        %v1410 = vld [vmem:[%s5 + $0x4] sm:$0xf]
        %v1411 = vld [vmem:[%s7] sm:$0x1]
        %v1414 = vunpack.c.l.b16 %v1409
        %v1415 = vunpack.c.l.b16 %v1410
        %v1416 = vpack.c.b16 %v1415, %v1414
        %vm1418 = vcmask 130048
        %v1420 = vsel %vm1418, %v1408, 0
        %1422 = vmatpush.bf16.msra.mxu0 0
        %1423 = vmatpush.bf16.msra.mxu0 0
        %1424 = vmatpush.bf16.msra.mxu0 0
        %1425 = vmatpush.bf16.msra.mxu0 0
        %1426 = vmatpush.bf16.msra.mxu0 0
        %1427 = vmatpush.bf16.msra.mxu0 0
        %1428 = vmatpush.bf16.msra.mxu0 0
        %1429 = vmatpush.bf16.msra.mxu0 %v1416
        %1430 = vmatmul.bf16.gmra.mxu0 %v1420
        %v1431 = vpop.f32.mrf.mxu0
        %v1432 = vadd.f32 %v1411, %v1431
        %v1433 = vpop.f32.mrf.mxu0
        %1434 = vdwg.mxu0
        %vm1435 = vcmask 253952
        %1436 = vst.msk [vmem:[#allocation2] sm:$0x1] %vm1435, %v1432
        %s1437 = scalar_lea.vmem %s5, 8
        %v1438 = vld [vmem:[%s1437] sm:$0xf]
        %v1439 = vld [vmem:[%s1437 + $0x4] sm:$0xf]
        %v1440 = vld [vmem:[%s7 + $0x1] sm:$0x1]
        %v1443 = vunpack.c.l.b16 %v1438
        %v1444 = vunpack.c.l.b16 %v1439
        %v1445 = vpack.c.b16 %v1444, %v1443
        %1447 = vmatpush.bf16.msra.mxu0 0
        %1448 = vmatpush.bf16.msra.mxu0 0
        %1449 = vmatpush.bf16.msra.mxu0 0
        %1450 = vmatpush.bf16.msra.mxu0 0
        %1451 = vmatpush.bf16.msra.mxu0 0
        %1452 = vmatpush.bf16.msra.mxu0 0
        %1453 = vmatpush.bf16.msra.mxu0 0
        %1454 = vmatpush.bf16.msra.mxu0 %v1445
        %1455 = vmatmul.bf16.gmra.mxu0 %v1420
        %v1456 = vpop.f32.mrf.mxu0
        %v1457 = vadd.f32 %v1440, %v1456
        %v1458 = vpop.f32.mrf.mxu0
        %1459 = vdwg.mxu0
        %1460 = vst.msk [vmem:[#allocation2 + $0x1] sm:$0x1] %vm1435, %v1457
        %s1461 = scalar_lea.vmem %s5, 16
        %v1462 = vld [vmem:[%s1461] sm:$0xf]
        %v1463 = vld [vmem:[%s1461 + $0x4] sm:$0xf]
        %v1464 = vld [vmem:[%s7 + $0x2] sm:$0x1]
        %v1467 = vunpack.c.l.b16 %v1462
        %v1468 = vunpack.c.l.b16 %v1463
        %v1469 = vpack.c.b16 %v1468, %v1467
        %1471 = vmatpush.bf16.msra.mxu0 0
        %1472 = vmatpush.bf16.msra.mxu0 0
        %1473 = vmatpush.bf16.msra.mxu0 0
        %1474 = vmatpush.bf16.msra.mxu0 0
        %1475 = vmatpush.bf16.msra.mxu0 0
        %1476 = vmatpush.bf16.msra.mxu0 0
        %1477 = vmatpush.bf16.msra.mxu0 0
        %1478 = vmatpush.bf16.msra.mxu0 %v1469
        %1479 = vmatmul.bf16.gmra.mxu0 %v1420
        %v1480 = vpop.f32.mrf.mxu0
        %v1481 = vadd.f32 %v1464, %v1480
        %v1482 = vpop.f32.mrf.mxu0
        %1483 = vdwg.mxu0
        %1484 = vst.msk [vmem:[#allocation2 + $0x2] sm:$0x1] %vm1435, %v1481
        %s1485 = scalar_lea.vmem %s5, 24
        %v1486 = vld [vmem:[%s1485] sm:$0xf]
        %v1487 = vld [vmem:[%s1485 + $0x4] sm:$0xf]
        %v1488 = vld [vmem:[%s7 + $0x3] sm:$0x1]
        %v1491 = vunpack.c.l.b16 %v1486
        %v1492 = vunpack.c.l.b16 %v1487
        %v1493 = vpack.c.b16 %v1492, %v1491
        %1495 = vmatpush.bf16.msra.mxu0 0
        %1496 = vmatpush.bf16.msra.mxu0 0
        %1497 = vmatpush.bf16.msra.mxu0 0
        %1498 = vmatpush.bf16.msra.mxu0 0
        %1499 = vmatpush.bf16.msra.mxu0 0
        %1500 = vmatpush.bf16.msra.mxu0 0
        %1501 = vmatpush.bf16.msra.mxu0 0
        %1502 = vmatpush.bf16.msra.mxu0 %v1493
        %1503 = vmatmul.bf16.gmra.mxu0 %v1420
        %v1504 = vpop.f32.mrf.mxu0
        %v1505 = vadd.f32 %v1488, %v1504
        %v1506 = vpop.f32.mrf.mxu0
        %1507 = vdwg.mxu0
        %1508 = vst.msk [vmem:[#allocation2 + $0x3] sm:$0x1] %vm1435, %v1505
        %v1509 = vld [vmem:[%s9] sm:$0xf]
        %vm1510 = vcmask 257024
        %1511 = vst.msk [vmem:[#allocation2 + $0x4] sm:$0xf] %vm1510, %v1509
        %v1512 = vld [vmem:[#allocation2] sm:$0xff]
        %v1513 = vld [vmem:[%s11] sm:$0x1]
        %v1514 = vld [vmem:[%s13] sm:$0x1]
        %v1515 = vld [vmem:[%s15] sm:$0xf]
        %v1516 = vld [vmem:[%s15 + $0x4] sm:$0xf]
        %v1517 = vld [vmem:[%s15 + $0x8] sm:$0xf]
        %v1518 = vld [vmem:[%s15 + $0xc] sm:$0xf]
        %v1519 = vld [vmem:[%s17] sm:$0x1]
        %v1520 = vld [vmem:[%s19] sm:$0xf]
        %v1521 = vld [vmem:[%s19 + $0x4] sm:$0xf]
        %v1522 = vld [vmem:[%s19 + $0x8] sm:$0xf]
        %v1523 = vld [vmem:[%s19 + $0xc] sm:$0xf]
        %v1524 = vld [vmem:[%s21] sm:$0x1]
        %v1525 = vld [vmem:[%s23] sm:$0x1]
        %v1526 = vld [vmem:[%s25] sm:$0x1]
        %v1527 = vld [vmem:[%s27] sm:$0xf]
        %v1528 = vld [vmem:[%s27 + $0x4] sm:$0xf]
        %v1529 = vld [vmem:[%s27 + $0x8] sm:$0xf]
        %v1530 = vld [vmem:[%s27 + $0xc] sm:$0xf]
        %v1531 = vld [vmem:[%s29] sm:$0x1]
        %v1532 = vld [vmem:[%s31] sm:$0xf]
        %v1533 = vld [vmem:[%s31 + $0x4] sm:$0xf]
        %v1534 = vld [vmem:[%s31 + $0x8] sm:$0xf]
        %v1535 = vld [vmem:[%s31 + $0xc] sm:$0xf]
        %v1536 = vld [vmem:[%s31 + $0x10] sm:$0xf]
        %v1537 = vld [vmem:[%s31 + $0x14] sm:$0xf]
        %v1538 = vld [vmem:[%s31 + $0x18] sm:$0xf]
        %v1539 = vld [vmem:[%s31 + $0x1c] sm:$0xf]
        %v1540 = vld [vmem:[%s31 + $0x20] sm:$0xf]
        %v1541 = vld [vmem:[%s31 + $0x24] sm:$0xf]
        %v1542 = vld [vmem:[%s31 + $0x28] sm:$0xf]
        %v1543 = vld [vmem:[%s31 + $0x2c] sm:$0xf]
        %v1544 = vld [vmem:[%s31 + $0x30] sm:$0xf]
        %v1545 = vld [vmem:[%s31 + $0x34] sm:$0xf]
        %v1546 = vld [vmem:[%s31 + $0x38] sm:$0xf]
        %v1547 = vld [vmem:[%s31 + $0x3c] sm:$0xf]
        %v1548 = vld [vmem:[%s33] sm:$0x1]
        %vm1549 = vcmask 261120
        %v1550 = vsel %vm1549, %v1512, 0.0
        %1551 = vadd.xlane.f32.xlu0 %v1550
        %v1552 = vpop.xlane.xlu0 %1551
        %v1553 = vrcp.pop 32.0
        %v1554 = vmul.f32 32.0, %v1553
        %v1555 = vsub.f32 1.0, %v1554
        %v1556 = vmul.f32 %v1553, %v1555
        %v1557 = vadd.f32 %v1553, %v1556
        %vm1558 = vweird.f32 %v1553
        %v1559 = vsel %vm1558, %v1553, %v1557
        %v1560 = vmul.f32 %v1552, %v1559
        %v1561 = vsub.f32 %v1512, %v1560
        %v1562 = vmul.f32 %v1561, %v1561
        %v1563 = vsel %vm1549, %v1562, 0.0
        %1564 = vadd.xlane.f32.xlu0 %v1563
        %v1565 = vpop.xlane.xlu0 %1564
        %v1566 = vmul.f32 %v1565, %v1559
        %v1567 = vadd.f32 %v1566, 1e-05
        %v1568 = vrsqrt.pop %v1567
        %v1569 = vmul.f32 %v1568, %v1567
        %v1570 = vmul.f32 %v1569, %v1568
        %v1571 = vmul.f32 0.5, %v1570
        %v1572 = vsub.f32 1.5, %v1571
        %v1573 = vmul.f32 %v1568, %v1572
        %vm1574 = vweird.f32 %v1567
        %vm1575 = vweird.f32 %v1568
        %vm1576 = vmor %vm1574, %vm1575
        %v1577 = vsel %vm1576, %v1568, %v1573
        %v1578 = vmul.f32 %v1561, %v1577
        %v1580 = vperm.slane %v1513, 0
        %v1582 = vmul.f32 %v1578, %v1580
        %v1584 = vperm.slane %v1514, 0
        %v1586 = vadd.f32 %v1582, %v1584
        %v1587 = vpack.c.bf16 %v1586, %v1586
        %v1589 = vperm.slane %v1519, 0
        %v1595 = vunpack.c.l.b16 %v1515
        %v1596 = vunpack.c.l.b16 %v1516
        %v1597 = vunpack.c.l.b16 %v1517
        %v1598 = vunpack.c.l.b16 %v1518
        %v1599 = vpack.c.b16 %v1596, %v1595
        %v1600 = vpack.c.b16 %v1598, %v1597
        %v1604 = vsel %vm1549, %v1587, 0
        %1606 = vmatpush.bf16.msra.mxu0 0
        %1607 = vmatpush.bf16.msra.mxu0 0
        %1608 = vmatpush.bf16.msra.mxu0 0
        %1609 = vmatpush.bf16.msra.mxu0 0
        %1610 = vmatpush.bf16.msra.mxu0 0
        %1611 = vmatpush.bf16.msra.mxu0 0
        %1612 = vmatpush.bf16.msra.mxu0 %v1600
        %1613 = vmatpush.bf16.msra.mxu0 %v1599
        %1614 = vmatmul.bf16.gmra.mxu0 %v1604
        %v1615 = vpop.f32.mrf.mxu0
        %v1616 = vadd.f32 %v1589, %v1615
        %v1617 = vpop.f32.mrf.mxu0
        %1618 = vdwg.mxu0
        %v1619 = vpack.c.bf16 %v1616, %v1616
        %v1621 = vunpack.c.l.b16 %v1619
        %v1622 = vpack.c.b16 %v1621, %v1621
        %1623 = vrot.lane.b32.xlu0 %v1622, 96
        %v1624 = vpop.permute.xlu0 %1623
        %vm1625 = vcmask 64512
        %v1627 = vsel %vm1625, %v1619, 0
        %v1630 = vsel %vm1625, %v1624, 0
        %1632 = vmatpush.bf16.xpose.msra.mxu0 0
        %1633 = vmatpush.bf16.xpose.msra.mxu0 0
        %1634 = vmatpush.bf16.xpose.msra.mxu0 0
        %1635 = vmatpush.bf16.xpose.msra.mxu0 0
        %1636 = vmatpush.bf16.xpose.msra.mxu0 0
        %1637 = vmatpush.bf16.xpose.msra.mxu0 0
        %1638 = vmatpush.bf16.xpose.msra.mxu0 0
        %1639 = vmatpush.bf16.xpose.msra.mxu0 %v1630
        %1640 = vmatmul.bf16.gmra.mxu0 %v1627
        %v1641 = vpop.f32.mrf.mxu0
        %v1642 = vadd.f32 0.0, %v1641
        %v1643 = vpop.f32.mrf.mxu0
        %1644 = vdwg.mxu0
        %v1645 = vsel %vm1625, %v1642, -inf
        %1646 = vmax.xlane.f32.xlu0 %v1645
        %v1647 = vpop.xlane.xlu0 %1646
        %v1648 = vsub.f32 %v1642, %v1647
        %v1649 = vmul.f32 %v1648, 1.442695
        %v1650 = vpow.pop %v1649
        %v1651 = vsel %vm1625, %v1650, 0.0
        %1652 = vadd.xlane.f32.xlu0 %v1651
        %v1653 = vpop.xlane.xlu0 %1652
        %v1654 = vrcp.pop %v1653
        %v1655 = vmul.f32 %v1650, %v1654
        %v1656 = vpack.c.bf16 %v1655, %v1655
        %1657 = vrot.lane.b32.xlu0 %v1622, 64
        %v1658 = vpop.permute.xlu0 %1657
        %v1660 = vsel %vm1625, %v1656, 0
        %vm1662 = vcmask 1043456
        %v1664 = vsel %vm1662, %v1658, 0
        %1666 = vmatpush.bf16.msra.mxu0 0
        %1667 = vmatpush.bf16.msra.mxu0 0
        %1668 = vmatpush.bf16.msra.mxu0 0
        %1669 = vmatpush.bf16.msra.mxu0 0
        %1670 = vmatpush.bf16.msra.mxu0 0
        %1671 = vmatpush.bf16.msra.mxu0 0
        %1672 = vmatpush.bf16.msra.mxu0 0
        %1673 = vmatpush.bf16.msra.mxu0 %v1664
        %1674 = vmatmul.bf16.gmra.mxu0 %v1660
        %v1675 = vpop.f32.mrf.mxu0
        %v1676 = vadd.f32 0.0, %v1675
        %v1677 = vpop.f32.mrf.mxu0
        %1678 = vdwg.mxu0
        %1679 = vrot.lane.b32.xlu0 %v1622, 120
        %v1680 = vpop.permute.xlu0 %1679
        %1681 = vrot.lane.b32.xlu0 %v1622, 88
        %v1682 = vpop.permute.xlu0 %1681
        %v1684 = vsel %vm1625, %v1680, 0
        %v1687 = vsel %vm1625, %v1682, 0
        %1689 = vmatpush.bf16.xpose.msra.mxu0 0
        %1690 = vmatpush.bf16.xpose.msra.mxu0 0
        %1691 = vmatpush.bf16.xpose.msra.mxu0 0
        %1692 = vmatpush.bf16.xpose.msra.mxu0 0
        %1693 = vmatpush.bf16.xpose.msra.mxu0 0
        %1694 = vmatpush.bf16.xpose.msra.mxu0 0
        %1695 = vmatpush.bf16.xpose.msra.mxu0 0
        %1696 = vmatpush.bf16.xpose.msra.mxu0 %v1687
        %1697 = vmatmul.bf16.gmra.mxu0 %v1684
        %v1698 = vpop.f32.mrf.mxu0
        %v1699 = vadd.f32 0.0, %v1698
        %v1700 = vpop.f32.mrf.mxu0
        %1701 = vdwg.mxu0
        %v1702 = vsel %vm1625, %v1699, -inf
        %1703 = vmax.xlane.f32.xlu0 %v1702
        %v1704 = vpop.xlane.xlu0 %1703
        %v1705 = vsub.f32 %v1699, %v1704
        %v1706 = vmul.f32 %v1705, 1.442695
        %v1707 = vpow.pop %v1706
        %v1708 = vsel %vm1625, %v1707, 0.0
        %1709 = vadd.xlane.f32.xlu0 %v1708
        %v1710 = vpop.xlane.xlu0 %1709
        %v1711 = vrcp.pop %v1710
        %v1712 = vmul.f32 %v1707, %v1711
        %v1713 = vpack.c.bf16 %v1712, %v1712
        %1714 = vrot.lane.b32.xlu0 %v1622, 56
        %v1715 = vpop.permute.xlu0 %1714
        %v1717 = vsel %vm1625, %v1713, 0
        %v1720 = vsel %vm1662, %v1715, 0
        %1722 = vmatpush.bf16.msra.mxu0 0
        %1723 = vmatpush.bf16.msra.mxu0 0
        %1724 = vmatpush.bf16.msra.mxu0 0
        %1725 = vmatpush.bf16.msra.mxu0 0
        %1726 = vmatpush.bf16.msra.mxu0 0
        %1727 = vmatpush.bf16.msra.mxu0 0
        %1728 = vmatpush.bf16.msra.mxu0 0
        %1729 = vmatpush.bf16.msra.mxu0 %v1720
        %1730 = vmatmul.bf16.gmra.mxu0 %v1717
        %v1731 = vpop.f32.mrf.mxu0
        %v1732 = vadd.f32 0.0, %v1731
        %v1733 = vpop.f32.mrf.mxu0
        %1734 = vdwg.mxu0
        %1735 = vrot.lane.b32.xlu0 %v1622, 112
        %v1736 = vpop.permute.xlu0 %1735
        %1737 = vrot.lane.b32.xlu0 %v1622, 80
        %v1738 = vpop.permute.xlu0 %1737
        %v1740 = vsel %vm1625, %v1736, 0
        %v1743 = vsel %vm1625, %v1738, 0
        %1745 = vmatpush.bf16.xpose.msra.mxu0 0
        %1746 = vmatpush.bf16.xpose.msra.mxu0 0
        %1747 = vmatpush.bf16.xpose.msra.mxu0 0
        %1748 = vmatpush.bf16.xpose.msra.mxu0 0
        %1749 = vmatpush.bf16.xpose.msra.mxu0 0
        %1750 = vmatpush.bf16.xpose.msra.mxu0 0
        %1751 = vmatpush.bf16.xpose.msra.mxu0 0
        %1752 = vmatpush.bf16.xpose.msra.mxu0 %v1743
        %1753 = vmatmul.bf16.gmra.mxu0 %v1740
        %v1754 = vpop.f32.mrf.mxu0
        %v1755 = vadd.f32 0.0, %v1754
        %v1756 = vpop.f32.mrf.mxu0
        %1757 = vdwg.mxu0
        %v1758 = vsel %vm1625, %v1755, -inf
        %1759 = vmax.xlane.f32.xlu0 %v1758
        %v1760 = vpop.xlane.xlu0 %1759
        %v1761 = vsub.f32 %v1755, %v1760
        %v1762 = vmul.f32 %v1761, 1.442695
        %v1763 = vpow.pop %v1762
        %v1764 = vsel %vm1625, %v1763, 0.0
        %1765 = vadd.xlane.f32.xlu0 %v1764
        %v1766 = vpop.xlane.xlu0 %1765
        %v1767 = vrcp.pop %v1766
        %v1768 = vmul.f32 %v1763, %v1767
        %v1769 = vpack.c.bf16 %v1768, %v1768
        %1770 = vrot.lane.b32.xlu0 %v1622, 48
        %v1771 = vpop.permute.xlu0 %1770
        %v1773 = vsel %vm1625, %v1769, 0
        %v1776 = vsel %vm1662, %v1771, 0
        %1778 = vmatpush.bf16.msra.mxu0 0
        %1779 = vmatpush.bf16.msra.mxu0 0
        %1780 = vmatpush.bf16.msra.mxu0 0
        %1781 = vmatpush.bf16.msra.mxu0 0
        %1782 = vmatpush.bf16.msra.mxu0 0
        %1783 = vmatpush.bf16.msra.mxu0 0
        %1784 = vmatpush.bf16.msra.mxu0 0
        %1785 = vmatpush.bf16.msra.mxu0 %v1776
        %1786 = vmatmul.bf16.gmra.mxu0 %v1773
        %v1787 = vpop.f32.mrf.mxu0
        %v1788 = vadd.f32 0.0, %v1787
        %v1789 = vpop.f32.mrf.mxu0
        %1790 = vdwg.mxu0
        %1791 = vrot.lane.b32.xlu0 %v1622, 104
        %v1792 = vpop.permute.xlu0 %1791
        %1793 = vrot.lane.b32.xlu0 %v1622, 72
        %v1794 = vpop.permute.xlu0 %1793
        %v1796 = vsel %vm1625, %v1792, 0
        %v1799 = vsel %vm1625, %v1794, 0
        %1801 = vmatpush.bf16.xpose.msra.mxu0 0
        %1802 = vmatpush.bf16.xpose.msra.mxu0 0
        %1803 = vmatpush.bf16.xpose.msra.mxu0 0
        %1804 = vmatpush.bf16.xpose.msra.mxu0 0
        %1805 = vmatpush.bf16.xpose.msra.mxu0 0
        %1806 = vmatpush.bf16.xpose.msra.mxu0 0
        %1807 = vmatpush.bf16.xpose.msra.mxu0 0
        %1808 = vmatpush.bf16.xpose.msra.mxu0 %v1799
        %1809 = vmatmul.bf16.gmra.mxu0 %v1796
        %v1810 = vpop.f32.mrf.mxu0
        %v1811 = vadd.f32 0.0, %v1810
        %v1812 = vpop.f32.mrf.mxu0
        %1813 = vdwg.mxu0
        %v1814 = vsel %vm1625, %v1811, -inf
        %1815 = vmax.xlane.f32.xlu0 %v1814
        %v1816 = vpop.xlane.xlu0 %1815
        %v1817 = vsub.f32 %v1811, %v1816
        %v1818 = vmul.f32 %v1817, 1.442695
        %v1819 = vpow.pop %v1818
        %v1820 = vsel %vm1625, %v1819, 0.0
        %1821 = vadd.xlane.f32.xlu0 %v1820
        %v1822 = vpop.xlane.xlu0 %1821
        %v1823 = vrcp.pop %v1822
        %v1824 = vmul.f32 %v1819, %v1823
        %v1825 = vpack.c.bf16 %v1824, %v1824
        %1826 = vrot.lane.b32.xlu0 %v1622, 40
        %v1827 = vpop.permute.xlu0 %1826
        %v1829 = vsel %vm1625, %v1825, 0
        %v1832 = vsel %vm1662, %v1827, 0
        %1834 = vmatpush.bf16.msra.mxu0 0
        %1835 = vmatpush.bf16.msra.mxu0 0
        %1836 = vmatpush.bf16.msra.mxu0 0
        %1837 = vmatpush.bf16.msra.mxu0 0
        %1838 = vmatpush.bf16.msra.mxu0 0
        %1839 = vmatpush.bf16.msra.mxu0 0
        %1840 = vmatpush.bf16.msra.mxu0 0
        %1841 = vmatpush.bf16.msra.mxu0 %v1832
        %1842 = vmatmul.bf16.gmra.mxu0 %v1829
        %v1843 = vpop.f32.mrf.mxu0
        %v1844 = vadd.f32 0.0, %v1843
        %v1845 = vpop.f32.mrf.mxu0
        %1846 = vdwg.mxu0
        %1848 = vrot.lane.b32.xlu0 %v1732, 8
        %v1849 = vpop.permute.xlu0 %1848
        %1852 = vrot.lane.b32.xlu0 %v1788, 16
        %v1853 = vpop.permute.xlu0 %1852
        %1856 = vrot.lane.b32.xlu0 %v1844, 24
        %v1857 = vpop.permute.xlu0 %1856
        %v1859 = vsel %vm1625, %v1676, %v1849
        %v1860 = vsel %vm1418, %v1859, %v1853
        %vm1861 = vcmask 195584
        %v1862 = vsel %vm1861, %v1860, %v1857
        %v1863 = vpack.c.bf16 %v1862, %v1862
        %v1868 = vunpack.c.l.b16 %v1520
        %v1869 = vunpack.c.l.b16 %v1521
        %v1870 = vunpack.c.l.b16 %v1522
        %v1871 = vunpack.c.l.b16 %v1523
        %v1872 = vpack.c.b16 %v1869, %v1868
        %v1873 = vpack.c.b16 %v1871, %v1870
        %v1877 = vsel %vm1549, %v1863, 0
        %1879 = vmatpush.bf16.msra.mxu0 0
        %1880 = vmatpush.bf16.msra.mxu0 0
        %1881 = vmatpush.bf16.msra.mxu0 0
        %1882 = vmatpush.bf16.msra.mxu0 0
        %1883 = vmatpush.bf16.msra.mxu0 0
        %1884 = vmatpush.bf16.msra.mxu0 0
        %1885 = vmatpush.bf16.msra.mxu0 %v1873
        %1886 = vmatpush.bf16.msra.mxu0 %v1872
        %1887 = vmatmul.bf16.gmra.mxu0 %v1877
        %v1888 = vpop.f32.mrf.mxu0
        %v1889 = vadd.f32 0.0, %v1888
        %v1890 = vpop.f32.mrf.mxu0
        %1891 = vdwg.mxu0
        %v1892 = vadd.f32 %v1512, %v1889
        %v1894 = vperm.slane %v1524, 0
        %v1896 = vadd.f32 %v1892, %v1894
        %v1897 = vsel %vm1549, %v1896, 0.0
        %1898 = vadd.xlane.f32.xlu0 %v1897
        %v1899 = vpop.xlane.xlu0 %1898
        %v1900 = vmul.f32 %v1899, %v1559
        %v1901 = vsub.f32 %v1896, %v1900
        %v1902 = vmul.f32 %v1901, %v1901
        %v1903 = vsel %vm1549, %v1902, 0.0
        %1904 = vadd.xlane.f32.xlu0 %v1903
        %v1905 = vpop.xlane.xlu0 %1904
        %v1906 = vmul.f32 %v1905, %v1559
        %v1907 = vadd.f32 %v1906, 1e-05
        %v1908 = vrsqrt.pop %v1907
        %v1909 = vmul.f32 %v1908, %v1907
        %v1910 = vmul.f32 %v1909, %v1908
        %v1911 = vmul.f32 0.5, %v1910
        %v1912 = vsub.f32 1.5, %v1911
        %v1913 = vmul.f32 %v1908, %v1912
        %vm1914 = vweird.f32 %v1907
        %vm1915 = vweird.f32 %v1908
        %vm1916 = vmor %vm1914, %vm1915
        %v1917 = vsel %vm1916, %v1908, %v1913
        %v1918 = vmul.f32 %v1901, %v1917
        %v1920 = vperm.slane %v1525, 0
        %v1922 = vmul.f32 %v1918, %v1920
        %v1924 = vperm.slane %v1526, 0
        %v1926 = vadd.f32 %v1922, %v1924
        %v1927 = vpack.c.bf16 %v1926, %v1926
        %v1929 = vperm.slane %v1531, 0
        %v1935 = vunpack.c.l.b16 %v1527
        %v1936 = vunpack.c.l.b16 %v1528
        %v1937 = vunpack.c.l.b16 %v1529
        %v1938 = vunpack.c.l.b16 %v1530
        %v1939 = vpack.c.b16 %v1936, %v1935
        %v1940 = vpack.c.b16 %v1938, %v1937
        %v1944 = vsel %vm1549, %v1927, 0
        %1946 = vmatpush.bf16.msra.mxu0 0
        %1947 = vmatpush.bf16.msra.mxu0 0
        %1948 = vmatpush.bf16.msra.mxu0 0
        %1949 = vmatpush.bf16.msra.mxu0 0
        %1950 = vmatpush.bf16.msra.mxu0 0
        %1951 = vmatpush.bf16.msra.mxu0 0
        %1952 = vmatpush.bf16.msra.mxu0 %v1940
        %1953 = vmatpush.bf16.msra.mxu0 %v1939
        %1954 = vmatmul.bf16.gmra.mxu0 %v1944
        %v1955 = vpop.f32.mrf.mxu0
        %v1956 = vadd.f32 %v1929, %v1955
        %v1957 = vpop.f32.mrf.mxu0
        %1958 = vdwg.mxu0
        %v1959 = vmax.f32 %v1956, 0.0
        %v1960 = vpack.c.bf16 %v1959, %v1959
        %v1977 = vunpack.c.l.b16 %v1532
        %v1978 = vunpack.c.l.b16 %v1533
        %v1979 = vunpack.c.l.b16 %v1534
        %v1980 = vunpack.c.l.b16 %v1535
        %v1981 = vunpack.c.l.b16 %v1536
        %v1982 = vunpack.c.l.b16 %v1537
        %v1983 = vunpack.c.l.b16 %v1538
        %v1984 = vunpack.c.l.b16 %v1539
        %v1985 = vunpack.c.l.b16 %v1540
        %v1986 = vunpack.c.l.b16 %v1541
        %v1987 = vunpack.c.l.b16 %v1542
        %v1988 = vunpack.c.l.b16 %v1543
        %v1989 = vunpack.c.l.b16 %v1544
        %v1990 = vunpack.c.l.b16 %v1545
        %v1991 = vunpack.c.l.b16 %v1546
        %v1992 = vunpack.c.l.b16 %v1547
        %v1993 = vpack.c.b16 %v1978, %v1977
        %v1994 = vpack.c.b16 %v1980, %v1979
        %v1995 = vpack.c.b16 %v1982, %v1981
        %v1996 = vpack.c.b16 %v1984, %v1983
        %v1997 = vpack.c.b16 %v1986, %v1985
        %v1998 = vpack.c.b16 %v1988, %v1987
        %v1999 = vpack.c.b16 %v1990, %v1989
        %v2000 = vpack.c.b16 %v1992, %v1991
        %2009 = vmatpush.bf16.msra.mxu0 %v2000
        %2010 = vmatpush.bf16.msra.mxu0 %v1999
        %2011 = vmatpush.bf16.msra.mxu0 %v1998
        %2012 = vmatpush.bf16.msra.mxu0 %v1997
        %2013 = vmatpush.bf16.msra.mxu0 %v1996
        %2014 = vmatpush.bf16.msra.mxu0 %v1995
        %2015 = vmatpush.bf16.msra.mxu0 %v1994
        %2016 = vmatpush.bf16.msra.mxu0 %v1993
        %2017 = vmatmul.bf16.gmra.mxu0 %v1960
        %v2018 = vpop.f32.mrf.mxu0
        %v2019 = vadd.f32 0.0, %v2018
        %v2020 = vpop.f32.mrf.mxu0
        %2021 = vdwg.mxu0
        %v2022 = vadd.f32 %v1896, %v2019
        %v2024 = vperm.slane %v1548, 0
        %v2026 = vadd.f32 %v2022, %v2024
        %vm2027 = vcmask 261124
        %2028 = vst.msk [vmem:[#allocation2 - $0x4] sm:$0xf0] %vm2027, %v2026
        %v2029 = vld [vmem:[%s1400] sm:$0xff]
        %2030 = vst.msk [vmem:[#allocation2 + $0x4] sm:$0xff] %vm1549, %v2029
        %v2031 = vld [vmem:[#allocation2] sm:$0xff]
        %v2032 = vld [vmem:[#allocation2 + $0x8] sm:$0xf]
        %v2033 = vld [vmem:[%s35] sm:$0xff]
        %v2034 = vld [vmem:[%s35 + $0x8] sm:$0xf]
        %v2035 = vadd.f32 %v2031, %v2033
        %v2036 = vadd.f32 %v2032, %v2034
        %v2037 = vld [vmem:[%s37] sm:$0x1]
        %v2038 = vld [vmem:[%s39] sm:$0x1]
        %v2039 = vld [vmem:[%s41] sm:$0xf]
        %v2040 = vld [vmem:[%s41 + $0x4] sm:$0xf]
        %v2041 = vld [vmem:[%s41 + $0x8] sm:$0xf]
        %v2042 = vld [vmem:[%s41 + $0xc] sm:$0xf]
        %v2043 = vld [vmem:[%s43] sm:$0x1]
        %v2044 = vld [vmem:[%s45] sm:$0xf]
        %v2045 = vld [vmem:[%s45 + $0x4] sm:$0xf]
        %v2046 = vld [vmem:[%s45 + $0x8] sm:$0xf]
        %v2047 = vld [vmem:[%s45 + $0xc] sm:$0xf]
        %v2048 = vld [vmem:[%s47] sm:$0x1]
        %v2049 = vld [vmem:[%s49] sm:$0x1]
        %v2050 = vld [vmem:[%s51] sm:$0x1]
        %v2051 = vld [vmem:[%s53] sm:$0xf]
        %v2052 = vld [vmem:[%s53 + $0x4] sm:$0xf]
        %v2053 = vld [vmem:[%s53 + $0x8] sm:$0xf]
        %v2054 = vld [vmem:[%s53 + $0xc] sm:$0xf]
        %v2055 = vld [vmem:[%s55] sm:$0x1]
        %v2056 = vld [vmem:[%s57] sm:$0xf]
        %v2057 = vld [vmem:[%s57 + $0x4] sm:$0xf]
        %v2058 = vld [vmem:[%s57 + $0x8] sm:$0xf]
        %v2059 = vld [vmem:[%s57 + $0xc] sm:$0xf]
        %v2060 = vld [vmem:[%s57 + $0x10] sm:$0xf]
        %v2061 = vld [vmem:[%s57 + $0x14] sm:$0xf]
        %v2062 = vld [vmem:[%s57 + $0x18] sm:$0xf]
        %v2063 = vld [vmem:[%s57 + $0x1c] sm:$0xf]
        %v2064 = vld [vmem:[%s57 + $0x20] sm:$0xf]
        %v2065 = vld [vmem:[%s57 + $0x24] sm:$0xf]
        %v2066 = vld [vmem:[%s57 + $0x28] sm:$0xf]
        %v2067 = vld [vmem:[%s57 + $0x2c] sm:$0xf]
        %v2068 = vld [vmem:[%s57 + $0x30] sm:$0xf]
        %v2069 = vld [vmem:[%s57 + $0x34] sm:$0xf]
        %v2070 = vld [vmem:[%s57 + $0x38] sm:$0xf]
        %v2071 = vld [vmem:[%s57 + $0x3c] sm:$0xf]
        %v2072 = vld [vmem:[%s59] sm:$0x1]
        %v2073 = vsel %vm1549, %v2035, 0.0
        %2074 = vadd.xlane.f32.xlu0 %v2073
        %v2075 = vpop.xlane.xlu0 %2074
        %v2076 = vsel %vm1510, %v2036, 0.0
        %2077 = vadd.xlane.f32.xlu0 %v2076
        %v2078 = vpop.xlane.xlu0 %2077
        %v2079 = vmul.f32 %v2075, %v1559
        %v2080 = vmul.f32 %v2078, %v1559
        %v2081 = vsub.f32 %v2035, %v2079
        %v2082 = vsub.f32 %v2036, %v2080
        %v2083 = vmul.f32 %v2081, %v2081
        %v2084 = vmul.f32 %v2082, %v2082
        %v2085 = vsel %vm1549, %v2083, 0.0
        %2086 = vadd.xlane.f32.xlu0 %v2085
        %v2087 = vpop.xlane.xlu0 %2086
        %v2088 = vsel %vm1510, %v2084, 0.0
        %2089 = vadd.xlane.f32.xlu0 %v2088
        %v2090 = vpop.xlane.xlu0 %2089
        %v2091 = vmul.f32 %v2087, %v1559
        %v2092 = vmul.f32 %v2090, %v1559
        %v2093 = vadd.f32 %v2091, 1e-05
        %v2094 = vadd.f32 %v2092, 1e-05
        %v2095 = vrsqrt.pop %v2093
        %v2096 = vmul.f32 %v2095, %v2093
        %v2097 = vmul.f32 %v2096, %v2095
        %v2098 = vmul.f32 0.5, %v2097
        %v2099 = vsub.f32 1.5, %v2098
        %v2100 = vmul.f32 %v2095, %v2099
        %vm2101 = vweird.f32 %v2093
        %vm2102 = vweird.f32 %v2095
        %vm2103 = vmor %vm2101, %vm2102
        %v2104 = vsel %vm2103, %v2095, %v2100
        %v2105 = vrsqrt.pop %v2094
        %v2106 = vmul.f32 %v2105, %v2094
        %v2107 = vmul.f32 %v2106, %v2105
        %v2108 = vmul.f32 0.5, %v2107
        %v2109 = vsub.f32 1.5, %v2108
        %v2110 = vmul.f32 %v2105, %v2109
        %vm2111 = vweird.f32 %v2094
        %vm2112 = vweird.f32 %v2105
        %vm2113 = vmor %vm2111, %vm2112
        %v2114 = vsel %vm2113, %v2105, %v2110
        %v2115 = vmul.f32 %v2081, %v2104
        %v2116 = vmul.f32 %v2082, %v2114
        %v2118 = vperm.slane %v2037, 0
        %v2120 = vmul.f32 %v2115, %v2118
        %v2121 = vmul.f32 %v2116, %v2118
        %v2123 = vperm.slane %v2038, 0
        %v2125 = vadd.f32 %v2120, %v2123
        %v2126 = vadd.f32 %v2121, %v2123
        %v2127 = vpack.c.bf16 %v2126, %v2125
        %v2129 = vperm.slane %v2043, 0
        %v2135 = vunpack.c.l.b16 %v2039
        %v2136 = vunpack.c.l.b16 %v2040
        %v2137 = vunpack.c.l.b16 %v2041
        %v2138 = vunpack.c.l.b16 %v2042
        %v2139 = vpack.c.b16 %v2136, %v2135
        %v2140 = vpack.c.b16 %v2138, %v2137
        %v2144 = vsel %vm1549, %v2127, 0
        %2146 = vmatpush.bf16.msra.mxu0 0
        %2147 = vmatpush.bf16.msra.mxu0 0
        %2148 = vmatpush.bf16.msra.mxu0 0
        %2149 = vmatpush.bf16.msra.mxu0 0
        %2150 = vmatpush.bf16.msra.mxu0 0
        %2151 = vmatpush.bf16.msra.mxu0 0
        %2152 = vmatpush.bf16.msra.mxu0 %v2140
        %2153 = vmatpush.bf16.msra.mxu0 %v2139
        %2154 = vmatmul.bf16.gmra.mxu0 %v2144
        %v2155 = vpop.f32.mrf.mxu0
        %v2156 = vadd.f32 %v2129, %v2155
        %v2157 = vpop.f32.mrf.mxu0
        %v2158 = vadd.f32 %v2129, %v2157
        %2159 = vdwg.mxu0
        %v2160 = vpack.c.bf16 %v2156, %v2156
        %v2161 = vpack.c.bf16 %v2158, %v2158
        %v2162 = vlaneseq
        %v2163 = vshrl.u32 %v2162, 7
        %v2164 = vadd.s32 %v2163, 8
        %v2165 = vlaneseq
        %v2166 = vand.u32 %v2165, 127
        %vm2167 = vcmp.ge.s32.totalorder %v2163, %v2166
        %vm2168 = vcmp.ge.s32.totalorder %v2164, %v2166
        %v2171 = vunpack.c.l.b16 %v2160
        %v2172 = vunpack.c.l.b16 %v2161
        %v2173 = vpack.c.b16 %v2172, %v2171
        %2174 = vrot.lane.b32.xlu0 %v2173, 96
        %v2175 = vpop.permute.xlu0 %2174
        %v2177 = vsel %vm1625, %v2173, 0
        %v2180 = vsel %vm1625, %v2175, 0
        %2182 = vmatpush.bf16.xpose.msra.mxu0 0
        %2183 = vmatpush.bf16.xpose.msra.mxu0 0
        %2184 = vmatpush.bf16.xpose.msra.mxu0 0
        %2185 = vmatpush.bf16.xpose.msra.mxu0 0
        %2186 = vmatpush.bf16.xpose.msra.mxu0 0
        %2187 = vmatpush.bf16.xpose.msra.mxu0 0
        %2188 = vmatpush.bf16.xpose.msra.mxu0 0
        %2189 = vmatpush.bf16.xpose.msra.mxu0 %v2180
        %2190 = vmatmul.bf16.gmra.mxu0 %v2177
        %v2191 = vpop.f32.mrf.mxu0
        %v2192 = vadd.f32 0.0, %v2191
        %v2193 = vpop.f32.mrf.mxu0
        %v2194 = vadd.f32 0.0, %v2193
        %2195 = vdwg.mxu0
        %v2196 = vsel %vm2167, %v2192, -1e+30
        %v2197 = vsel %vm2168, %v2194, -1e+30
        %vm2198 = vcmask 97280
        %v2199 = vsel %vm2198, %v2196, -inf
        %2200 = vmax.xlane.f32.xlu0 %v2199
        %v2201 = vpop.xlane.xlu0 %2200
        %vm2202 = vcmask 93184
        %v2203 = vsel %vm2202, %v2197, -inf
        %2204 = vmax.xlane.f32.xlu0 %v2203
        %v2205 = vpop.xlane.xlu0 %2204
        %v2206 = vsub.f32 %v2196, %v2201
        %v2207 = vsub.f32 %v2197, %v2205
        %v2208 = vmul.f32 %v2206, 1.442695
        %v2209 = vpow.pop %v2208
        %v2210 = vmul.f32 %v2207, 1.442695
        %v2211 = vpow.pop %v2210
        %v2212 = vsel %vm2198, %v2209, 0.0
        %2213 = vadd.xlane.f32.xlu0 %v2212
        %v2214 = vpop.xlane.xlu0 %2213
        %v2215 = vsel %vm2202, %v2211, 0.0
        %2216 = vadd.xlane.f32.xlu0 %v2215
        %v2217 = vpop.xlane.xlu0 %2216
        %v2218 = vrcp.pop %v2214
        %v2219 = vrcp.pop %v2217
        %v2220 = vmul.f32 %v2209, %v2218
        %v2221 = vmul.f32 %v2211, %v2219
        %v2222 = vpack.c.bf16 %v2221, %v2220
        %2223 = vrot.lane.b32.xlu0 %v2173, 64
        %v2224 = vpop.permute.xlu0 %2223
        %v2226 = vsel %vm2198, %v2222, 0
        %vm2228 = vcmask 1045504
        %v2230 = vsel %vm2228, %v2224, 0
        %2232 = vmatpush.bf16.msra.mxu0 0
        %2233 = vmatpush.bf16.msra.mxu0 0
        %2234 = vmatpush.bf16.msra.mxu0 0
        %2235 = vmatpush.bf16.msra.mxu0 0
        %2236 = vmatpush.bf16.msra.mxu0 0
        %2237 = vmatpush.bf16.msra.mxu0 0
        %2238 = vmatpush.bf16.msra.mxu0 0
        %2239 = vmatpush.bf16.msra.mxu0 %v2230
        %2240 = vmatmul.bf16.gmra.mxu0 %v2226
        %v2241 = vpop.f32.mrf.mxu0
        %v2242 = vadd.f32 0.0, %v2241
        %v2243 = vpop.f32.mrf.mxu0
        %v2244 = vadd.f32 0.0, %v2243
        %2245 = vdwg.mxu0
        %2246 = vrot.lane.b32.xlu0 %v2173, 120
        %v2247 = vpop.permute.xlu0 %2246
        %2248 = vrot.lane.b32.xlu0 %v2173, 88
        %v2249 = vpop.permute.xlu0 %2248
        %v2251 = vsel %vm1625, %v2247, 0
        %v2254 = vsel %vm1625, %v2249, 0
        %2256 = vmatpush.bf16.xpose.msra.mxu0 0
        %2257 = vmatpush.bf16.xpose.msra.mxu0 0
        %2258 = vmatpush.bf16.xpose.msra.mxu0 0
        %2259 = vmatpush.bf16.xpose.msra.mxu0 0
        %2260 = vmatpush.bf16.xpose.msra.mxu0 0
        %2261 = vmatpush.bf16.xpose.msra.mxu0 0
        %2262 = vmatpush.bf16.xpose.msra.mxu0 0
        %2263 = vmatpush.bf16.xpose.msra.mxu0 %v2254
        %2264 = vmatmul.bf16.gmra.mxu0 %v2251
        %v2265 = vpop.f32.mrf.mxu0
        %v2266 = vadd.f32 0.0, %v2265
        %v2267 = vpop.f32.mrf.mxu0
        %v2268 = vadd.f32 0.0, %v2267
        %2269 = vdwg.mxu0
        %v2270 = vsel %vm2167, %v2266, -1e+30
        %v2271 = vsel %vm2168, %v2268, -1e+30
        %v2272 = vsel %vm2198, %v2270, -inf
        %2273 = vmax.xlane.f32.xlu0 %v2272
        %v2274 = vpop.xlane.xlu0 %2273
        %v2275 = vsel %vm2202, %v2271, -inf
        %2276 = vmax.xlane.f32.xlu0 %v2275
        %v2277 = vpop.xlane.xlu0 %2276
        %v2278 = vsub.f32 %v2270, %v2274
        %v2279 = vsub.f32 %v2271, %v2277
        %v2280 = vmul.f32 %v2278, 1.442695
        %v2281 = vpow.pop %v2280
        %v2282 = vmul.f32 %v2279, 1.442695
        %v2283 = vpow.pop %v2282
        %v2284 = vsel %vm2198, %v2281, 0.0
        %2285 = vadd.xlane.f32.xlu0 %v2284
        %v2286 = vpop.xlane.xlu0 %2285
        %v2287 = vsel %vm2202, %v2283, 0.0
        %2288 = vadd.xlane.f32.xlu0 %v2287
        %v2289 = vpop.xlane.xlu0 %2288
        %v2290 = vrcp.pop %v2286
        %v2291 = vrcp.pop %v2289
        %v2292 = vmul.f32 %v2281, %v2290
        %v2293 = vmul.f32 %v2283, %v2291
        %v2294 = vpack.c.bf16 %v2293, %v2292
        %2295 = vrot.lane.b32.xlu0 %v2173, 56
        %v2296 = vpop.permute.xlu0 %2295
        %v2298 = vsel %vm2198, %v2294, 0
        %v2301 = vsel %vm2228, %v2296, 0
        %2303 = vmatpush.bf16.msra.mxu0 0
        %2304 = vmatpush.bf16.msra.mxu0 0
        %2305 = vmatpush.bf16.msra.mxu0 0
        %2306 = vmatpush.bf16.msra.mxu0 0
        %2307 = vmatpush.bf16.msra.mxu0 0
        %2308 = vmatpush.bf16.msra.mxu0 0
        %2309 = vmatpush.bf16.msra.mxu0 0
        %2310 = vmatpush.bf16.msra.mxu0 %v2301
        %2311 = vmatmul.bf16.gmra.mxu0 %v2298
        %v2312 = vpop.f32.mrf.mxu0
        %v2313 = vadd.f32 0.0, %v2312
        %v2314 = vpop.f32.mrf.mxu0
        %v2315 = vadd.f32 0.0, %v2314
        %2316 = vdwg.mxu0
        %2317 = vrot.lane.b32.xlu0 %v2173, 112
        %v2318 = vpop.permute.xlu0 %2317
        %2319 = vrot.lane.b32.xlu0 %v2173, 80
        %v2320 = vpop.permute.xlu0 %2319
        %v2322 = vsel %vm1625, %v2318, 0
        %v2325 = vsel %vm1625, %v2320, 0
        %2327 = vmatpush.bf16.xpose.msra.mxu0 0
        %2328 = vmatpush.bf16.xpose.msra.mxu0 0
        %2329 = vmatpush.bf16.xpose.msra.mxu0 0
        %2330 = vmatpush.bf16.xpose.msra.mxu0 0
        %2331 = vmatpush.bf16.xpose.msra.mxu0 0
        %2332 = vmatpush.bf16.xpose.msra.mxu0 0
        %2333 = vmatpush.bf16.xpose.msra.mxu0 0
        %2334 = vmatpush.bf16.xpose.msra.mxu0 %v2325
        %2335 = vmatmul.bf16.gmra.mxu0 %v2322
        %v2336 = vpop.f32.mrf.mxu0
        %v2337 = vadd.f32 0.0, %v2336
        %v2338 = vpop.f32.mrf.mxu0
        %v2339 = vadd.f32 0.0, %v2338
        %2340 = vdwg.mxu0
        %v2341 = vsel %vm2167, %v2337, -1e+30
        %v2342 = vsel %vm2168, %v2339, -1e+30
        %v2343 = vsel %vm2198, %v2341, -inf
        %2344 = vmax.xlane.f32.xlu0 %v2343
        %v2345 = vpop.xlane.xlu0 %2344
        %v2346 = vsel %vm2202, %v2342, -inf
        %2347 = vmax.xlane.f32.xlu0 %v2346
        %v2348 = vpop.xlane.xlu0 %2347
        %v2349 = vsub.f32 %v2341, %v2345
        %v2350 = vsub.f32 %v2342, %v2348
        %v2351 = vmul.f32 %v2349, 1.442695
        %v2352 = vpow.pop %v2351
        %v2353 = vmul.f32 %v2350, 1.442695
        %v2354 = vpow.pop %v2353
        %v2355 = vsel %vm2198, %v2352, 0.0
        %2356 = vadd.xlane.f32.xlu0 %v2355
        %v2357 = vpop.xlane.xlu0 %2356
        %v2358 = vsel %vm2202, %v2354, 0.0
        %2359 = vadd.xlane.f32.xlu0 %v2358
        %v2360 = vpop.xlane.xlu0 %2359
        %v2361 = vrcp.pop %v2357
        %v2362 = vrcp.pop %v2360
        %v2363 = vmul.f32 %v2352, %v2361
        %v2364 = vmul.f32 %v2354, %v2362
        %v2365 = vpack.c.bf16 %v2364, %v2363
        %2366 = vrot.lane.b32.xlu0 %v2173, 48
        %v2367 = vpop.permute.xlu0 %2366
        %v2369 = vsel %vm2198, %v2365, 0
        %v2372 = vsel %vm2228, %v2367, 0
        %2374 = vmatpush.bf16.msra.mxu0 0
        %2375 = vmatpush.bf16.msra.mxu0 0
        %2376 = vmatpush.bf16.msra.mxu0 0
        %2377 = vmatpush.bf16.msra.mxu0 0
        %2378 = vmatpush.bf16.msra.mxu0 0
        %2379 = vmatpush.bf16.msra.mxu0 0
        %2380 = vmatpush.bf16.msra.mxu0 0
        %2381 = vmatpush.bf16.msra.mxu0 %v2372
        %2382 = vmatmul.bf16.gmra.mxu0 %v2369
        %v2383 = vpop.f32.mrf.mxu0
        %v2384 = vadd.f32 0.0, %v2383
        %v2385 = vpop.f32.mrf.mxu0
        %v2386 = vadd.f32 0.0, %v2385
        %2387 = vdwg.mxu0
        %2388 = vrot.lane.b32.xlu0 %v2173, 104
        %v2389 = vpop.permute.xlu0 %2388
        %2390 = vrot.lane.b32.xlu0 %v2173, 72
        %v2391 = vpop.permute.xlu0 %2390
        %v2393 = vsel %vm1625, %v2389, 0
        %v2396 = vsel %vm1625, %v2391, 0
        %2398 = vmatpush.bf16.xpose.msra.mxu0 0
        %2399 = vmatpush.bf16.xpose.msra.mxu0 0
        %2400 = vmatpush.bf16.xpose.msra.mxu0 0
        %2401 = vmatpush.bf16.xpose.msra.mxu0 0
        %2402 = vmatpush.bf16.xpose.msra.mxu0 0
        %2403 = vmatpush.bf16.xpose.msra.mxu0 0
        %2404 = vmatpush.bf16.xpose.msra.mxu0 0
        %2405 = vmatpush.bf16.xpose.msra.mxu0 %v2396
        %2406 = vmatmul.bf16.gmra.mxu0 %v2393
        %v2407 = vpop.f32.mrf.mxu0
        %v2408 = vadd.f32 0.0, %v2407
        %v2409 = vpop.f32.mrf.mxu0
        %v2410 = vadd.f32 0.0, %v2409
        %2411 = vdwg.mxu0
        %v2412 = vsel %vm2167, %v2408, -1e+30
        %v2413 = vsel %vm2168, %v2410, -1e+30
        %v2414 = vsel %vm2198, %v2412, -inf
        %2415 = vmax.xlane.f32.xlu0 %v2414
        %v2416 = vpop.xlane.xlu0 %2415
        %v2417 = vsel %vm2202, %v2413, -inf
        %2418 = vmax.xlane.f32.xlu0 %v2417
        %v2419 = vpop.xlane.xlu0 %2418
        %v2420 = vsub.f32 %v2412, %v2416
        %v2421 = vsub.f32 %v2413, %v2419
        %v2422 = vmul.f32 %v2420, 1.442695
        %v2423 = vpow.pop %v2422
        %v2424 = vmul.f32 %v2421, 1.442695
        %v2425 = vpow.pop %v2424
        %v2426 = vsel %vm2198, %v2423, 0.0
        %2427 = vadd.xlane.f32.xlu0 %v2426
        %v2428 = vpop.xlane.xlu0 %2427
        %v2429 = vsel %vm2202, %v2425, 0.0
        %2430 = vadd.xlane.f32.xlu0 %v2429
        %v2431 = vpop.xlane.xlu0 %2430
        %v2432 = vrcp.pop %v2428
        %v2433 = vrcp.pop %v2431
        %v2434 = vmul.f32 %v2423, %v2432
        %v2435 = vmul.f32 %v2425, %v2433
        %v2436 = vpack.c.bf16 %v2435, %v2434
        %2437 = vrot.lane.b32.xlu0 %v2173, 40
        %v2438 = vpop.permute.xlu0 %2437
        %v2440 = vsel %vm2198, %v2436, 0
        %v2443 = vsel %vm2228, %v2438, 0
        %2445 = vmatpush.bf16.msra.mxu0 0
        %2446 = vmatpush.bf16.msra.mxu0 0
        %2447 = vmatpush.bf16.msra.mxu0 0
        %2448 = vmatpush.bf16.msra.mxu0 0
        %2449 = vmatpush.bf16.msra.mxu0 0
        %2450 = vmatpush.bf16.msra.mxu0 0
        %2451 = vmatpush.bf16.msra.mxu0 0
        %2452 = vmatpush.bf16.msra.mxu0 %v2443
        %2453 = vmatmul.bf16.gmra.mxu0 %v2440
        %v2454 = vpop.f32.mrf.mxu0
        %v2455 = vadd.f32 0.0, %v2454
        %v2456 = vpop.f32.mrf.mxu0
        %v2457 = vadd.f32 0.0, %v2456
        %2458 = vdwg.mxu0
        %2461 = vrot.lane.b32.xlu0 %v2313, 8
        %v2462 = vpop.permute.xlu0 %2461
        %2463 = vrot.lane.b32.xlu0 %v2315, 8
        %v2464 = vpop.permute.xlu0 %2463
        %2469 = vrot.lane.b32.xlu0 %v2384, 16
        %v2470 = vpop.permute.xlu0 %2469
        %2471 = vrot.lane.b32.xlu0 %v2386, 16
        %v2472 = vpop.permute.xlu0 %2471
        %2477 = vrot.lane.b32.xlu0 %v2455, 24
        %v2478 = vpop.permute.xlu0 %2477
        %2479 = vrot.lane.b32.xlu0 %v2457, 24
        %v2480 = vpop.permute.xlu0 %2479
        %v2483 = vsel %vm1625, %v2242, %v2462
        %v2484 = vsel %vm1625, %v2244, %v2464
        %v2485 = vsel %vm1418, %v2483, %v2470
        %v2486 = vsel %vm1418, %v2484, %v2472
        %v2487 = vsel %vm1861, %v2485, %v2478
        %v2488 = vsel %vm1861, %v2486, %v2480
        %v2489 = vpack.c.bf16 %v2488, %v2487
        %v2494 = vunpack.c.l.b16 %v2044
        %v2495 = vunpack.c.l.b16 %v2045
        %v2496 = vunpack.c.l.b16 %v2046
        %v2497 = vunpack.c.l.b16 %v2047
        %v2498 = vpack.c.b16 %v2495, %v2494
        %v2499 = vpack.c.b16 %v2497, %v2496
        %v2503 = vsel %vm1549, %v2489, 0
        %2505 = vmatpush.bf16.msra.mxu0 0
        %2506 = vmatpush.bf16.msra.mxu0 0
        %2507 = vmatpush.bf16.msra.mxu0 0
        %2508 = vmatpush.bf16.msra.mxu0 0
        %2509 = vmatpush.bf16.msra.mxu0 0
        %2510 = vmatpush.bf16.msra.mxu0 0
        %2511 = vmatpush.bf16.msra.mxu0 %v2499
        %2512 = vmatpush.bf16.msra.mxu0 %v2498
        %2513 = vmatmul.bf16.gmra.mxu0 %v2503
        %v2514 = vpop.f32.mrf.mxu0
        %v2515 = vadd.f32 0.0, %v2514
        %v2516 = vpop.f32.mrf.mxu0
        %v2517 = vadd.f32 0.0, %v2516
        %2518 = vdwg.mxu0
        %v2519 = vadd.f32 %v2035, %v2515
        %v2520 = vadd.f32 %v2036, %v2517
        %v2522 = vperm.slane %v2048, 0
        %v2524 = vadd.f32 %v2519, %v2522
        %v2525 = vadd.f32 %v2520, %v2522
        %v2526 = vsel %vm1549, %v2524, 0.0
        %2527 = vadd.xlane.f32.xlu0 %v2526
        %v2528 = vpop.xlane.xlu0 %2527
        %v2529 = vsel %vm1510, %v2525, 0.0
        %2530 = vadd.xlane.f32.xlu0 %v2529
        %v2531 = vpop.xlane.xlu0 %2530
        %v2532 = vmul.f32 %v2528, %v1559
        %v2533 = vmul.f32 %v2531, %v1559
        %v2534 = vsub.f32 %v2524, %v2532
        %v2535 = vsub.f32 %v2525, %v2533
        %v2536 = vmul.f32 %v2534, %v2534
        %v2537 = vmul.f32 %v2535, %v2535
        %v2538 = vsel %vm1549, %v2536, 0.0
        %2539 = vadd.xlane.f32.xlu0 %v2538
        %v2540 = vpop.xlane.xlu0 %2539
        %v2541 = vsel %vm1510, %v2537, 0.0
        %2542 = vadd.xlane.f32.xlu0 %v2541
        %v2543 = vpop.xlane.xlu0 %2542
        %v2544 = vmul.f32 %v2540, %v1559
        %v2545 = vmul.f32 %v2543, %v1559
        %v2546 = vadd.f32 %v2544, 1e-05
        %v2547 = vadd.f32 %v2545, 1e-05
        %v2548 = vrsqrt.pop %v2546
        %v2549 = vmul.f32 %v2548, %v2546
        %v2550 = vmul.f32 %v2549, %v2548
        %v2551 = vmul.f32 0.5, %v2550
        %v2552 = vsub.f32 1.5, %v2551
        %v2553 = vmul.f32 %v2548, %v2552
        %vm2554 = vweird.f32 %v2546
        %vm2555 = vweird.f32 %v2548
        %vm2556 = vmor %vm2554, %vm2555
        %v2557 = vsel %vm2556, %v2548, %v2553
        %v2558 = vrsqrt.pop %v2547
        %v2559 = vmul.f32 %v2558, %v2547
        %v2560 = vmul.f32 %v2559, %v2558
        %v2561 = vmul.f32 0.5, %v2560
        %v2562 = vsub.f32 1.5, %v2561
        %v2563 = vmul.f32 %v2558, %v2562
        %vm2564 = vweird.f32 %v2547
        %vm2565 = vweird.f32 %v2558
        %vm2566 = vmor %vm2564, %vm2565
        %v2567 = vsel %vm2566, %v2558, %v2563
        %v2568 = vmul.f32 %v2534, %v2557
        %v2569 = vmul.f32 %v2535, %v2567
        %v2571 = vperm.slane %v2049, 0
        %v2573 = vmul.f32 %v2568, %v2571
        %v2574 = vmul.f32 %v2569, %v2571
        %v2576 = vperm.slane %v2050, 0
        %v2578 = vadd.f32 %v2573, %v2576
        %v2579 = vadd.f32 %v2574, %v2576
        %v2580 = vpack.c.bf16 %v2579, %v2578
        %v2582 = vperm.slane %v2055, 0
        %v2588 = vunpack.c.l.b16 %v2051
        %v2589 = vunpack.c.l.b16 %v2052
        %v2590 = vunpack.c.l.b16 %v2053
        %v2591 = vunpack.c.l.b16 %v2054
        %v2592 = vpack.c.b16 %v2589, %v2588
        %v2593 = vpack.c.b16 %v2591, %v2590
        %v2597 = vsel %vm1549, %v2580, 0
        %2599 = vmatpush.bf16.msra.mxu0 0
        %2600 = vmatpush.bf16.msra.mxu0 0
        %2601 = vmatpush.bf16.msra.mxu0 0
        %2602 = vmatpush.bf16.msra.mxu0 0
        %2603 = vmatpush.bf16.msra.mxu0 0
        %2604 = vmatpush.bf16.msra.mxu0 0
        %2605 = vmatpush.bf16.msra.mxu0 %v2593
        %2606 = vmatpush.bf16.msra.mxu0 %v2592
        %2607 = vmatmul.bf16.gmra.mxu0 %v2597
        %v2608 = vpop.f32.mrf.mxu0
        %v2609 = vadd.f32 %v2582, %v2608
        %v2610 = vpop.f32.mrf.mxu0
        %v2611 = vadd.f32 %v2582, %v2610
        %2612 = vdwg.mxu0
        %v2613 = vmul.f32 %v2609, 0.5
        %v2614 = vmul.f32 %v2611, 0.5
        %v2615 = vmul.f32 %v2609, 0.044715
        %v2616 = vmul.f32 %v2611, 0.044715
        %v2617 = vmul.f32 %v2615, %v2609
        %v2618 = vmul.f32 %v2616, %v2611
        %v2619 = vmul.f32 %v2617, %v2609
        %v2620 = vmul.f32 %v2618, %v2611
        %v2621 = vadd.f32 %v2609, %v2619
        %v2622 = vadd.f32 %v2611, %v2620
        %v2623 = vmul.f32 %v2621, 0.7978846
        %v2624 = vmul.f32 %v2622, 0.7978846
        %v2625 = vtanh.pop %v2623
        %v2626 = vtanh.pop %v2624
        %v2627 = vadd.f32 %v2625, 1.0
        %v2628 = vadd.f32 %v2626, 1.0
        %v2629 = vmul.f32 %v2613, %v2627
        %v2630 = vmul.f32 %v2614, %v2628
        %v2631 = vpack.c.bf16 %v2630, %v2629
        %v2648 = vunpack.c.l.b16 %v2056
        %v2649 = vunpack.c.l.b16 %v2057
        %v2650 = vunpack.c.l.b16 %v2058
        %v2651 = vunpack.c.l.b16 %v2059
        %v2652 = vunpack.c.l.b16 %v2060
        %v2653 = vunpack.c.l.b16 %v2061
        %v2654 = vunpack.c.l.b16 %v2062
        %v2655 = vunpack.c.l.b16 %v2063
        %v2656 = vunpack.c.l.b16 %v2064
        %v2657 = vunpack.c.l.b16 %v2065
        %v2658 = vunpack.c.l.b16 %v2066
        %v2659 = vunpack.c.l.b16 %v2067
        %v2660 = vunpack.c.l.b16 %v2068
        %v2661 = vunpack.c.l.b16 %v2069
        %v2662 = vunpack.c.l.b16 %v2070
        %v2663 = vunpack.c.l.b16 %v2071
        %v2664 = vpack.c.b16 %v2649, %v2648
        %v2665 = vpack.c.b16 %v2651, %v2650
        %v2666 = vpack.c.b16 %v2653, %v2652
        %v2667 = vpack.c.b16 %v2655, %v2654
        %v2668 = vpack.c.b16 %v2657, %v2656
        %v2669 = vpack.c.b16 %v2659, %v2658
        %v2670 = vpack.c.b16 %v2661, %v2660
        %v2671 = vpack.c.b16 %v2663, %v2662
        %2680 = vmatpush.bf16.msra.mxu0 %v2671
        %2681 = vmatpush.bf16.msra.mxu0 %v2670
        %2682 = vmatpush.bf16.msra.mxu0 %v2669
        %2683 = vmatpush.bf16.msra.mxu0 %v2668
        %2684 = vmatpush.bf16.msra.mxu0 %v2667
        %2685 = vmatpush.bf16.msra.mxu0 %v2666
        %2686 = vmatpush.bf16.msra.mxu0 %v2665
        %2687 = vmatpush.bf16.msra.mxu0 %v2664
        %2688 = vmatmul.bf16.gmra.mxu0 %v2631
        %v2689 = vpop.f32.mrf.mxu0
        %v2690 = vadd.f32 0.0, %v2689
        %v2691 = vpop.f32.mrf.mxu0
        %v2692 = vadd.f32 0.0, %v2691
        %2693 = vdwg.mxu0
        %v2694 = vadd.f32 %v2524, %v2690
        %v2695 = vadd.f32 %v2525, %v2692
        %v2697 = vperm.slane %v2072, 0
        %v2699 = vadd.f32 %v2694, %v2697
        %v2700 = vadd.f32 %v2695, %v2697
        %v2701 = vld [vmem:[%s61] sm:$0x1]
        %v2702 = vld [vmem:[%s63] sm:$0x1]
        %v2703 = vld [vmem:[%s65] sm:$0xf]
        %v2704 = vld [vmem:[%s65 + $0x4] sm:$0xf]
        %v2705 = vld [vmem:[%s65 + $0x8] sm:$0xf]
        %v2706 = vld [vmem:[%s65 + $0xc] sm:$0xf]
        %v2707 = vld [vmem:[%s67] sm:$0x1]
        %v2708 = vld [vmem:[%s69] sm:$0xf]
        %v2709 = vld [vmem:[%s69 + $0x4] sm:$0xf]
        %v2710 = vld [vmem:[%s69 + $0x8] sm:$0xf]
        %v2711 = vld [vmem:[%s69 + $0xc] sm:$0xf]
        %v2712 = vld [vmem:[%s71] sm:$0x1]
        %v2713 = vld [vmem:[%s73] sm:$0x1]
        %v2714 = vld [vmem:[%s75] sm:$0x1]
        %v2715 = vld [vmem:[%s77] sm:$0xf]
        %v2716 = vld [vmem:[%s77 + $0x4] sm:$0xf]
        %v2717 = vld [vmem:[%s77 + $0x8] sm:$0xf]
        %v2718 = vld [vmem:[%s77 + $0xc] sm:$0xf]
        %v2719 = vld [vmem:[%s79] sm:$0x1]
        %v2720 = vld [vmem:[%s81] sm:$0xf]
        %v2721 = vld [vmem:[%s81 + $0x4] sm:$0xf]
        %v2722 = vld [vmem:[%s81 + $0x8] sm:$0xf]
        %v2723 = vld [vmem:[%s81 + $0xc] sm:$0xf]
        %v2724 = vld [vmem:[%s81 + $0x10] sm:$0xf]
        %v2725 = vld [vmem:[%s81 + $0x14] sm:$0xf]
        %v2726 = vld [vmem:[%s81 + $0x18] sm:$0xf]
        %v2727 = vld [vmem:[%s81 + $0x1c] sm:$0xf]
        %v2728 = vld [vmem:[%s81 + $0x20] sm:$0xf]
        %v2729 = vld [vmem:[%s81 + $0x24] sm:$0xf]
        %v2730 = vld [vmem:[%s81 + $0x28] sm:$0xf]
        %v2731 = vld [vmem:[%s81 + $0x2c] sm:$0xf]
        %v2732 = vld [vmem:[%s81 + $0x30] sm:$0xf]
        %v2733 = vld [vmem:[%s81 + $0x34] sm:$0xf]
        %v2734 = vld [vmem:[%s81 + $0x38] sm:$0xf]
        %v2735 = vld [vmem:[%s81 + $0x3c] sm:$0xf]
        %v2736 = vld [vmem:[#allocation3] sm:$0x1]
        %v2737 = vsel %vm1549, %v2699, 0.0
        %2738 = vadd.xlane.f32.xlu0 %v2737
        %v2739 = vpop.xlane.xlu0 %2738
        %v2740 = vsel %vm1510, %v2700, 0.0
        %2741 = vadd.xlane.f32.xlu0 %v2740
        %v2742 = vpop.xlane.xlu0 %2741
        %v2743 = vmul.f32 %v2739, %v1559
        %v2744 = vmul.f32 %v2742, %v1559
        %v2745 = vsub.f32 %v2699, %v2743
        %v2746 = vsub.f32 %v2700, %v2744
        %v2747 = vmul.f32 %v2745, %v2745
        %v2748 = vmul.f32 %v2746, %v2746
        %v2749 = vsel %vm1549, %v2747, 0.0
        %2750 = vadd.xlane.f32.xlu0 %v2749
        %v2751 = vpop.xlane.xlu0 %2750
        %v2752 = vsel %vm1510, %v2748, 0.0
        %2753 = vadd.xlane.f32.xlu0 %v2752
        %v2754 = vpop.xlane.xlu0 %2753
        %v2755 = vmul.f32 %v2751, %v1559
        %v2756 = vmul.f32 %v2754, %v1559
        %v2757 = vadd.f32 %v2755, 1e-05
        %v2758 = vadd.f32 %v2756, 1e-05
        %v2759 = vrsqrt.pop %v2757
        %v2760 = vmul.f32 %v2759, %v2757
        %v2761 = vmul.f32 %v2760, %v2759
        %v2762 = vmul.f32 0.5, %v2761
        %v2763 = vsub.f32 1.5, %v2762
        %v2764 = vmul.f32 %v2759, %v2763
        %vm2765 = vweird.f32 %v2757
        %vm2766 = vweird.f32 %v2759
        %vm2767 = vmor %vm2765, %vm2766
        %v2768 = vsel %vm2767, %v2759, %v2764
        %v2769 = vrsqrt.pop %v2758
        %v2770 = vmul.f32 %v2769, %v2758
        %v2771 = vmul.f32 %v2770, %v2769
        %v2772 = vmul.f32 0.5, %v2771
        %v2773 = vsub.f32 1.5, %v2772
        %v2774 = vmul.f32 %v2769, %v2773
        %vm2775 = vweird.f32 %v2758
        %vm2776 = vweird.f32 %v2769
        %vm2777 = vmor %vm2775, %vm2776
        %v2778 = vsel %vm2777, %v2769, %v2774
        %v2779 = vmul.f32 %v2745, %v2768
        %v2780 = vmul.f32 %v2746, %v2778
        %v2782 = vperm.slane %v2701, 0
        %v2784 = vmul.f32 %v2779, %v2782
        %v2785 = vmul.f32 %v2780, %v2782
        %v2787 = vperm.slane %v2702, 0
        %v2789 = vadd.f32 %v2784, %v2787
        %v2790 = vadd.f32 %v2785, %v2787
        %v2791 = vpack.c.bf16 %v2790, %v2789
        %v2793 = vperm.slane %v2707, 0
        %v2799 = vunpack.c.l.b16 %v2703
        %v2800 = vunpack.c.l.b16 %v2704
        %v2801 = vunpack.c.l.b16 %v2705
        %v2802 = vunpack.c.l.b16 %v2706
        %v2803 = vpack.c.b16 %v2800, %v2799
        %v2804 = vpack.c.b16 %v2802, %v2801
        %v2808 = vsel %vm1549, %v2791, 0
        %2810 = vmatpush.bf16.msra.mxu0 0
        %2811 = vmatpush.bf16.msra.mxu0 0
        %2812 = vmatpush.bf16.msra.mxu0 0
        %2813 = vmatpush.bf16.msra.mxu0 0
        %2814 = vmatpush.bf16.msra.mxu0 0
        %2815 = vmatpush.bf16.msra.mxu0 0
        %2816 = vmatpush.bf16.msra.mxu0 %v2804
        %2817 = vmatpush.bf16.msra.mxu0 %v2803
        %2818 = vmatmul.bf16.gmra.mxu0 %v2808
        %v2819 = vpop.f32.mrf.mxu0
        %v2820 = vadd.f32 %v2793, %v2819
        %v2821 = vpop.f32.mrf.mxu0
        %v2822 = vadd.f32 %v2793, %v2821
        %2823 = vdwg.mxu0
        %v2824 = vpack.c.bf16 %v2820, %v2820
        %v2825 = vpack.c.bf16 %v2822, %v2822
        %v2828 = vunpack.c.l.b16 %v2824
        %v2829 = vunpack.c.l.b16 %v2825
        %v2830 = vpack.c.b16 %v2829, %v2828
        %2831 = vrot.lane.b32.xlu0 %v2830, 96
        %v2832 = vpop.permute.xlu0 %2831
        %v2834 = vsel %vm1625, %v2830, 0
        %v2837 = vsel %vm1625, %v2832, 0
        %2839 = vmatpush.bf16.xpose.msra.mxu0 0
        %2840 = vmatpush.bf16.xpose.msra.mxu0 0
        %2841 = vmatpush.bf16.xpose.msra.mxu0 0
        %2842 = vmatpush.bf16.xpose.msra.mxu0 0
        %2843 = vmatpush.bf16.xpose.msra.mxu0 0
        %2844 = vmatpush.bf16.xpose.msra.mxu0 0
        %2845 = vmatpush.bf16.xpose.msra.mxu0 0
        %2846 = vmatpush.bf16.xpose.msra.mxu0 %v2837
        %2847 = vmatmul.bf16.gmra.mxu0 %v2834
        %v2848 = vpop.f32.mrf.mxu0
        %v2849 = vadd.f32 0.0, %v2848
        %v2850 = vpop.f32.mrf.mxu0
        %v2851 = vadd.f32 0.0, %v2850
        %2852 = vdwg.mxu0
        %v2853 = vsel %vm2167, %v2849, -1e+30
        %v2854 = vsel %vm2168, %v2851, -1e+30
        %v2855 = vsel %vm2198, %v2853, -inf
        %2856 = vmax.xlane.f32.xlu0 %v2855
        %v2857 = vpop.xlane.xlu0 %2856
        %v2858 = vsel %vm2202, %v2854, -inf
        %2859 = vmax.xlane.f32.xlu0 %v2858
        %v2860 = vpop.xlane.xlu0 %2859
        %v2861 = vsub.f32 %v2853, %v2857
        %v2862 = vsub.f32 %v2854, %v2860
        %v2863 = vmul.f32 %v2861, 1.442695
        %v2864 = vpow.pop %v2863
        %v2865 = vmul.f32 %v2862, 1.442695
        %v2866 = vpow.pop %v2865
        %v2867 = vsel %vm2198, %v2864, 0.0
        %2868 = vadd.xlane.f32.xlu0 %v2867
        %v2869 = vpop.xlane.xlu0 %2868
        %v2870 = vsel %vm2202, %v2866, 0.0
        %2871 = vadd.xlane.f32.xlu0 %v2870
        %v2872 = vpop.xlane.xlu0 %2871
        %v2873 = vrcp.pop %v2869
        %v2874 = vrcp.pop %v2872
        %v2875 = vmul.f32 %v2864, %v2873
        %v2876 = vmul.f32 %v2866, %v2874
        %v2877 = vpack.c.bf16 %v2876, %v2875
        %2878 = vrot.lane.b32.xlu0 %v2830, 64
        %v2879 = vpop.permute.xlu0 %2878
        %v2881 = vsel %vm2198, %v2877, 0
        %v2884 = vsel %vm2228, %v2879, 0
        %2886 = vmatpush.bf16.msra.mxu0 0
        %2887 = vmatpush.bf16.msra.mxu0 0
        %2888 = vmatpush.bf16.msra.mxu0 0
        %2889 = vmatpush.bf16.msra.mxu0 0
        %2890 = vmatpush.bf16.msra.mxu0 0
        %2891 = vmatpush.bf16.msra.mxu0 0
        %2892 = vmatpush.bf16.msra.mxu0 0
        %2893 = vmatpush.bf16.msra.mxu0 %v2884
        %2894 = vmatmul.bf16.gmra.mxu0 %v2881
        %v2895 = vpop.f32.mrf.mxu0
        %v2896 = vadd.f32 0.0, %v2895
        %v2897 = vpop.f32.mrf.mxu0
        %v2898 = vadd.f32 0.0, %v2897
        %2899 = vdwg.mxu0
        %2900 = vrot.lane.b32.xlu0 %v2830, 120
        %v2901 = vpop.permute.xlu0 %2900
        %2902 = vrot.lane.b32.xlu0 %v2830, 88
        %v2903 = vpop.permute.xlu0 %2902
        %v2905 = vsel %vm1625, %v2901, 0
        %v2908 = vsel %vm1625, %v2903, 0
        %2910 = vmatpush.bf16.xpose.msra.mxu0 0
        %2911 = vmatpush.bf16.xpose.msra.mxu0 0
        %2912 = vmatpush.bf16.xpose.msra.mxu0 0
        %2913 = vmatpush.bf16.xpose.msra.mxu0 0
        %2914 = vmatpush.bf16.xpose.msra.mxu0 0
        %2915 = vmatpush.bf16.xpose.msra.mxu0 0
        %2916 = vmatpush.bf16.xpose.msra.mxu0 0
        %2917 = vmatpush.bf16.xpose.msra.mxu0 %v2908
        %2918 = vmatmul.bf16.gmra.mxu0 %v2905
        %v2919 = vpop.f32.mrf.mxu0
        %v2920 = vadd.f32 0.0, %v2919
        %v2921 = vpop.f32.mrf.mxu0
        %v2922 = vadd.f32 0.0, %v2921
        %2923 = vdwg.mxu0
        %v2924 = vsel %vm2167, %v2920, -1e+30
        %v2925 = vsel %vm2168, %v2922, -1e+30
        %v2926 = vsel %vm2198, %v2924, -inf
        %2927 = vmax.xlane.f32.xlu0 %v2926
        %v2928 = vpop.xlane.xlu0 %2927
        %v2929 = vsel %vm2202, %v2925, -inf
        %2930 = vmax.xlane.f32.xlu0 %v2929
        %v2931 = vpop.xlane.xlu0 %2930
        %v2932 = vsub.f32 %v2924, %v2928
        %v2933 = vsub.f32 %v2925, %v2931
        %v2934 = vmul.f32 %v2932, 1.442695
        %v2935 = vpow.pop %v2934
        %v2936 = vmul.f32 %v2933, 1.442695
        %v2937 = vpow.pop %v2936
        %v2938 = vsel %vm2198, %v2935, 0.0
        %2939 = vadd.xlane.f32.xlu0 %v2938
        %v2940 = vpop.xlane.xlu0 %2939
        %v2941 = vsel %vm2202, %v2937, 0.0
        %2942 = vadd.xlane.f32.xlu0 %v2941
        %v2943 = vpop.xlane.xlu0 %2942
        %v2944 = vrcp.pop %v2940
        %v2945 = vrcp.pop %v2943
        %v2946 = vmul.f32 %v2935, %v2944
        %v2947 = vmul.f32 %v2937, %v2945
        %v2948 = vpack.c.bf16 %v2947, %v2946
        %2949 = vrot.lane.b32.xlu0 %v2830, 56
        %v2950 = vpop.permute.xlu0 %2949
        %v2952 = vsel %vm2198, %v2948, 0
        %v2955 = vsel %vm2228, %v2950, 0
        %2957 = vmatpush.bf16.msra.mxu0 0
        %2958 = vmatpush.bf16.msra.mxu0 0
        %2959 = vmatpush.bf16.msra.mxu0 0
        %2960 = vmatpush.bf16.msra.mxu0 0
        %2961 = vmatpush.bf16.msra.mxu0 0
        %2962 = vmatpush.bf16.msra.mxu0 0
        %2963 = vmatpush.bf16.msra.mxu0 0
        %2964 = vmatpush.bf16.msra.mxu0 %v2955
        %2965 = vmatmul.bf16.gmra.mxu0 %v2952
        %v2966 = vpop.f32.mrf.mxu0
        %v2967 = vadd.f32 0.0, %v2966
        %v2968 = vpop.f32.mrf.mxu0
        %v2969 = vadd.f32 0.0, %v2968
        %2970 = vdwg.mxu0
        %2971 = vrot.lane.b32.xlu0 %v2830, 112
        %v2972 = vpop.permute.xlu0 %2971
        %2973 = vrot.lane.b32.xlu0 %v2830, 80
        %v2974 = vpop.permute.xlu0 %2973
        %v2976 = vsel %vm1625, %v2972, 0
        %v2979 = vsel %vm1625, %v2974, 0
        %2981 = vmatpush.bf16.xpose.msra.mxu0 0
        %2982 = vmatpush.bf16.xpose.msra.mxu0 0
        %2983 = vmatpush.bf16.xpose.msra.mxu0 0
        %2984 = vmatpush.bf16.xpose.msra.mxu0 0
        %2985 = vmatpush.bf16.xpose.msra.mxu0 0
        %2986 = vmatpush.bf16.xpose.msra.mxu0 0
        %2987 = vmatpush.bf16.xpose.msra.mxu0 0
        %2988 = vmatpush.bf16.xpose.msra.mxu0 %v2979
        %2989 = vmatmul.bf16.gmra.mxu0 %v2976
        %v2990 = vpop.f32.mrf.mxu0
        %v2991 = vadd.f32 0.0, %v2990
        %v2992 = vpop.f32.mrf.mxu0
        %v2993 = vadd.f32 0.0, %v2992
        %2994 = vdwg.mxu0
        %v2995 = vsel %vm2167, %v2991, -1e+30
        %v2996 = vsel %vm2168, %v2993, -1e+30
        %v2997 = vsel %vm2198, %v2995, -inf
        %2998 = vmax.xlane.f32.xlu0 %v2997
        %v2999 = vpop.xlane.xlu0 %2998
        %v3000 = vsel %vm2202, %v2996, -inf
        %3001 = vmax.xlane.f32.xlu0 %v3000
        %v3002 = vpop.xlane.xlu0 %3001
        %v3003 = vsub.f32 %v2995, %v2999
        %v3004 = vsub.f32 %v2996, %v3002
        %v3005 = vmul.f32 %v3003, 1.442695
        %v3006 = vpow.pop %v3005
        %v3007 = vmul.f32 %v3004, 1.442695
        %v3008 = vpow.pop %v3007
        %v3009 = vsel %vm2198, %v3006, 0.0
        %3010 = vadd.xlane.f32.xlu0 %v3009
        %v3011 = vpop.xlane.xlu0 %3010
        %v3012 = vsel %vm2202, %v3008, 0.0
        %3013 = vadd.xlane.f32.xlu0 %v3012
        %v3014 = vpop.xlane.xlu0 %3013
        %v3015 = vrcp.pop %v3011
        %v3016 = vrcp.pop %v3014
        %v3017 = vmul.f32 %v3006, %v3015
        %v3018 = vmul.f32 %v3008, %v3016
        %v3019 = vpack.c.bf16 %v3018, %v3017
        %3020 = vrot.lane.b32.xlu0 %v2830, 48
        %v3021 = vpop.permute.xlu0 %3020
        %v3023 = vsel %vm2198, %v3019, 0
        %v3026 = vsel %vm2228, %v3021, 0
        %3028 = vmatpush.bf16.msra.mxu0 0
        %3029 = vmatpush.bf16.msra.mxu0 0
        %3030 = vmatpush.bf16.msra.mxu0 0
        %3031 = vmatpush.bf16.msra.mxu0 0
        %3032 = vmatpush.bf16.msra.mxu0 0
        %3033 = vmatpush.bf16.msra.mxu0 0
        %3034 = vmatpush.bf16.msra.mxu0 0
        %3035 = vmatpush.bf16.msra.mxu0 %v3026
        %3036 = vmatmul.bf16.gmra.mxu0 %v3023
        %v3037 = vpop.f32.mrf.mxu0
        %v3038 = vadd.f32 0.0, %v3037
        %v3039 = vpop.f32.mrf.mxu0
        %v3040 = vadd.f32 0.0, %v3039
        %3041 = vdwg.mxu0
        %3042 = vrot.lane.b32.xlu0 %v2830, 104
        %v3043 = vpop.permute.xlu0 %3042
        %3044 = vrot.lane.b32.xlu0 %v2830, 72
        %v3045 = vpop.permute.xlu0 %3044
        %v3047 = vsel %vm1625, %v3043, 0
        %v3050 = vsel %vm1625, %v3045, 0
        %3052 = vmatpush.bf16.xpose.msra.mxu0 0
        %3053 = vmatpush.bf16.xpose.msra.mxu0 0
        %3054 = vmatpush.bf16.xpose.msra.mxu0 0
        %3055 = vmatpush.bf16.xpose.msra.mxu0 0
        %3056 = vmatpush.bf16.xpose.msra.mxu0 0
        %3057 = vmatpush.bf16.xpose.msra.mxu0 0
        %3058 = vmatpush.bf16.xpose.msra.mxu0 0
        %3059 = vmatpush.bf16.xpose.msra.mxu0 %v3050
        %3060 = vmatmul.bf16.gmra.mxu0 %v3047
        %v3061 = vpop.f32.mrf.mxu0
        %v3062 = vadd.f32 0.0, %v3061
        %v3063 = vpop.f32.mrf.mxu0
        %v3064 = vadd.f32 0.0, %v3063
        %3065 = vdwg.mxu0
        %v3066 = vsel %vm2167, %v3062, -1e+30
        %v3067 = vsel %vm2168, %v3064, -1e+30
        %v3068 = vsel %vm2198, %v3066, -inf
        %3069 = vmax.xlane.f32.xlu0 %v3068
        %v3070 = vpop.xlane.xlu0 %3069
        %v3071 = vsel %vm2202, %v3067, -inf
        %3072 = vmax.xlane.f32.xlu0 %v3071
        %v3073 = vpop.xlane.xlu0 %3072
        %v3074 = vsub.f32 %v3066, %v3070
        %v3075 = vsub.f32 %v3067, %v3073
        %v3076 = vmul.f32 %v3074, 1.442695
        %v3077 = vpow.pop %v3076
        %v3078 = vmul.f32 %v3075, 1.442695
        %v3079 = vpow.pop %v3078
        %v3080 = vsel %vm2198, %v3077, 0.0
        %3081 = vadd.xlane.f32.xlu0 %v3080
        %v3082 = vpop.xlane.xlu0 %3081
        %v3083 = vsel %vm2202, %v3079, 0.0
        %3084 = vadd.xlane.f32.xlu0 %v3083
        %v3085 = vpop.xlane.xlu0 %3084
        %v3086 = vrcp.pop %v3082
        %v3087 = vrcp.pop %v3085
        %v3088 = vmul.f32 %v3077, %v3086
        %v3089 = vmul.f32 %v3079, %v3087
        %v3090 = vpack.c.bf16 %v3089, %v3088
        %3091 = vrot.lane.b32.xlu0 %v2830, 40
        %v3092 = vpop.permute.xlu0 %3091
        %v3094 = vsel %vm2198, %v3090, 0
        %v3097 = vsel %vm2228, %v3092, 0
        %3099 = vmatpush.bf16.msra.mxu0 0
        %3100 = vmatpush.bf16.msra.mxu0 0
        %3101 = vmatpush.bf16.msra.mxu0 0
        %3102 = vmatpush.bf16.msra.mxu0 0
        %3103 = vmatpush.bf16.msra.mxu0 0
        %3104 = vmatpush.bf16.msra.mxu0 0
        %3105 = vmatpush.bf16.msra.mxu0 0
        %3106 = vmatpush.bf16.msra.mxu0 %v3097
        %3107 = vmatmul.bf16.gmra.mxu0 %v3094
        %v3108 = vpop.f32.mrf.mxu0
        %v3109 = vadd.f32 0.0, %v3108
        %v3110 = vpop.f32.mrf.mxu0
        %v3111 = vadd.f32 0.0, %v3110
        %3112 = vdwg.mxu0
        %3115 = vrot.lane.b32.xlu0 %v2967, 8
        %v3116 = vpop.permute.xlu0 %3115
        %3117 = vrot.lane.b32.xlu0 %v2969, 8
        %v3118 = vpop.permute.xlu0 %3117
        %3123 = vrot.lane.b32.xlu0 %v3038, 16
        %v3124 = vpop.permute.xlu0 %3123
        %3125 = vrot.lane.b32.xlu0 %v3040, 16
        %v3126 = vpop.permute.xlu0 %3125
        %3131 = vrot.lane.b32.xlu0 %v3109, 24
        %v3132 = vpop.permute.xlu0 %3131
        %3133 = vrot.lane.b32.xlu0 %v3111, 24
        %v3134 = vpop.permute.xlu0 %3133
        %v3137 = vsel %vm1625, %v2896, %v3116
        %v3138 = vsel %vm1625, %v2898, %v3118
        %v3139 = vsel %vm1418, %v3137, %v3124
        %v3140 = vsel %vm1418, %v3138, %v3126
        %v3141 = vsel %vm1861, %v3139, %v3132
        %v3142 = vsel %vm1861, %v3140, %v3134
        %v3143 = vpack.c.bf16 %v3142, %v3141
        %v3148 = vunpack.c.l.b16 %v2708
        %v3149 = vunpack.c.l.b16 %v2709
        %v3150 = vunpack.c.l.b16 %v2710
        %v3151 = vunpack.c.l.b16 %v2711
        %v3152 = vpack.c.b16 %v3149, %v3148
        %v3153 = vpack.c.b16 %v3151, %v3150
        %v3157 = vsel %vm1549, %v3143, 0
        %3159 = vmatpush.bf16.msra.mxu0 0
        %3160 = vmatpush.bf16.msra.mxu0 0
        %3161 = vmatpush.bf16.msra.mxu0 0
        %3162 = vmatpush.bf16.msra.mxu0 0
        %3163 = vmatpush.bf16.msra.mxu0 0
        %3164 = vmatpush.bf16.msra.mxu0 0
        %3165 = vmatpush.bf16.msra.mxu0 %v3153
        %3166 = vmatpush.bf16.msra.mxu0 %v3152
        %3167 = vmatmul.bf16.gmra.mxu0 %v3157
        %v3168 = vpop.f32.mrf.mxu0
        %v3169 = vadd.f32 0.0, %v3168
        %v3170 = vpop.f32.mrf.mxu0
        %v3171 = vadd.f32 0.0, %v3170
        %3172 = vdwg.mxu0
        %v3173 = vadd.f32 %v2699, %v3169
        %v3174 = vadd.f32 %v2700, %v3171
        %v3176 = vperm.slane %v2712, 0
        %v3178 = vadd.f32 %v3173, %v3176
        %v3179 = vadd.f32 %v3174, %v3176
        %v3180 = vsel %vm1549, %v3178, 0.0
        %3181 = vadd.xlane.f32.xlu0 %v3180
        %v3182 = vpop.xlane.xlu0 %3181
        %v3183 = vsel %vm1510, %v3179, 0.0
        %3184 = vadd.xlane.f32.xlu0 %v3183
        %v3185 = vpop.xlane.xlu0 %3184
        %v3186 = vmul.f32 %v3182, %v1559
        %v3187 = vmul.f32 %v3185, %v1559
        %v3188 = vsub.f32 %v3178, %v3186
        %v3189 = vsub.f32 %v3179, %v3187
        %v3190 = vmul.f32 %v3188, %v3188
        %v3191 = vmul.f32 %v3189, %v3189
        %v3192 = vsel %vm1549, %v3190, 0.0
        %3193 = vadd.xlane.f32.xlu0 %v3192
        %v3194 = vpop.xlane.xlu0 %3193
        %v3195 = vsel %vm1510, %v3191, 0.0
        %3196 = vadd.xlane.f32.xlu0 %v3195
        %v3197 = vpop.xlane.xlu0 %3196
        %v3198 = vmul.f32 %v3194, %v1559
        %v3199 = vmul.f32 %v3197, %v1559
        %v3200 = vadd.f32 %v3198, 1e-05
        %v3201 = vadd.f32 %v3199, 1e-05
        %v3202 = vrsqrt.pop %v3200
        %v3203 = vmul.f32 %v3202, %v3200
        %v3204 = vmul.f32 %v3203, %v3202
        %v3205 = vmul.f32 0.5, %v3204
        %v3206 = vsub.f32 1.5, %v3205
        %v3207 = vmul.f32 %v3202, %v3206
        %vm3208 = vweird.f32 %v3200
        %vm3209 = vweird.f32 %v3202
        %vm3210 = vmor %vm3208, %vm3209
        %v3211 = vsel %vm3210, %v3202, %v3207
        %v3212 = vrsqrt.pop %v3201
        %v3213 = vmul.f32 %v3212, %v3201
        %v3214 = vmul.f32 %v3213, %v3212
        %v3215 = vmul.f32 0.5, %v3214
        %v3216 = vsub.f32 1.5, %v3215
        %v3217 = vmul.f32 %v3212, %v3216
        %vm3218 = vweird.f32 %v3201
        %vm3219 = vweird.f32 %v3212
        %vm3220 = vmor %vm3218, %vm3219
        %v3221 = vsel %vm3220, %v3212, %v3217
        %v3222 = vmul.f32 %v3188, %v3211
        %v3223 = vmul.f32 %v3189, %v3221
        %v3225 = vperm.slane %v2713, 0
        %v3227 = vmul.f32 %v3222, %v3225
        %v3228 = vmul.f32 %v3223, %v3225
        %v3230 = vperm.slane %v2714, 0
        %v3232 = vadd.f32 %v3227, %v3230
        %v3233 = vadd.f32 %v3228, %v3230
        %v3234 = vpack.c.bf16 %v3233, %v3232
        %v3236 = vperm.slane %v2719, 0
        %v3242 = vunpack.c.l.b16 %v2715
        %v3243 = vunpack.c.l.b16 %v2716
        %v3244 = vunpack.c.l.b16 %v2717
        %v3245 = vunpack.c.l.b16 %v2718
        %v3246 = vpack.c.b16 %v3243, %v3242
        %v3247 = vpack.c.b16 %v3245, %v3244
        %v3251 = vsel %vm1549, %v3234, 0
        %3253 = vmatpush.bf16.msra.mxu0 0
        %3254 = vmatpush.bf16.msra.mxu0 0
        %3255 = vmatpush.bf16.msra.mxu0 0
        %3256 = vmatpush.bf16.msra.mxu0 0
        %3257 = vmatpush.bf16.msra.mxu0 0
        %3258 = vmatpush.bf16.msra.mxu0 0
        %3259 = vmatpush.bf16.msra.mxu0 %v3247
        %3260 = vmatpush.bf16.msra.mxu0 %v3246
        %3261 = vmatmul.bf16.gmra.mxu0 %v3251
        %v3262 = vpop.f32.mrf.mxu0
        %v3263 = vadd.f32 %v3236, %v3262
        %v3264 = vpop.f32.mrf.mxu0
        %v3265 = vadd.f32 %v3236, %v3264
        %3266 = vdwg.mxu0
        %v3267 = vmul.f32 %v3263, 0.5
        %v3268 = vmul.f32 %v3265, 0.5
        %v3269 = vmul.f32 %v3263, 0.044715
        %v3270 = vmul.f32 %v3265, 0.044715
        %v3271 = vmul.f32 %v3269, %v3263
        %v3272 = vmul.f32 %v3270, %v3265
        %v3273 = vmul.f32 %v3271, %v3263
        %v3274 = vmul.f32 %v3272, %v3265
        %v3275 = vadd.f32 %v3263, %v3273
        %v3276 = vadd.f32 %v3265, %v3274
        %v3277 = vmul.f32 %v3275, 0.7978846
        %v3278 = vmul.f32 %v3276, 0.7978846
        %v3279 = vtanh.pop %v3277
        %v3280 = vtanh.pop %v3278
        %v3281 = vadd.f32 %v3279, 1.0
        %v3282 = vadd.f32 %v3280, 1.0
        %v3283 = vmul.f32 %v3267, %v3281
        %v3284 = vmul.f32 %v3268, %v3282
        %v3285 = vpack.c.bf16 %v3284, %v3283
        %v3302 = vunpack.c.l.b16 %v2720
        %v3303 = vunpack.c.l.b16 %v2721
        %v3304 = vunpack.c.l.b16 %v2722
        %v3305 = vunpack.c.l.b16 %v2723
        %v3306 = vunpack.c.l.b16 %v2724
        %v3307 = vunpack.c.l.b16 %v2725
        %v3308 = vunpack.c.l.b16 %v2726
        %v3309 = vunpack.c.l.b16 %v2727
        %v3310 = vunpack.c.l.b16 %v2728
        %v3311 = vunpack.c.l.b16 %v2729
        %v3312 = vunpack.c.l.b16 %v2730
        %v3313 = vunpack.c.l.b16 %v2731
        %v3314 = vunpack.c.l.b16 %v2732
        %v3315 = vunpack.c.l.b16 %v2733
        %v3316 = vunpack.c.l.b16 %v2734
        %v3317 = vunpack.c.l.b16 %v2735
        %v3318 = vpack.c.b16 %v3303, %v3302
        %v3319 = vpack.c.b16 %v3305, %v3304
        %v3320 = vpack.c.b16 %v3307, %v3306
        %v3321 = vpack.c.b16 %v3309, %v3308
        %v3322 = vpack.c.b16 %v3311, %v3310
        %v3323 = vpack.c.b16 %v3313, %v3312
        %v3324 = vpack.c.b16 %v3315, %v3314
        %v3325 = vpack.c.b16 %v3317, %v3316
        %3334 = vmatpush.bf16.msra.mxu0 %v3325
        %3335 = vmatpush.bf16.msra.mxu0 %v3324
        %3336 = vmatpush.bf16.msra.mxu0 %v3323
        %3337 = vmatpush.bf16.msra.mxu0 %v3322
        %3338 = vmatpush.bf16.msra.mxu0 %v3321
        %3339 = vmatpush.bf16.msra.mxu0 %v3320
        %3340 = vmatpush.bf16.msra.mxu0 %v3319
        %3341 = vmatpush.bf16.msra.mxu0 %v3318
        %3342 = vmatmul.bf16.gmra.mxu0 %v3285
        %v3343 = vpop.f32.mrf.mxu0
        %v3344 = vadd.f32 0.0, %v3343
        %v3345 = vpop.f32.mrf.mxu0
        %v3346 = vadd.f32 0.0, %v3345
        %3347 = vdwg.mxu0
        %v3348 = vadd.f32 %v3178, %v3344
        %v3349 = vadd.f32 %v3179, %v3346
        %v3351 = vperm.slane %v2736, 0
        %v3353 = vadd.f32 %v3348, %v3351
        %v3354 = vadd.f32 %v3349, %v3351
        %v3355 = vld [vmem:[#allocation5] sm:$0x1]
        %v3356 = vld [vmem:[#allocation7] sm:$0x1]
        %v3357 = vsel %vm1549, %v3353, 0.0
        %3358 = vadd.xlane.f32.xlu0 %v3357
        %v3359 = vpop.xlane.xlu0 %3358
        %v3360 = vsel %vm1510, %v3354, 0.0
        %3361 = vadd.xlane.f32.xlu0 %v3360
        %v3362 = vpop.xlane.xlu0 %3361
        %v3363 = vmul.f32 %v3359, %v1559
        %v3364 = vmul.f32 %v3362, %v1559
        %v3365 = vsub.f32 %v3353, %v3363
        %v3366 = vsub.f32 %v3354, %v3364
        %v3367 = vmul.f32 %v3365, %v3365
        %v3368 = vmul.f32 %v3366, %v3366
        %v3369 = vsel %vm1549, %v3367, 0.0
        %3370 = vadd.xlane.f32.xlu0 %v3369
        %v3371 = vpop.xlane.xlu0 %3370
        %v3372 = vsel %vm1510, %v3368, 0.0
        %3373 = vadd.xlane.f32.xlu0 %v3372
        %v3374 = vpop.xlane.xlu0 %3373
        %v3375 = vmul.f32 %v3371, %v1559
        %v3376 = vmul.f32 %v3374, %v1559
        %v3377 = vadd.f32 %v3375, 1e-05
        %v3378 = vadd.f32 %v3376, 1e-05
        %v3379 = vrsqrt.pop %v3377
        %v3380 = vmul.f32 %v3379, %v3377
        %v3381 = vmul.f32 %v3380, %v3379
        %v3382 = vmul.f32 0.5, %v3381
        %v3383 = vsub.f32 1.5, %v3382
        %v3384 = vmul.f32 %v3379, %v3383
        %vm3385 = vweird.f32 %v3377
        %vm3386 = vweird.f32 %v3379
        %vm3387 = vmor %vm3385, %vm3386
        %v3388 = vsel %vm3387, %v3379, %v3384
        %v3389 = vrsqrt.pop %v3378
        %v3390 = vmul.f32 %v3389, %v3378
        %v3391 = vmul.f32 %v3390, %v3389
        %v3392 = vmul.f32 0.5, %v3391
        %v3393 = vsub.f32 1.5, %v3392
        %v3394 = vmul.f32 %v3389, %v3393
        %vm3395 = vweird.f32 %v3378
        %vm3396 = vweird.f32 %v3389
        %vm3397 = vmor %vm3395, %vm3396
        %v3398 = vsel %vm3397, %v3389, %v3394
        %v3399 = vmul.f32 %v3365, %v3388
        %v3400 = vmul.f32 %v3366, %v3398
        %v3402 = vperm.slane %v3355, 0
        %v3404 = vmul.f32 %v3399, %v3402
        %v3405 = vmul.f32 %v3400, %v3402
        %v3407 = vperm.slane %v3356, 0
        %v3409 = vadd.f32 %v3404, %v3407
        %v3410 = vadd.f32 %v3405, %v3407
        %v3411 = vpack.c.bf16 %v3410, %v3409
        %v3412 = vld [vmem:[%s89] sm:$0xf]
        %v3413 = vld [vmem:[%s89 + $0x4] sm:$0xf]
        %v3414 = vld [vmem:[%s89 + $0x8] sm:$0xf]
        %v3415 = vld [vmem:[%s89 + $0xc] sm:$0xf]
        %v3420 = vunpack.c.l.b16 %v3412
        %v3421 = vunpack.c.l.b16 %v3413
        %v3422 = vunpack.c.l.b16 %v3414
        %v3423 = vunpack.c.l.b16 %v3415
        %v3424 = vpack.c.b16 %v3421, %v3420
        %v3425 = vpack.c.b16 %v3423, %v3422
        %v3429 = vsel %vm1549, %v3411, 0
        %3431 = vmatpush.bf16.msra.mxu0 0
        %3432 = vmatpush.bf16.msra.mxu0 0
        %3433 = vmatpush.bf16.msra.mxu0 0
        %3434 = vmatpush.bf16.msra.mxu0 0
        %3435 = vmatpush.bf16.msra.mxu0 0
        %3436 = vmatpush.bf16.msra.mxu0 0
        %3437 = vmatpush.bf16.msra.mxu0 %v3425
        %3438 = vmatpush.bf16.msra.mxu0 %v3424
        %3439 = vmatmul.bf16.gmra.mxu0 %v3429
        %v3440 = vpop.f32.mrf.mxu0
        %v3441 = vadd.f32 0.0, %v3440
        %v3442 = vpop.f32.mrf.mxu0
        %v3443 = vadd.f32 0.0, %v3442
        %3444 = vdwg.mxu0
        %3445 = vst [vmem:[%s1405] sm:$0xff] %v3441
        %3446 = vst [vmem:[%s1405 + $0x8] sm:$0xf] %v3443
        %p3447 = scmp.lt.s32.totalorder %s104, 1
        %s3448 = scalar_select %p3447, %s104, 1
        %s3449 = smul.addr %s3448, 2
        %s3450 = smul.addr %s3449, 8
        %s3451 = scalar_lea.vmem %s91, %s3450
        // Predicated region
        $region213: #{vqaclip_forward.1} parent=199 // pred_check
          %p3452 = pneg %p1077
        $region214: #{vqaclip_forward.1} parent=199 // pred_check_branch
          %3454 = sbr.rel (%p3452) target = $region216
        $region215: #{vqaclip_forward.1} parent=199 // pred_region
          _
        $region216: #{vqaclip_forward.1} parent=199 // pred_fallthru
          _
      $region200: #{vqaclip_forward.1} parent=5 // pred_fallthru
        _
      %p3455 = scmp.le.s32.totalorder 2, %s99
      // Predicated region
      $region217: #{vqaclip_forward.1} parent=5 // pred_check
        %p3456 = pneg %p3455
      $region218: #{vqaclip_forward.1} parent=5 // pred_check_branch
        %3458 = sbr.rel (%p3456) target = $region220
      $region219: #{vqaclip_forward.1} parent=5 // pred_region
        %s3459 = ssub.s32 %s99, 2
        // Predicated region
        $region221: #{vqaclip_forward.1} parent=219 // pred_check
          %p3460 = pneg %p1083
        $region222: #{vqaclip_forward.1} parent=219 // pred_check_branch
          %3462 = sbr.rel (%p3460) target = $region224
        $region223: #{vqaclip_forward.1} parent=219 // pred_region
          %p3463 = scmp.lt.s32.totalorder %s105, 1
          %s3464 = scalar_select %p3463, %s105, 1
          %s3465 = smul.addr %s3464, 2
          %s3466 = smul.addr %s3465, 8
          %s3467 = scalar_lea.vmem %s91, %s3466
        $region224: #{vqaclip_forward.1} parent=219 // pred_fallthru
          _
      $region220: #{vqaclip_forward.1} parent=5 // pred_fallthru
        _
    $region6: #{vqaclip_forward.1} parent=1 // loop_footer
      %s103 = sadd.s32 1, %s99
    $region7: #{vqaclip_forward.1} parent=1 // loop_footer_branch
      %98 = sbr.rel target = $region3
    $region8: #{vqaclip_forward.1} parent=1 // loop_exit
      _
    %3468 = vsyncpa [#allocation4], 1
    %s3469 = scalar_lea.sflag [#allocation4], 1
    %3470 = vsyncpa %s3469, 1
    %3471 = vsyncpa [#allocation6], 1

</llo_original>
